<compile_context>
chip_gen: v6e
topology: v6e:2x2x1
jax: 0.10.0
libtpu: 0.0.40
codegen_flags: <defaults>
</compile_context>

<pallas_src>
import math

import jax
import jax.numpy as jnp
from jax.experimental import pallas as pl
from jax.experimental.pallas import tpu as pltpu

# ----------------------- model hyperparameters (small) -----------------------
B = 2        # batch
S = 8        # sequence length (also max predicted length)
VOCAB = 25   # vocab size
D = 32       # d_model
DFF = 64     # feed-forward width
H = 4        # attention heads
DH = D // H  # per-head dim
Z = 16       # latent size
PH = 16      # property-predictor hidden
NP = 1       # number of predicted properties

_MXU = jnp.bfloat16   # MXU operand dtype (f32 accumulation everywhere)

# Ordered names of all weight tensors that are passed into the fused kernel.
W_NAMES = (
    # encoder
    "enc_ln", "enc_wqkv", "enc_bqkv", "enc_wo", "enc_bo",
    "enc_w1", "enc_b1", "enc_w2", "enc_b2",
    # VAE bottleneck
    "w_mulv", "b_mulv", "w_z2mem", "b_z2mem", "w_len", "b_len",
    # decoder
    "dec_ln", "dec_s_wqkv", "dec_s_bqkv", "dec_s_wo", "dec_s_bo",
    "dec_c_wq", "dec_c_bq", "dec_c_wkv", "dec_c_bkv", "dec_c_wo", "dec_c_bo",
    "dec_w1", "dec_b1", "dec_w2", "dec_b2",
    # generator + property predictor
    "w_gen", "b_gen", "w_p1", "b_p1", "w_p2", "b_p2",
)
NW = len(W_NAMES)


# ------------------------------- fused kernel --------------------------------
def _mm(a, b):
    """bf16 MXU matmul with f32 accumulation."""
    return jnp.dot(a.astype(_MXU), b.astype(_MXU),
                   preferred_element_type=jnp.float32)


def _qk(qh, kh):
    """(Sq,DH) x (Sk,DH) -> (Sq,Sk), contracting the head dim (no transpose)."""
    return jax.lax.dot_general(
        qh.astype(_MXU), kh.astype(_MXU),
        dimension_numbers=(((1,), (1,)), ((), ())),
        preferred_element_type=jnp.float32)


def _fused_forward_kernel(se_ref, te_ref, sm_ref, tm_ref, eps_ref, *rest):
    """One grid step == one batch element.  Everything stays in VMEM."""
    w = dict(zip(W_NAMES, rest[:NW]))
    x_out, mu_out, lv_out, len_out, prop_out = rest[NW:]

    scale = 1.0 / math.sqrt(DH)

    # -------- helpers (all f32 elementwise, bf16 only at MXU inputs) --------
    def layernorm(x, gb):                       # x (S,D), gb (2,D)
        g = gb[0:1, :]
        b = gb[1:2, :]
        m = jnp.mean(x, axis=-1, keepdims=True)
        v = jnp.mean((x - m) ** 2, axis=-1, keepdims=True)
        return (x - m) * jax.lax.rsqrt(v + 1e-5) * g + b

    def heads_attn(q, k, v, mask, w_o, b_o):    # q,k,v (S,D); mask (1,S) or (S,S)
        outs = []
        for h in range(H):                      # static unroll over heads
            sl = slice(h * DH, (h + 1) * DH)
            s = _qk(q[:, sl], k[:, sl]) * scale             # (S,S) f32
            s = jnp.where(mask > 0.0, s, -1e9)
            s = s - jnp.max(s, axis=-1, keepdims=True)
            p = jnp.exp(s)
            p = p / jnp.sum(p, axis=-1, keepdims=True)
            outs.append(_mm(p, v[:, sl]))                   # (S,DH)
        o = jnp.concatenate(outs, axis=-1)                  # (S,D)
        return _mm(o, w_o) + b_o

    def self_attn(x, mask, wqkv, bqkv, wo, bo):
        qkv = _mm(x, wqkv) + bqkv                           # fused Q/K/V matmul
        return heads_attn(qkv[:, :D], qkv[:, D:2 * D], qkv[:, 2 * D:],
                          mask, wo, bo)

    def cross_attn(x, mem, mask, wq, bq, wkv, bkv, wo, bo):
        q = _mm(x, wq) + bq
        kv = _mm(mem, wkv) + bkv                            # fused K/V matmul
        return heads_attn(q, kv[:, :D], kv[:, D:], mask, wo, bo)

    def feed_forward(x, w1, b1, w2, b2):
        hid = jnp.maximum(_mm(x, w1) + b1, 0.0)
        return _mm(hid, w2) + b2

    # ------------------------------- encoder --------------------------------
    x = se_ref[0]                               # (S, D) embedded src (scaled + PE)
    src_row = sm_ref[0]                         # (1, S) key-padding mask {0,1}
    enc_ln = w["enc_ln"]

    xn = layernorm(x, enc_ln[0])
    x = x + self_attn(xn, src_row, w["enc_wqkv"][...], w["enc_bqkv"][...],
                      w["enc_wo"][...], w["enc_bo"][...])
    xn = layernorm(x, enc_ln[1])
    x = x + feed_forward(xn, w["enc_w1"][...], w["enc_b1"][...],
                         w["enc_w2"][...], w["enc_b2"][...])
    x = layernorm(x, enc_ln[2])

    # masked mean-pool as a (1,S)@(S,D) matmul (guard against all-pad rows)
    cnt = jnp.maximum(jnp.sum(src_row, axis=-1, keepdims=True), 1.0)   # (1,1)
    pooled = jnp.dot(src_row, x, preferred_element_type=jnp.float32) / cnt

    # VAE bottleneck: fused mu/logvar projection, reparameterize, z->mem, len
    mulv = _mm(pooled, w["w_mulv"][...]) + w["b_mulv"][...]            # (1,2Z)
    mu = mulv[:, :Z]
    lv = mulv[:, Z:]
    z = mu + jnp.exp(0.5 * lv) * eps_ref[0]                            # (1,Z)
    mem_tok = _mm(z, w["w_z2mem"][...]) + w["b_z2mem"][...]            # (1,D)
    mem = jnp.broadcast_to(mem_tok, (S, D))
    pred_len = _mm(mu, w["w_len"][...]) + w["b_len"][...]              # (1,S)

    # ------------------------------- decoder --------------------------------
    y = te_ref[0]                               # (S, D) embedded tgt
    tgt_mask = tm_ref[0]                        # (S, S) causal+pad mask
    dec_ln = w["dec_ln"]

    yn = layernorm(y, dec_ln[0])
    y = y + self_attn(yn, tgt_mask, w["dec_s_wqkv"][...], w["dec_s_bqkv"][...],
                      w["dec_s_wo"][...], w["dec_s_bo"][...])
    yn = layernorm(y, dec_ln[1])
    y = y + cross_attn(yn, mem, src_row, w["dec_c_wq"][...], w["dec_c_bq"][...],
                       w["dec_c_wkv"][...], w["dec_c_bkv"][...],
                       w["dec_c_wo"][...], w["dec_c_bo"][...])
    yn = layernorm(y, dec_ln[2])
    y = y + feed_forward(yn, w["dec_w1"][...], w["dec_b1"][...],
                         w["dec_w2"][...], w["dec_b2"][...])
    y = layernorm(y, dec_ln[3])

    # --------------------- generator (matmul + log_softmax) -----------------
    logits = _mm(y, w["w_gen"][...]) + w["b_gen"][...]                 # (S,V)
    mx = jnp.max(logits, axis=-1, keepdims=True)
    lse = jnp.log(jnp.sum(jnp.exp(logits - mx), axis=-1, keepdims=True)) + mx
    x_out[0] = (logits - lse).astype(x_out.dtype)

    # --------------------------- property predictor -------------------------
    ph = jnp.maximum(_mm(mu, w["w_p1"][...]) + w["b_p1"][...], 0.0)    # (1,PH)
    prop = _mm(ph, w["w_p2"][...]) + w["b_p2"][...]                    # (1,NP)

    mu_out[0] = mu.astype(mu_out.dtype)
    lv_out[0] = lv.astype(lv_out.dtype)
    len_out[0] = pred_len.astype(len_out.dtype)
    prop_out[0] = prop.astype(prop_out.dtype)


# ------------------------------- host wrapper ---------------------------------
def _zeros_map(nd):
    return lambda b, n=nd: (0,) * n


def forward(params, src, tgt, src_mask, tgt_mask, eps):
    """Mirrors EncoderDecoder.forward: returns (x, mu, logvar, pred_len, prop)."""
    Bb, Ss = src.shape

    # Embedding: gather (no one-hot matmul); sqrt(D) is folded into the table;
    # PE add fuses into the same XLA op.
    src_e = jnp.take(params["src_emb"], src, axis=0) + params["pe"][None, :Ss, :]
    tgt_e = jnp.take(params["tgt_emb"], tgt, axis=0) + params["pe"][None, :Ss, :]

    srcm = src_mask.astype(jnp.float32)            # (B, 1, S)
    tgtm = tgt_mask.astype(jnp.float32)            # (B, S, S)
    eps3 = eps.reshape(Bb, 1, Z).astype(jnp.float32)

    weights = [params[name] for name in W_NAMES]

    act_specs = [
        pl.BlockSpec((1, Ss, D), lambda b: (b, 0, 0)),     # src embeddings
        pl.BlockSpec((1, Ss, D), lambda b: (b, 0, 0)),     # tgt embeddings
        pl.BlockSpec((1, 1, Ss), lambda b: (b, 0, 0)),     # src pad mask
        pl.BlockSpec((1, Ss, Ss), lambda b: (b, 0, 0)),    # tgt mask
        pl.BlockSpec((1, 1, Z), lambda b: (b, 0, 0)),      # reparam noise
    ]
    # Weights: full arrays resident in VMEM for every grid step.
    w_specs = [pl.BlockSpec(wt.shape, _zeros_map(wt.ndim)) for wt in weights]

    out_shapes = (
        jax.ShapeDtypeStruct((Bb, Ss, VOCAB), jnp.float32),   # log-probs
        jax.ShapeDtypeStruct((Bb, 1, Z), jnp.float32),        # mu
        jax.ShapeDtypeStruct((Bb, 1, Z), jnp.float32),        # logvar
        jax.ShapeDtypeStruct((Bb, 1, Ss), jnp.float32),       # pred_len
        jax.ShapeDtypeStruct((Bb, 1, NP), jnp.float32),       # property
    )
    out_specs = (
        pl.BlockSpec((1, Ss, VOCAB), lambda b: (b, 0, 0)),
        pl.BlockSpec((1, 1, Z), lambda b: (b, 0, 0)),
        pl.BlockSpec((1, 1, Z), lambda b: (b, 0, 0)),
        pl.BlockSpec((1, 1, Ss), lambda b: (b, 0, 0)),
        pl.BlockSpec((1, 1, NP), lambda b: (b, 0, 0)),
    )

    x, mu, lv, plen, prop = pl.pallas_call(
        _fused_forward_kernel,
        out_shape=out_shapes,
        grid=(Bb,),
        in_specs=act_specs + w_specs,
        out_specs=out_specs,
        compiler_params=pltpu.CompilerParams(
            dimension_semantics=("parallel",)),   # shards across TCs on v7x
    )(src_e, tgt_e, srcm, tgtm, eps3, *weights)

    return x, mu[:, 0], lv[:, 0], plen[:, 0], prop[:, 0]


# ---------------------------- deterministic params ---------------------------
def positional_encoding(seq_len, d_model):
    pos = jnp.arange(seq_len, dtype=jnp.float32)[:, None]
    i = jnp.arange(0, d_model, 2, dtype=jnp.float32)
    div = jnp.exp(-math.log(10000.0) * i / d_model)
    pe = jnp.zeros((seq_len, d_model), jnp.float32)
    pe = pe.at[:, 0::2].set(jnp.sin(pos * div))
    pe = pe.at[:, 1::2].set(jnp.cos(pos * div))
    return pe


def init_params(key):
    ks = iter(jax.random.split(key, 32))

    def wmat(fi, fo):   # matmul weights stored in bf16 (halves weight DMA)
        return (jax.random.normal(next(ks), (fi, fo), jnp.float32)
                / math.sqrt(fi)).astype(_MXU)

    def bias(fo):
        return jnp.zeros((1, fo), jnp.float32)

    def ln_pack(n):     # (n, 2, D): [i,0]=gamma, [i,1]=beta
        one = jnp.stack([jnp.ones((D,), jnp.float32),
                         jnp.zeros((D,), jnp.float32)])
        return jnp.tile(one[None], (n, 1, 1))

    return {
        # embeddings (plain-JAX gather; sqrt(D) folded into the table)
        "src_emb": jax.random.normal(next(ks), (VOCAB, D), jnp.float32)
                   * 0.1 * math.sqrt(D),
        "tgt_emb": jax.random.normal(next(ks), (VOCAB, D), jnp.float32)
                   * 0.1 * math.sqrt(D),
        "pe": positional_encoding(S, D),
        # encoder
        "enc_ln": ln_pack(3),
        "enc_wqkv": wmat(D, 3 * D), "enc_bqkv": bias(3 * D),
        "enc_wo": wmat(D, D), "enc_bo": bias(D),
        "enc_w1": wmat(D, DFF), "enc_b1": bias(DFF),
        "enc_w2": wmat(DFF, D), "enc_b2": bias(D),
        # VAE bottleneck (mu/logvar fused into one projection)
        "w_mulv": wmat(D, 2 * Z), "b_mulv": bias(2 * Z),
        "w_z2mem": wmat(Z, D), "b_z2mem": bias(D),
        "w_len": wmat(Z, S), "b_len": bias(S),
        # decoder
        "dec_ln": ln_pack(4),
        "dec_s_wqkv": wmat(D, 3 * D), "dec_s_bqkv": bias(3 * D),
        "dec_s_wo": wmat(D, D), "dec_s_bo": bias(D),
        "dec_c_wq": wmat(D, D), "dec_c_bq": bias(D),
        "dec_c_wkv": wmat(D, 2 * D), "dec_c_bkv": bias(2 * D),
        "dec_c_wo": wmat(D, D), "dec_c_bo": bias(D),
        "dec_w1": wmat(D, DFF), "dec_b1": bias(DFF),
        "dec_w2": wmat(DFF, D), "dec_b2": bias(D),
        # generator + property predictor
        "w_gen": wmat(D, VOCAB), "b_gen": bias(VOCAB),
        "w_p1": wmat(Z, PH), "b_p1": bias(PH),
        "w_p2": wmat(PH, NP), "b_p2": bias(NP),
    }


# ------------------------------------ main ------------------------------------
if __name__ == "__main__":
    key = jax.random.PRNGKey(0)
    k_src, k_tgt, k_eps = jax.random.split(key, 3)

    src = jax.random.randint(k_src, (B, S), 1, VOCAB)
    tgt = jax.random.randint(k_tgt, (B, S), 1, VOCAB)

    lengths = jnp.array([S, S - 2], dtype=jnp.int32)
    pos = jnp.arange(S)
    pad = pos[None, :] < lengths[:, None]                 # (B, S) bool
    src_mask = pad[:, None, :]                            # (B, 1, S) bool
    subsequent = jnp.tril(jnp.ones((S, S), dtype=bool))
    tgt_mask = pad[:, None, :] & subsequent[None, :, :]   # (B, S, S) bool

    # deterministic reparameterization noise (VAE sampling)
    eps = jax.random.normal(k_eps, (B, Z), jnp.float32)

    params = init_params(jax.random.PRNGKey(42))

    fwd = jax.jit(forward)
    out = fwd(params, src, tgt, src_mask, tgt_mask, eps)
    out = jax.block_until_ready(out)
    x, mu, logvar, pred_len, prop = out

    assert x.shape == (B, S, VOCAB)
    assert mu.shape == (B, Z) and logvar.shape == (B, Z)
    assert pred_len.shape == (B, S)
    assert prop.shape == (B, NP)
    assert jnp.all(jnp.isfinite(x)) and jnp.all(jnp.isfinite(mu))
    # generator produces log-probabilities: rows must sum to 1 after exp
    assert jnp.allclose(jnp.exp(x).sum(-1), 1.0, atol=1e-4)

    print("KERNEL_OK")
</pallas_src>

<mosaic_0001>
module attributes {stable_mosaic.version = 11 : i64} {
  func.func @_fused_forward_kernel(%arg0: i32, %arg1: memref<1x8x32xf32, #tpu.memory_space<vmem>>, %arg2: memref<1x8x32xf32, #tpu.memory_space<vmem>>, %arg3: memref<1x1x8xf32, #tpu.memory_space<vmem>>, %arg4: memref<1x8x8xf32, #tpu.memory_space<vmem>>, %arg5: memref<1x1x16xf32, #tpu.memory_space<vmem>>, %arg6: memref<3x2x32xf32, #tpu.memory_space<vmem>>, %arg7: memref<32x96xbf16, #tpu.memory_space<vmem>>, %arg8: memref<1x96xf32, #tpu.memory_space<vmem>>, %arg9: memref<32x32xbf16, #tpu.memory_space<vmem>>, %arg10: memref<1x32xf32, #tpu.memory_space<vmem>>, %arg11: memref<32x64xbf16, #tpu.memory_space<vmem>>, %arg12: memref<1x64xf32, #tpu.memory_space<vmem>>, %arg13: memref<64x32xbf16, #tpu.memory_space<vmem>>, %arg14: memref<1x32xf32, #tpu.memory_space<vmem>>, %arg15: memref<32x32xbf16, #tpu.memory_space<vmem>>, %arg16: memref<1x32xf32, #tpu.memory_space<vmem>>, %arg17: memref<16x32xbf16, #tpu.memory_space<vmem>>, %arg18: memref<1x32xf32, #tpu.memory_space<vmem>>, %arg19: memref<16x8xbf16, #tpu.memory_space<vmem>>, %arg20: memref<1x8xf32, #tpu.memory_space<vmem>>, %arg21: memref<4x2x32xf32, #tpu.memory_space<vmem>>, %arg22: memref<32x96xbf16, #tpu.memory_space<vmem>>, %arg23: memref<1x96xf32, #tpu.memory_space<vmem>>, %arg24: memref<32x32xbf16, #tpu.memory_space<vmem>>, %arg25: memref<1x32xf32, #tpu.memory_space<vmem>>, %arg26: memref<32x32xbf16, #tpu.memory_space<vmem>>, %arg27: memref<1x32xf32, #tpu.memory_space<vmem>>, %arg28: memref<32x64xbf16, #tpu.memory_space<vmem>>, %arg29: memref<1x64xf32, #tpu.memory_space<vmem>>, %arg30: memref<32x32xbf16, #tpu.memory_space<vmem>>, %arg31: memref<1x32xf32, #tpu.memory_space<vmem>>, %arg32: memref<32x64xbf16, #tpu.memory_space<vmem>>, %arg33: memref<1x64xf32, #tpu.memory_space<vmem>>, %arg34: memref<64x32xbf16, #tpu.memory_space<vmem>>, %arg35: memref<1x32xf32, #tpu.memory_space<vmem>>, %arg36: memref<32x25xbf16, #tpu.memory_space<vmem>>, %arg37: memref<1x25xf32, #tpu.memory_space<vmem>>, %arg38: memref<16x16xbf16, #tpu.memory_space<vmem>>, %arg39: memref<1x16xf32, #tpu.memory_space<vmem>>, %arg40: memref<16x1xbf16, #tpu.memory_space<vmem>>, %arg41: memref<1x1xf32, #tpu.memory_space<vmem>>, %arg42: memref<1x8x25xf32, #tpu.memory_space<vmem>>, %arg43: memref<1x1x16xf32, #tpu.memory_space<vmem>>, %arg44: memref<1x1x16xf32, #tpu.memory_space<vmem>>, %arg45: memref<1x1x8xf32, #tpu.memory_space<vmem>>, %arg46: memref<1x1x1xf32, #tpu.memory_space<vmem>>) attributes {dimension_semantics = [#tpu.dimension_semantics<parallel>], iteration_bounds = array<i64: 2>, scalar_prefetch = 0 : i64, scratch_operands = 0 : i64, tpu.core_type = #tpu.core_type<tc>, window_params = [{transform_indices = @transform_0, window_bounds = array<i64: 1, 8, 32>}, {transform_indices = @transform_1, window_bounds = array<i64: 1, 8, 32>}, {transform_indices = @transform_2, window_bounds = array<i64: 1, 1, 8>}, {transform_indices = @transform_3, window_bounds = array<i64: 1, 8, 8>}, {transform_indices = @transform_4, window_bounds = array<i64: 1, 1, 16>}, {pipeline_mode = #tpu.pipeline_mode<synchronous>, transform_indices = @transform_5, window_bounds = array<i64: 3, 2, 32>}, {pipeline_mode = #tpu.pipeline_mode<synchronous>, transform_indices = @transform_6, window_bounds = array<i64: 32, 96>}, {pipeline_mode = #tpu.pipeline_mode<synchronous>, transform_indices = @transform_7, window_bounds = array<i64: 1, 96>}, {pipeline_mode = #tpu.pipeline_mode<synchronous>, transform_indices = @transform_8, window_bounds = array<i64: 32, 32>}, {pipeline_mode = #tpu.pipeline_mode<synchronous>, transform_indices = @transform_9, window_bounds = array<i64: 1, 32>}, {pipeline_mode = #tpu.pipeline_mode<synchronous>, transform_indices = @transform_10, window_bounds = array<i64: 32, 64>}, {pipeline_mode = #tpu.pipeline_mode<synchronous>, transform_indices = @transform_11, window_bounds = array<i64: 1, 64>}, {pipeline_mode = #tpu.pipeline_mode<synchronous>, transform_indices = @transform_12, window_bounds = array<i64: 64, 32>}, {pipeline_mode = #tpu.pipeline_mode<synchronous>, transform_indices = @transform_13, window_bounds = array<i64: 1, 32>}, {pipeline_mode = #tpu.pipeline_mode<synchronous>, transform_indices = @transform_14, window_bounds = array<i64: 32, 32>}, {pipeline_mode = #tpu.pipeline_mode<synchronous>, transform_indices = @transform_15, window_bounds = array<i64: 1, 32>}, {pipeline_mode = #tpu.pipeline_mode<synchronous>, transform_indices = @transform_16, window_bounds = array<i64: 16, 32>}, {pipeline_mode = #tpu.pipeline_mode<synchronous>, transform_indices = @transform_17, window_bounds = array<i64: 1, 32>}, {pipeline_mode = #tpu.pipeline_mode<synchronous>, transform_indices = @transform_18, window_bounds = array<i64: 16, 8>}, {pipeline_mode = #tpu.pipeline_mode<synchronous>, transform_indices = @transform_19, window_bounds = array<i64: 1, 8>}, {pipeline_mode = #tpu.pipeline_mode<synchronous>, transform_indices = @transform_20, window_bounds = array<i64: 4, 2, 32>}, {pipeline_mode = #tpu.pipeline_mode<synchronous>, transform_indices = @transform_21, window_bounds = array<i64: 32, 96>}, {pipeline_mode = #tpu.pipeline_mode<synchronous>, transform_indices = @transform_22, window_bounds = array<i64: 1, 96>}, {pipeline_mode = #tpu.pipeline_mode<synchronous>, transform_indices = @transform_23, window_bounds = array<i64: 32, 32>}, {pipeline_mode = #tpu.pipeline_mode<synchronous>, transform_indices = @transform_24, window_bounds = array<i64: 1, 32>}, {pipeline_mode = #tpu.pipeline_mode<synchronous>, transform_indices = @transform_25, window_bounds = array<i64: 32, 32>}, {pipeline_mode = #tpu.pipeline_mode<synchronous>, transform_indices = @transform_26, window_bounds = array<i64: 1, 32>}, {pipeline_mode = #tpu.pipeline_mode<synchronous>, transform_indices = @transform_27, window_bounds = array<i64: 32, 64>}, {pipeline_mode = #tpu.pipeline_mode<synchronous>, transform_indices = @transform_28, window_bounds = array<i64: 1, 64>}, {pipeline_mode = #tpu.pipeline_mode<synchronous>, transform_indices = @transform_29, window_bounds = array<i64: 32, 32>}, {pipeline_mode = #tpu.pipeline_mode<synchronous>, transform_indices = @transform_30, window_bounds = array<i64: 1, 32>}, {pipeline_mode = #tpu.pipeline_mode<synchronous>, transform_indices = @transform_31, window_bounds = array<i64: 32, 64>}, {pipeline_mode = #tpu.pipeline_mode<synchronous>, transform_indices = @transform_32, window_bounds = array<i64: 1, 64>}, {pipeline_mode = #tpu.pipeline_mode<synchronous>, transform_indices = @transform_33, window_bounds = array<i64: 64, 32>}, {pipeline_mode = #tpu.pipeline_mode<synchronous>, transform_indices = @transform_34, window_bounds = array<i64: 1, 32>}, {pipeline_mode = #tpu.pipeline_mode<synchronous>, transform_indices = @transform_35, window_bounds = array<i64: 32, 25>}, {pipeline_mode = #tpu.pipeline_mode<synchronous>, transform_indices = @transform_36, window_bounds = array<i64: 1, 25>}, {pipeline_mode = #tpu.pipeline_mode<synchronous>, transform_indices = @transform_37, window_bounds = array<i64: 16, 16>}, {pipeline_mode = #tpu.pipeline_mode<synchronous>, transform_indices = @transform_38, window_bounds = array<i64: 1, 16>}, {pipeline_mode = #tpu.pipeline_mode<synchronous>, transform_indices = @transform_39, window_bounds = array<i64: 16, 1>}, {pipeline_mode = #tpu.pipeline_mode<synchronous>, transform_indices = @transform_40, window_bounds = array<i64: 1, 1>}, {transform_indices = @transform_41, window_bounds = array<i64: 1, 8, 25>}, {transform_indices = @transform_42, window_bounds = array<i64: 1, 1, 16>}, {transform_indices = @transform_43, window_bounds = array<i64: 1, 1, 16>}, {transform_indices = @transform_44, window_bounds = array<i64: 1, 1, 8>}, {transform_indices = @transform_45, window_bounds = array<i64: 1, 1, 1>}]} {
    %c0 = arith.constant 0 : index
    %c0_0 = arith.constant 0 : index
    %c0_1 = arith.constant 0 : index
    %0 = vector.load %arg1[%c0, %c0_0, %c0_1] : memref<1x8x32xf32, #tpu.memory_space<vmem>>, vector<1x8x32xf32>
    %1 = vector.shape_cast %0 : vector<1x8x32xf32> to vector<8x32xf32>
    %c0_2 = arith.constant 0 : index
    %c0_3 = arith.constant 0 : index
    %c0_4 = arith.constant 0 : index
    %2 = vector.load %arg3[%c0_2, %c0_3, %c0_4] : memref<1x1x8xf32, #tpu.memory_space<vmem>>, vector<1x1x8xf32>
    %3 = vector.shape_cast %2 : vector<1x1x8xf32> to vector<1x8xf32>
    %c0_5 = arith.constant 0 : index
    %c0_6 = arith.constant 0 : index
    %c0_7 = arith.constant 0 : index
    %4 = vector.load %arg6[%c0_5, %c0_6, %c0_7] : memref<3x2x32xf32, #tpu.memory_space<vmem>>, vector<1x2x32xf32>
    %5 = vector.shape_cast %4 : vector<1x2x32xf32> to vector<2x32xf32>
    %6 = vector.extract_strided_slice %5 {offsets = [0, 0], sizes = [1, 32], strides = [1, 1]} : vector<2x32xf32> to vector<1x32xf32>
    %7 = vector.extract_strided_slice %5 {offsets = [1, 0], sizes = [1, 32], strides = [1, 1]} : vector<2x32xf32> to vector<1x32xf32>
    %cst = arith.constant dense<0.000000e+00> : vector<8xf32>
    %8 = vector.multi_reduction <add>, %1, %cst [1] : vector<8x32xf32> to vector<8xf32>
    %9 = vector.shape_cast %8 : vector<8xf32> to vector<8x1xf32>
    %cst_8 = arith.constant 3.200000e+01 : f32
    %10 = vector.broadcast %cst_8 : f32 to vector<8x1xf32>
    %11 = arith.divf %9, %10 : vector<8x1xf32>
    %12 = vector.broadcast %11 : vector<8x1xf32> to vector<8x32xf32>
    %13 = arith.subf %1, %12 : vector<8x32xf32>
    %14 = arith.mulf %13, %13 : vector<8x32xf32>
    %cst_9 = arith.constant dense<0.000000e+00> : vector<8xf32>
    %15 = vector.multi_reduction <add>, %14, %cst_9 [1] : vector<8x32xf32> to vector<8xf32>
    %16 = vector.shape_cast %15 : vector<8xf32> to vector<8x1xf32>
    %cst_10 = arith.constant 3.200000e+01 : f32
    %17 = vector.broadcast %cst_10 : f32 to vector<8x1xf32>
    %18 = arith.divf %16, %17 : vector<8x1xf32>
    %19 = vector.broadcast %11 : vector<8x1xf32> to vector<8x32xf32>
    %20 = arith.subf %1, %19 : vector<8x32xf32>
    %cst_11 = arith.constant 9.99999974E-6 : f32
    %21 = vector.broadcast %cst_11 : f32 to vector<8x1xf32>
    %22 = arith.addf %18, %21 : vector<8x1xf32>
    %23 = math.rsqrt %22 : vector<8x1xf32>
    %24 = vector.broadcast %23 : vector<8x1xf32> to vector<8x32xf32>
    %25 = arith.mulf %20, %24 : vector<8x32xf32>
    %26 = vector.broadcast %6 : vector<1x32xf32> to vector<8x32xf32>
    %27 = arith.mulf %25, %26 : vector<8x32xf32>
    %28 = vector.broadcast %7 : vector<1x32xf32> to vector<8x32xf32>
    %29 = arith.addf %27, %28 : vector<8x32xf32>
    %c0_12 = arith.constant 0 : index
    %c0_13 = arith.constant 0 : index
    %30 = vector.load %arg7[%c0_12, %c0_13] : memref<32x96xbf16, #tpu.memory_space<vmem>>, vector<32x96xbf16>
    %c0_14 = arith.constant 0 : index
    %c0_15 = arith.constant 0 : index
    %31 = vector.load %arg8[%c0_14, %c0_15] : memref<1x96xf32, #tpu.memory_space<vmem>>, vector<1x96xf32>
    %c0_16 = arith.constant 0 : index
    %c0_17 = arith.constant 0 : index
    %32 = vector.load %arg9[%c0_16, %c0_17] : memref<32x32xbf16, #tpu.memory_space<vmem>>, vector<32x32xbf16>
    %c0_18 = arith.constant 0 : index
    %c0_19 = arith.constant 0 : index
    %33 = vector.load %arg10[%c0_18, %c0_19] : memref<1x32xf32, #tpu.memory_space<vmem>>, vector<1x32xf32>
    %34 = arith.truncf %29 : vector<8x32xf32> to vector<8x32xbf16>
    %cst_20 = arith.constant dense<0.000000e+00> : vector<8x96xf32>
    %35 = tpu.matmul %34, %30, %cst_20 {dimension_numbers = #tpu.dot_dimension_numbers<[1], [0], [0], [1], [0, 0, 1, 1], [], []>} : vector<8x32xbf16>, vector<32x96xbf16>, vector<8x96xf32> -> vector<8x96xf32>
    %36 = vector.broadcast %31 : vector<1x96xf32> to vector<8x96xf32>
    %37 = arith.addf %35, %36 : vector<8x96xf32>
    %38 = vector.extract_strided_slice %37 {offsets = [0, 0], sizes = [8, 32], strides = [1, 1]} : vector<8x96xf32> to vector<8x32xf32>
    %39 = vector.extract_strided_slice %37 {offsets = [0, 32], sizes = [8, 32], strides = [1, 1]} : vector<8x96xf32> to vector<8x32xf32>
    %40 = vector.extract_strided_slice %37 {offsets = [0, 64], sizes = [8, 32], strides = [1, 1]} : vector<8x96xf32> to vector<8x32xf32>
    %41 = vector.extract_strided_slice %38 {offsets = [0, 0], sizes = [8, 8], strides = [1, 1]} : vector<8x32xf32> to vector<8x8xf32>
    %42 = vector.extract_strided_slice %39 {offsets = [0, 0], sizes = [8, 8], strides = [1, 1]} : vector<8x32xf32> to vector<8x8xf32>
    %43 = arith.truncf %41 : vector<8x8xf32> to vector<8x8xbf16>
    %44 = arith.truncf %42 : vector<8x8xf32> to vector<8x8xbf16>
    %cst_21 = arith.constant dense<0.000000e+00> : vector<8x8xf32>
    %45 = tpu.matmul %43, %44, %cst_21 {dimension_numbers = #tpu.dot_dimension_numbers<[1], [1], [0], [0], [0, 0, 1, 0], [], []>} : vector<8x8xbf16>, vector<8x8xbf16>, vector<8x8xf32> -> vector<8x8xf32>
    %cst_22 = arith.constant 0.353553385 : f32
    %46 = vector.broadcast %cst_22 : f32 to vector<8x8xf32>
    %47 = arith.mulf %45, %46 : vector<8x8xf32>
    %cst_23 = arith.constant 0.000000e+00 : f32
    %48 = vector.broadcast %cst_23 : f32 to vector<1x8xf32>
    %49 = arith.cmpf ogt, %3, %48 : vector<1x8xf32>
    %cst_24 = arith.constant -1.000000e+09 : f32
    %50 = vector.shape_cast %49 : vector<1x8xi1> to vector<1x8xi1>
    %51 = vector.broadcast %50 : vector<1x8xi1> to vector<8x8xi1>
    %52 = vector.broadcast %cst_24 : f32 to vector<8x8xf32>
    %53 = arith.select %51, %47, %52 : vector<8x8xi1>, vector<8x8xf32>
    %cst_25 = arith.constant dense<0xFF800000> : vector<8xf32>
    %54 = vector.multi_reduction <maximumf>, %53, %cst_25 [1] : vector<8x8xf32> to vector<8xf32>
    %55 = vector.shape_cast %54 : vector<8xf32> to vector<8x1xf32>
    %56 = vector.broadcast %55 : vector<8x1xf32> to vector<8x8xf32>
    %57 = arith.subf %53, %56 : vector<8x8xf32>
    %58 = math.exp %57 : vector<8x8xf32>
    %cst_26 = arith.constant dense<0.000000e+00> : vector<8xf32>
    %59 = vector.multi_reduction <add>, %58, %cst_26 [1] : vector<8x8xf32> to vector<8xf32>
    %60 = vector.shape_cast %59 : vector<8xf32> to vector<8x1xf32>
    %61 = vector.broadcast %60 : vector<8x1xf32> to vector<8x8xf32>
    %62 = arith.divf %58, %61 : vector<8x8xf32>
    %63 = vector.extract_strided_slice %40 {offsets = [0, 0], sizes = [8, 8], strides = [1, 1]} : vector<8x32xf32> to vector<8x8xf32>
    %64 = arith.truncf %62 : vector<8x8xf32> to vector<8x8xbf16>
    %65 = arith.truncf %63 : vector<8x8xf32> to vector<8x8xbf16>
    %cst_27 = arith.constant dense<0.000000e+00> : vector<8x8xf32>
    %66 = tpu.matmul %64, %65, %cst_27 {dimension_numbers = #tpu.dot_dimension_numbers<[1], [0], [0], [1], [0, 0, 1, 1], [], []>} : vector<8x8xbf16>, vector<8x8xbf16>, vector<8x8xf32> -> vector<8x8xf32>
    %67 = vector.extract_strided_slice %38 {offsets = [0, 8], sizes = [8, 8], strides = [1, 1]} : vector<8x32xf32> to vector<8x8xf32>
    %68 = vector.extract_strided_slice %39 {offsets = [0, 8], sizes = [8, 8], strides = [1, 1]} : vector<8x32xf32> to vector<8x8xf32>
    %69 = arith.truncf %67 : vector<8x8xf32> to vector<8x8xbf16>
    %70 = arith.truncf %68 : vector<8x8xf32> to vector<8x8xbf16>
    %cst_28 = arith.constant dense<0.000000e+00> : vector<8x8xf32>
    %71 = tpu.matmul %69, %70, %cst_28 {dimension_numbers = #tpu.dot_dimension_numbers<[1], [1], [0], [0], [0, 0, 1, 0], [], []>} : vector<8x8xbf16>, vector<8x8xbf16>, vector<8x8xf32> -> vector<8x8xf32>
    %cst_29 = arith.constant 0.353553385 : f32
    %72 = vector.broadcast %cst_29 : f32 to vector<8x8xf32>
    %73 = arith.mulf %71, %72 : vector<8x8xf32>
    %cst_30 = arith.constant 0.000000e+00 : f32
    %74 = vector.broadcast %cst_30 : f32 to vector<1x8xf32>
    %75 = arith.cmpf ogt, %3, %74 : vector<1x8xf32>
    %cst_31 = arith.constant -1.000000e+09 : f32
    %76 = vector.shape_cast %75 : vector<1x8xi1> to vector<1x8xi1>
    %77 = vector.broadcast %76 : vector<1x8xi1> to vector<8x8xi1>
    %78 = vector.broadcast %cst_31 : f32 to vector<8x8xf32>
    %79 = arith.select %77, %73, %78 : vector<8x8xi1>, vector<8x8xf32>
    %cst_32 = arith.constant dense<0xFF800000> : vector<8xf32>
    %80 = vector.multi_reduction <maximumf>, %79, %cst_32 [1] : vector<8x8xf32> to vector<8xf32>
    %81 = vector.shape_cast %80 : vector<8xf32> to vector<8x1xf32>
    %82 = vector.broadcast %81 : vector<8x1xf32> to vector<8x8xf32>
    %83 = arith.subf %79, %82 : vector<8x8xf32>
    %84 = math.exp %83 : vector<8x8xf32>
    %cst_33 = arith.constant dense<0.000000e+00> : vector<8xf32>
    %85 = vector.multi_reduction <add>, %84, %cst_33 [1] : vector<8x8xf32> to vector<8xf32>
    %86 = vector.shape_cast %85 : vector<8xf32> to vector<8x1xf32>
    %87 = vector.broadcast %86 : vector<8x1xf32> to vector<8x8xf32>
    %88 = arith.divf %84, %87 : vector<8x8xf32>
    %89 = vector.extract_strided_slice %40 {offsets = [0, 8], sizes = [8, 8], strides = [1, 1]} : vector<8x32xf32> to vector<8x8xf32>
    %90 = arith.truncf %88 : vector<8x8xf32> to vector<8x8xbf16>
    %91 = arith.truncf %89 : vector<8x8xf32> to vector<8x8xbf16>
    %cst_34 = arith.constant dense<0.000000e+00> : vector<8x8xf32>
    %92 = tpu.matmul %90, %91, %cst_34 {dimension_numbers = #tpu.dot_dimension_numbers<[1], [0], [0], [1], [0, 0, 1, 1], [], []>} : vector<8x8xbf16>, vector<8x8xbf16>, vector<8x8xf32> -> vector<8x8xf32>
    %93 = vector.extract_strided_slice %38 {offsets = [0, 16], sizes = [8, 8], strides = [1, 1]} : vector<8x32xf32> to vector<8x8xf32>
    %94 = vector.extract_strided_slice %39 {offsets = [0, 16], sizes = [8, 8], strides = [1, 1]} : vector<8x32xf32> to vector<8x8xf32>
    %95 = arith.truncf %93 : vector<8x8xf32> to vector<8x8xbf16>
    %96 = arith.truncf %94 : vector<8x8xf32> to vector<8x8xbf16>
    %cst_35 = arith.constant dense<0.000000e+00> : vector<8x8xf32>
    %97 = tpu.matmul %95, %96, %cst_35 {dimension_numbers = #tpu.dot_dimension_numbers<[1], [1], [0], [0], [0, 0, 1, 0], [], []>} : vector<8x8xbf16>, vector<8x8xbf16>, vector<8x8xf32> -> vector<8x8xf32>
    %cst_36 = arith.constant 0.353553385 : f32
    %98 = vector.broadcast %cst_36 : f32 to vector<8x8xf32>
    %99 = arith.mulf %97, %98 : vector<8x8xf32>
    %cst_37 = arith.constant 0.000000e+00 : f32
    %100 = vector.broadcast %cst_37 : f32 to vector<1x8xf32>
    %101 = arith.cmpf ogt, %3, %100 : vector<1x8xf32>
    %cst_38 = arith.constant -1.000000e+09 : f32
    %102 = vector.shape_cast %101 : vector<1x8xi1> to vector<1x8xi1>
    %103 = vector.broadcast %102 : vector<1x8xi1> to vector<8x8xi1>
    %104 = vector.broadcast %cst_38 : f32 to vector<8x8xf32>
    %105 = arith.select %103, %99, %104 : vector<8x8xi1>, vector<8x8xf32>
    %cst_39 = arith.constant dense<0xFF800000> : vector<8xf32>
    %106 = vector.multi_reduction <maximumf>, %105, %cst_39 [1] : vector<8x8xf32> to vector<8xf32>
    %107 = vector.shape_cast %106 : vector<8xf32> to vector<8x1xf32>
    %108 = vector.broadcast %107 : vector<8x1xf32> to vector<8x8xf32>
    %109 = arith.subf %105, %108 : vector<8x8xf32>
    %110 = math.exp %109 : vector<8x8xf32>
    %cst_40 = arith.constant dense<0.000000e+00> : vector<8xf32>
    %111 = vector.multi_reduction <add>, %110, %cst_40 [1] : vector<8x8xf32> to vector<8xf32>
    %112 = vector.shape_cast %111 : vector<8xf32> to vector<8x1xf32>
    %113 = vector.broadcast %112 : vector<8x1xf32> to vector<8x8xf32>
    %114 = arith.divf %110, %113 : vector<8x8xf32>
    %115 = vector.extract_strided_slice %40 {offsets = [0, 16], sizes = [8, 8], strides = [1, 1]} : vector<8x32xf32> to vector<8x8xf32>
    %116 = arith.truncf %114 : vector<8x8xf32> to vector<8x8xbf16>
    %117 = arith.truncf %115 : vector<8x8xf32> to vector<8x8xbf16>
    %cst_41 = arith.constant dense<0.000000e+00> : vector<8x8xf32>
    %118 = tpu.matmul %116, %117, %cst_41 {dimension_numbers = #tpu.dot_dimension_numbers<[1], [0], [0], [1], [0, 0, 1, 1], [], []>} : vector<8x8xbf16>, vector<8x8xbf16>, vector<8x8xf32> -> vector<8x8xf32>
    %119 = vector.extract_strided_slice %38 {offsets = [0, 24], sizes = [8, 8], strides = [1, 1]} : vector<8x32xf32> to vector<8x8xf32>
    %120 = vector.extract_strided_slice %39 {offsets = [0, 24], sizes = [8, 8], strides = [1, 1]} : vector<8x32xf32> to vector<8x8xf32>
    %121 = arith.truncf %119 : vector<8x8xf32> to vector<8x8xbf16>
    %122 = arith.truncf %120 : vector<8x8xf32> to vector<8x8xbf16>
    %cst_42 = arith.constant dense<0.000000e+00> : vector<8x8xf32>
    %123 = tpu.matmul %121, %122, %cst_42 {dimension_numbers = #tpu.dot_dimension_numbers<[1], [1], [0], [0], [0, 0, 1, 0], [], []>} : vector<8x8xbf16>, vector<8x8xbf16>, vector<8x8xf32> -> vector<8x8xf32>
    %cst_43 = arith.constant 0.353553385 : f32
    %124 = vector.broadcast %cst_43 : f32 to vector<8x8xf32>
    %125 = arith.mulf %123, %124 : vector<8x8xf32>
    %cst_44 = arith.constant 0.000000e+00 : f32
    %126 = vector.broadcast %cst_44 : f32 to vector<1x8xf32>
    %127 = arith.cmpf ogt, %3, %126 : vector<1x8xf32>
    %cst_45 = arith.constant -1.000000e+09 : f32
    %128 = vector.shape_cast %127 : vector<1x8xi1> to vector<1x8xi1>
    %129 = vector.broadcast %128 : vector<1x8xi1> to vector<8x8xi1>
    %130 = vector.broadcast %cst_45 : f32 to vector<8x8xf32>
    %131 = arith.select %129, %125, %130 : vector<8x8xi1>, vector<8x8xf32>
    %cst_46 = arith.constant dense<0xFF800000> : vector<8xf32>
    %132 = vector.multi_reduction <maximumf>, %131, %cst_46 [1] : vector<8x8xf32> to vector<8xf32>
    %133 = vector.shape_cast %132 : vector<8xf32> to vector<8x1xf32>
    %134 = vector.broadcast %133 : vector<8x1xf32> to vector<8x8xf32>
    %135 = arith.subf %131, %134 : vector<8x8xf32>
    %136 = math.exp %135 : vector<8x8xf32>
    %cst_47 = arith.constant dense<0.000000e+00> : vector<8xf32>
    %137 = vector.multi_reduction <add>, %136, %cst_47 [1] : vector<8x8xf32> to vector<8xf32>
    %138 = vector.shape_cast %137 : vector<8xf32> to vector<8x1xf32>
    %139 = vector.broadcast %138 : vector<8x1xf32> to vector<8x8xf32>
    %140 = arith.divf %136, %139 : vector<8x8xf32>
    %141 = vector.extract_strided_slice %40 {offsets = [0, 24], sizes = [8, 8], strides = [1, 1]} : vector<8x32xf32> to vector<8x8xf32>
    %142 = arith.truncf %140 : vector<8x8xf32> to vector<8x8xbf16>
    %143 = arith.truncf %141 : vector<8x8xf32> to vector<8x8xbf16>
    %cst_48 = arith.constant dense<0.000000e+00> : vector<8x8xf32>
    %144 = tpu.matmul %142, %143, %cst_48 {dimension_numbers = #tpu.dot_dimension_numbers<[1], [0], [0], [1], [0, 0, 1, 1], [], []>} : vector<8x8xbf16>, vector<8x8xbf16>, vector<8x8xf32> -> vector<8x8xf32>
    %145 = tpu.concatenate %66, %92, %118, %144 in 1 : vector<8x8xf32>, vector<8x8xf32>, vector<8x8xf32>, vector<8x8xf32> -> vector<8x32xf32>
    %146 = arith.truncf %145 : vector<8x32xf32> to vector<8x32xbf16>
    %cst_49 = arith.constant dense<0.000000e+00> : vector<8x32xf32>
    %147 = tpu.matmul %146, %32, %cst_49 {dimension_numbers = #tpu.dot_dimension_numbers<[1], [0], [0], [1], [0, 0, 1, 1], [], []>} : vector<8x32xbf16>, vector<32x32xbf16>, vector<8x32xf32> -> vector<8x32xf32>
    %148 = vector.broadcast %33 : vector<1x32xf32> to vector<8x32xf32>
    %149 = arith.addf %147, %148 : vector<8x32xf32>
    %150 = arith.addf %1, %149 : vector<8x32xf32>
    %c1 = arith.constant 1 : index
    %c0_50 = arith.constant 0 : index
    %c0_51 = arith.constant 0 : index
    %151 = vector.load %arg6[%c1, %c0_50, %c0_51] : memref<3x2x32xf32, #tpu.memory_space<vmem>>, vector<1x2x32xf32>
    %152 = vector.shape_cast %151 : vector<1x2x32xf32> to vector<2x32xf32>
    %153 = vector.extract_strided_slice %152 {offsets = [0, 0], sizes = [1, 32], strides = [1, 1]} : vector<2x32xf32> to vector<1x32xf32>
    %154 = vector.extract_strided_slice %152 {offsets = [1, 0], sizes = [1, 32], strides = [1, 1]} : vector<2x32xf32> to vector<1x32xf32>
    %cst_52 = arith.constant dense<0.000000e+00> : vector<8xf32>
    %155 = vector.multi_reduction <add>, %150, %cst_52 [1] : vector<8x32xf32> to vector<8xf32>
    %156 = vector.shape_cast %155 : vector<8xf32> to vector<8x1xf32>
    %cst_53 = arith.constant 3.200000e+01 : f32
    %157 = vector.broadcast %cst_53 : f32 to vector<8x1xf32>
    %158 = arith.divf %156, %157 : vector<8x1xf32>
    %159 = vector.broadcast %158 : vector<8x1xf32> to vector<8x32xf32>
    %160 = arith.subf %150, %159 : vector<8x32xf32>
    %161 = arith.mulf %160, %160 : vector<8x32xf32>
    %cst_54 = arith.constant dense<0.000000e+00> : vector<8xf32>
    %162 = vector.multi_reduction <add>, %161, %cst_54 [1] : vector<8x32xf32> to vector<8xf32>
    %163 = vector.shape_cast %162 : vector<8xf32> to vector<8x1xf32>
    %cst_55 = arith.constant 3.200000e+01 : f32
    %164 = vector.broadcast %cst_55 : f32 to vector<8x1xf32>
    %165 = arith.divf %163, %164 : vector<8x1xf32>
    %166 = vector.broadcast %158 : vector<8x1xf32> to vector<8x32xf32>
    %167 = arith.subf %150, %166 : vector<8x32xf32>
    %cst_56 = arith.constant 9.99999974E-6 : f32
    %168 = vector.broadcast %cst_56 : f32 to vector<8x1xf32>
    %169 = arith.addf %165, %168 : vector<8x1xf32>
    %170 = math.rsqrt %169 : vector<8x1xf32>
    %171 = vector.broadcast %170 : vector<8x1xf32> to vector<8x32xf32>
    %172 = arith.mulf %167, %171 : vector<8x32xf32>
    %173 = vector.broadcast %153 : vector<1x32xf32> to vector<8x32xf32>
    %174 = arith.mulf %172, %173 : vector<8x32xf32>
    %175 = vector.broadcast %154 : vector<1x32xf32> to vector<8x32xf32>
    %176 = arith.addf %174, %175 : vector<8x32xf32>
    %c0_57 = arith.constant 0 : index
    %c0_58 = arith.constant 0 : index
    %177 = vector.load %arg11[%c0_57, %c0_58] : memref<32x64xbf16, #tpu.memory_space<vmem>>, vector<32x64xbf16>
    %c0_59 = arith.constant 0 : index
    %c0_60 = arith.constant 0 : index
    %178 = vector.load %arg12[%c0_59, %c0_60] : memref<1x64xf32, #tpu.memory_space<vmem>>, vector<1x64xf32>
    %c0_61 = arith.constant 0 : index
    %c0_62 = arith.constant 0 : index
    %179 = vector.load %arg13[%c0_61, %c0_62] : memref<64x32xbf16, #tpu.memory_space<vmem>>, vector<64x32xbf16>
    %c0_63 = arith.constant 0 : index
    %c0_64 = arith.constant 0 : index
    %180 = vector.load %arg14[%c0_63, %c0_64] : memref<1x32xf32, #tpu.memory_space<vmem>>, vector<1x32xf32>
    %181 = arith.truncf %176 : vector<8x32xf32> to vector<8x32xbf16>
    %cst_65 = arith.constant dense<0.000000e+00> : vector<8x64xf32>
    %182 = tpu.matmul %181, %177, %cst_65 {dimension_numbers = #tpu.dot_dimension_numbers<[1], [0], [0], [1], [0, 0, 1, 1], [], []>} : vector<8x32xbf16>, vector<32x64xbf16>, vector<8x64xf32> -> vector<8x64xf32>
    %183 = vector.broadcast %178 : vector<1x64xf32> to vector<8x64xf32>
    %184 = arith.addf %182, %183 : vector<8x64xf32>
    %cst_66 = arith.constant 0.000000e+00 : f32
    %185 = vector.broadcast %cst_66 : f32 to vector<8x64xf32>
    %186 = arith.maximumf %184, %185 : vector<8x64xf32>
    %187 = arith.truncf %186 : vector<8x64xf32> to vector<8x64xbf16>
    %cst_67 = arith.constant dense<0.000000e+00> : vector<8x32xf32>
    %188 = tpu.matmul %187, %179, %cst_67 {dimension_numbers = #tpu.dot_dimension_numbers<[1], [0], [0], [1], [0, 0, 1, 1], [], []>} : vector<8x64xbf16>, vector<64x32xbf16>, vector<8x32xf32> -> vector<8x32xf32>
    %189 = vector.broadcast %180 : vector<1x32xf32> to vector<8x32xf32>
    %190 = arith.addf %188, %189 : vector<8x32xf32>
    %191 = arith.addf %150, %190 : vector<8x32xf32>
    %c2 = arith.constant 2 : index
    %c0_68 = arith.constant 0 : index
    %c0_69 = arith.constant 0 : index
    %192 = vector.load %arg6[%c2, %c0_68, %c0_69] : memref<3x2x32xf32, #tpu.memory_space<vmem>>, vector<1x2x32xf32>
    %193 = vector.shape_cast %192 : vector<1x2x32xf32> to vector<2x32xf32>
    %194 = vector.extract_strided_slice %193 {offsets = [0, 0], sizes = [1, 32], strides = [1, 1]} : vector<2x32xf32> to vector<1x32xf32>
    %195 = vector.extract_strided_slice %193 {offsets = [1, 0], sizes = [1, 32], strides = [1, 1]} : vector<2x32xf32> to vector<1x32xf32>
    %cst_70 = arith.constant dense<0.000000e+00> : vector<8xf32>
    %196 = vector.multi_reduction <add>, %191, %cst_70 [1] : vector<8x32xf32> to vector<8xf32>
    %197 = vector.shape_cast %196 : vector<8xf32> to vector<8x1xf32>
    %cst_71 = arith.constant 3.200000e+01 : f32
    %198 = vector.broadcast %cst_71 : f32 to vector<8x1xf32>
    %199 = arith.divf %197, %198 : vector<8x1xf32>
    %200 = vector.broadcast %199 : vector<8x1xf32> to vector<8x32xf32>
    %201 = arith.subf %191, %200 : vector<8x32xf32>
    %202 = arith.mulf %201, %201 : vector<8x32xf32>
    %cst_72 = arith.constant dense<0.000000e+00> : vector<8xf32>
    %203 = vector.multi_reduction <add>, %202, %cst_72 [1] : vector<8x32xf32> to vector<8xf32>
    %204 = vector.shape_cast %203 : vector<8xf32> to vector<8x1xf32>
    %cst_73 = arith.constant 3.200000e+01 : f32
    %205 = vector.broadcast %cst_73 : f32 to vector<8x1xf32>
    %206 = arith.divf %204, %205 : vector<8x1xf32>
    %207 = vector.broadcast %199 : vector<8x1xf32> to vector<8x32xf32>
    %208 = arith.subf %191, %207 : vector<8x32xf32>
    %cst_74 = arith.constant 9.99999974E-6 : f32
    %209 = vector.broadcast %cst_74 : f32 to vector<8x1xf32>
    %210 = arith.addf %206, %209 : vector<8x1xf32>
    %211 = math.rsqrt %210 : vector<8x1xf32>
    %212 = vector.broadcast %211 : vector<8x1xf32> to vector<8x32xf32>
    %213 = arith.mulf %208, %212 : vector<8x32xf32>
    %214 = vector.broadcast %194 : vector<1x32xf32> to vector<8x32xf32>
    %215 = arith.mulf %213, %214 : vector<8x32xf32>
    %216 = vector.broadcast %195 : vector<1x32xf32> to vector<8x32xf32>
    %217 = arith.addf %215, %216 : vector<8x32xf32>
    %cst_75 = arith.constant dense<0.000000e+00> : vector<1xf32>
    %218 = vector.multi_reduction <add>, %3, %cst_75 [1] : vector<1x8xf32> to vector<1xf32>
    %219 = vector.shape_cast %218 : vector<1xf32> to vector<1x1xf32>
    %cst_76 = arith.constant 1.000000e+00 : f32
    %220 = vector.broadcast %cst_76 : f32 to vector<1x1xf32>
    %221 = arith.maximumf %219, %220 : vector<1x1xf32>
    %cst_77 = arith.constant dense<0.000000e+00> : vector<1x32xf32>
    %222 = tpu.matmul %3, %217, %cst_77 {dimension_numbers = #tpu.dot_dimension_numbers<[1], [0], [0], [1], [0, 0, 1, 1], [], []>} : vector<1x8xf32>, vector<8x32xf32>, vector<1x32xf32> -> vector<1x32xf32>
    %223 = vector.broadcast %221 : vector<1x1xf32> to vector<1x32xf32>
    %224 = arith.divf %222, %223 : vector<1x32xf32>
    %c0_78 = arith.constant 0 : index
    %c0_79 = arith.constant 0 : index
    %225 = vector.load %arg15[%c0_78, %c0_79] : memref<32x32xbf16, #tpu.memory_space<vmem>>, vector<32x32xbf16>
    %226 = arith.truncf %224 : vector<1x32xf32> to vector<1x32xbf16>
    %cst_80 = arith.constant dense<0.000000e+00> : vector<1x32xf32>
    %227 = tpu.matmul %226, %225, %cst_80 {dimension_numbers = #tpu.dot_dimension_numbers<[1], [0], [0], [1], [0, 0, 1, 1], [], []>} : vector<1x32xbf16>, vector<32x32xbf16>, vector<1x32xf32> -> vector<1x32xf32>
    %c0_81 = arith.constant 0 : index
    %c0_82 = arith.constant 0 : index
    %228 = vector.load %arg16[%c0_81, %c0_82] : memref<1x32xf32, #tpu.memory_space<vmem>>, vector<1x32xf32>
    %229 = arith.addf %227, %228 : vector<1x32xf32>
    %230 = vector.extract_strided_slice %229 {offsets = [0, 0], sizes = [1, 16], strides = [1, 1]} : vector<1x32xf32> to vector<1x16xf32>
    %231 = vector.extract_strided_slice %229 {offsets = [0, 16], sizes = [1, 16], strides = [1, 1]} : vector<1x32xf32> to vector<1x16xf32>
    %cst_83 = arith.constant 5.000000e-01 : f32
    %232 = vector.broadcast %cst_83 : f32 to vector<1x16xf32>
    %233 = arith.mulf %232, %231 : vector<1x16xf32>
    %234 = math.exp %233 : vector<1x16xf32>
    %c0_84 = arith.constant 0 : index
    %c0_85 = arith.constant 0 : index
    %c0_86 = arith.constant 0 : index
    %235 = vector.load %arg5[%c0_84, %c0_85, %c0_86] : memref<1x1x16xf32, #tpu.memory_space<vmem>>, vector<1x1x16xf32>
    %236 = vector.shape_cast %235 : vector<1x1x16xf32> to vector<1x16xf32>
    %237 = arith.mulf %234, %236 : vector<1x16xf32>
    %238 = arith.addf %230, %237 : vector<1x16xf32>
    %c0_87 = arith.constant 0 : index
    %c0_88 = arith.constant 0 : index
    %239 = vector.load %arg17[%c0_87, %c0_88] : memref<16x32xbf16, #tpu.memory_space<vmem>>, vector<16x32xbf16>
    %240 = arith.truncf %238 : vector<1x16xf32> to vector<1x16xbf16>
    %cst_89 = arith.constant dense<0.000000e+00> : vector<1x32xf32>
    %241 = tpu.matmul %240, %239, %cst_89 {dimension_numbers = #tpu.dot_dimension_numbers<[1], [0], [0], [1], [0, 0, 1, 1], [], []>} : vector<1x16xbf16>, vector<16x32xbf16>, vector<1x32xf32> -> vector<1x32xf32>
    %c0_90 = arith.constant 0 : index
    %c0_91 = arith.constant 0 : index
    %242 = vector.load %arg18[%c0_90, %c0_91] : memref<1x32xf32, #tpu.memory_space<vmem>>, vector<1x32xf32>
    %243 = arith.addf %241, %242 : vector<1x32xf32>
    %244 = vector.shape_cast %243 : vector<1x32xf32> to vector<1x32xf32>
    %245 = vector.broadcast %244 : vector<1x32xf32> to vector<8x32xf32>
    %c0_92 = arith.constant 0 : index
    %c0_93 = arith.constant 0 : index
    %246 = vector.load %arg19[%c0_92, %c0_93] : memref<16x8xbf16, #tpu.memory_space<vmem>>, vector<16x8xbf16>
    %247 = arith.truncf %230 : vector<1x16xf32> to vector<1x16xbf16>
    %cst_94 = arith.constant dense<0.000000e+00> : vector<1x8xf32>
    %248 = tpu.matmul %247, %246, %cst_94 {dimension_numbers = #tpu.dot_dimension_numbers<[1], [0], [0], [1], [0, 0, 1, 1], [], []>} : vector<1x16xbf16>, vector<16x8xbf16>, vector<1x8xf32> -> vector<1x8xf32>
    %c0_95 = arith.constant 0 : index
    %c0_96 = arith.constant 0 : index
    %249 = vector.load %arg20[%c0_95, %c0_96] : memref<1x8xf32, #tpu.memory_space<vmem>>, vector<1x8xf32>
    %250 = arith.addf %248, %249 : vector<1x8xf32>
    %c0_97 = arith.constant 0 : index
    %c0_98 = arith.constant 0 : index
    %c0_99 = arith.constant 0 : index
    %251 = vector.load %arg2[%c0_97, %c0_98, %c0_99] : memref<1x8x32xf32, #tpu.memory_space<vmem>>, vector<1x8x32xf32>
    %252 = vector.shape_cast %251 : vector<1x8x32xf32> to vector<8x32xf32>
    %c0_100 = arith.constant 0 : index
    %c0_101 = arith.constant 0 : index
    %c0_102 = arith.constant 0 : index
    %253 = vector.load %arg4[%c0_100, %c0_101, %c0_102] : memref<1x8x8xf32, #tpu.memory_space<vmem>>, vector<1x8x8xf32>
    %254 = vector.shape_cast %253 : vector<1x8x8xf32> to vector<8x8xf32>
    %c0_103 = arith.constant 0 : index
    %c0_104 = arith.constant 0 : index
    %c0_105 = arith.constant 0 : index
    %255 = vector.load %arg21[%c0_103, %c0_104, %c0_105] : memref<4x2x32xf32, #tpu.memory_space<vmem>>, vector<1x2x32xf32>
    %256 = vector.shape_cast %255 : vector<1x2x32xf32> to vector<2x32xf32>
    %257 = vector.extract_strided_slice %256 {offsets = [0, 0], sizes = [1, 32], strides = [1, 1]} : vector<2x32xf32> to vector<1x32xf32>
    %258 = vector.extract_strided_slice %256 {offsets = [1, 0], sizes = [1, 32], strides = [1, 1]} : vector<2x32xf32> to vector<1x32xf32>
    %cst_106 = arith.constant dense<0.000000e+00> : vector<8xf32>
    %259 = vector.multi_reduction <add>, %252, %cst_106 [1] : vector<8x32xf32> to vector<8xf32>
    %260 = vector.shape_cast %259 : vector<8xf32> to vector<8x1xf32>
    %cst_107 = arith.constant 3.200000e+01 : f32
    %261 = vector.broadcast %cst_107 : f32 to vector<8x1xf32>
    %262 = arith.divf %260, %261 : vector<8x1xf32>
    %263 = vector.broadcast %262 : vector<8x1xf32> to vector<8x32xf32>
    %264 = arith.subf %252, %263 : vector<8x32xf32>
    %265 = arith.mulf %264, %264 : vector<8x32xf32>
    %cst_108 = arith.constant dense<0.000000e+00> : vector<8xf32>
    %266 = vector.multi_reduction <add>, %265, %cst_108 [1] : vector<8x32xf32> to vector<8xf32>
    %267 = vector.shape_cast %266 : vector<8xf32> to vector<8x1xf32>
    %cst_109 = arith.constant 3.200000e+01 : f32
    %268 = vector.broadcast %cst_109 : f32 to vector<8x1xf32>
    %269 = arith.divf %267, %268 : vector<8x1xf32>
    %270 = vector.broadcast %262 : vector<8x1xf32> to vector<8x32xf32>
    %271 = arith.subf %252, %270 : vector<8x32xf32>
    %cst_110 = arith.constant 9.99999974E-6 : f32
    %272 = vector.broadcast %cst_110 : f32 to vector<8x1xf32>
    %273 = arith.addf %269, %272 : vector<8x1xf32>
    %274 = math.rsqrt %273 : vector<8x1xf32>
    %275 = vector.broadcast %274 : vector<8x1xf32> to vector<8x32xf32>
    %276 = arith.mulf %271, %275 : vector<8x32xf32>
    %277 = vector.broadcast %257 : vector<1x32xf32> to vector<8x32xf32>
    %278 = arith.mulf %276, %277 : vector<8x32xf32>
    %279 = vector.broadcast %258 : vector<1x32xf32> to vector<8x32xf32>
    %280 = arith.addf %278, %279 : vector<8x32xf32>
    %c0_111 = arith.constant 0 : index
    %c0_112 = arith.constant 0 : index
    %281 = vector.load %arg22[%c0_111, %c0_112] : memref<32x96xbf16, #tpu.memory_space<vmem>>, vector<32x96xbf16>
    %c0_113 = arith.constant 0 : index
    %c0_114 = arith.constant 0 : index
    %282 = vector.load %arg23[%c0_113, %c0_114] : memref<1x96xf32, #tpu.memory_space<vmem>>, vector<1x96xf32>
    %c0_115 = arith.constant 0 : index
    %c0_116 = arith.constant 0 : index
    %283 = vector.load %arg24[%c0_115, %c0_116] : memref<32x32xbf16, #tpu.memory_space<vmem>>, vector<32x32xbf16>
    %c0_117 = arith.constant 0 : index
    %c0_118 = arith.constant 0 : index
    %284 = vector.load %arg25[%c0_117, %c0_118] : memref<1x32xf32, #tpu.memory_space<vmem>>, vector<1x32xf32>
    %285 = arith.truncf %280 : vector<8x32xf32> to vector<8x32xbf16>
    %cst_119 = arith.constant dense<0.000000e+00> : vector<8x96xf32>
    %286 = tpu.matmul %285, %281, %cst_119 {dimension_numbers = #tpu.dot_dimension_numbers<[1], [0], [0], [1], [0, 0, 1, 1], [], []>} : vector<8x32xbf16>, vector<32x96xbf16>, vector<8x96xf32> -> vector<8x96xf32>
    %287 = vector.broadcast %282 : vector<1x96xf32> to vector<8x96xf32>
    %288 = arith.addf %286, %287 : vector<8x96xf32>
    %289 = vector.extract_strided_slice %288 {offsets = [0, 0], sizes = [8, 32], strides = [1, 1]} : vector<8x96xf32> to vector<8x32xf32>
    %290 = vector.extract_strided_slice %288 {offsets = [0, 32], sizes = [8, 32], strides = [1, 1]} : vector<8x96xf32> to vector<8x32xf32>
    %291 = vector.extract_strided_slice %288 {offsets = [0, 64], sizes = [8, 32], strides = [1, 1]} : vector<8x96xf32> to vector<8x32xf32>
    %292 = vector.extract_strided_slice %289 {offsets = [0, 0], sizes = [8, 8], strides = [1, 1]} : vector<8x32xf32> to vector<8x8xf32>
    %293 = vector.extract_strided_slice %290 {offsets = [0, 0], sizes = [8, 8], strides = [1, 1]} : vector<8x32xf32> to vector<8x8xf32>
    %294 = arith.truncf %292 : vector<8x8xf32> to vector<8x8xbf16>
    %295 = arith.truncf %293 : vector<8x8xf32> to vector<8x8xbf16>
    %cst_120 = arith.constant dense<0.000000e+00> : vector<8x8xf32>
    %296 = tpu.matmul %294, %295, %cst_120 {dimension_numbers = #tpu.dot_dimension_numbers<[1], [1], [0], [0], [0, 0, 1, 0], [], []>} : vector<8x8xbf16>, vector<8x8xbf16>, vector<8x8xf32> -> vector<8x8xf32>
    %cst_121 = arith.constant 0.353553385 : f32
    %297 = vector.broadcast %cst_121 : f32 to vector<8x8xf32>
    %298 = arith.mulf %296, %297 : vector<8x8xf32>
    %cst_122 = arith.constant 0.000000e+00 : f32
    %299 = vector.broadcast %cst_122 : f32 to vector<8x8xf32>
    %300 = arith.cmpf ogt, %254, %299 : vector<8x8xf32>
    %cst_123 = arith.constant -1.000000e+09 : f32
    %301 = vector.broadcast %cst_123 : f32 to vector<8x8xf32>
    %302 = arith.select %300, %298, %301 : vector<8x8xi1>, vector<8x8xf32>
    %cst_124 = arith.constant dense<0xFF800000> : vector<8xf32>
    %303 = vector.multi_reduction <maximumf>, %302, %cst_124 [1] : vector<8x8xf32> to vector<8xf32>
    %304 = vector.shape_cast %303 : vector<8xf32> to vector<8x1xf32>
    %305 = vector.broadcast %304 : vector<8x1xf32> to vector<8x8xf32>
    %306 = arith.subf %302, %305 : vector<8x8xf32>
    %307 = math.exp %306 : vector<8x8xf32>
    %cst_125 = arith.constant dense<0.000000e+00> : vector<8xf32>
    %308 = vector.multi_reduction <add>, %307, %cst_125 [1] : vector<8x8xf32> to vector<8xf32>
    %309 = vector.shape_cast %308 : vector<8xf32> to vector<8x1xf32>
    %310 = vector.broadcast %309 : vector<8x1xf32> to vector<8x8xf32>
    %311 = arith.divf %307, %310 : vector<8x8xf32>
    %312 = vector.extract_strided_slice %291 {offsets = [0, 0], sizes = [8, 8], strides = [1, 1]} : vector<8x32xf32> to vector<8x8xf32>
    %313 = arith.truncf %311 : vector<8x8xf32> to vector<8x8xbf16>
    %314 = arith.truncf %312 : vector<8x8xf32> to vector<8x8xbf16>
    %cst_126 = arith.constant dense<0.000000e+00> : vector<8x8xf32>
    %315 = tpu.matmul %313, %314, %cst_126 {dimension_numbers = #tpu.dot_dimension_numbers<[1], [0], [0], [1], [0, 0, 1, 1], [], []>} : vector<8x8xbf16>, vector<8x8xbf16>, vector<8x8xf32> -> vector<8x8xf32>
    %316 = vector.extract_strided_slice %289 {offsets = [0, 8], sizes = [8, 8], strides = [1, 1]} : vector<8x32xf32> to vector<8x8xf32>
    %317 = vector.extract_strided_slice %290 {offsets = [0, 8], sizes = [8, 8], strides = [1, 1]} : vector<8x32xf32> to vector<8x8xf32>
    %318 = arith.truncf %316 : vector<8x8xf32> to vector<8x8xbf16>
    %319 = arith.truncf %317 : vector<8x8xf32> to vector<8x8xbf16>
    %cst_127 = arith.constant dense<0.000000e+00> : vector<8x8xf32>
    %320 = tpu.matmul %318, %319, %cst_127 {dimension_numbers = #tpu.dot_dimension_numbers<[1], [1], [0], [0], [0, 0, 1, 0], [], []>} : vector<8x8xbf16>, vector<8x8xbf16>, vector<8x8xf32> -> vector<8x8xf32>
    %cst_128 = arith.constant 0.353553385 : f32
    %321 = vector.broadcast %cst_128 : f32 to vector<8x8xf32>
    %322 = arith.mulf %320, %321 : vector<8x8xf32>
    %cst_129 = arith.constant 0.000000e+00 : f32
    %323 = vector.broadcast %cst_129 : f32 to vector<8x8xf32>
    %324 = arith.cmpf ogt, %254, %323 : vector<8x8xf32>
    %cst_130 = arith.constant -1.000000e+09 : f32
    %325 = vector.broadcast %cst_130 : f32 to vector<8x8xf32>
    %326 = arith.select %324, %322, %325 : vector<8x8xi1>, vector<8x8xf32>
    %cst_131 = arith.constant dense<0xFF800000> : vector<8xf32>
    %327 = vector.multi_reduction <maximumf>, %326, %cst_131 [1] : vector<8x8xf32> to vector<8xf32>
    %328 = vector.shape_cast %327 : vector<8xf32> to vector<8x1xf32>
    %329 = vector.broadcast %328 : vector<8x1xf32> to vector<8x8xf32>
    %330 = arith.subf %326, %329 : vector<8x8xf32>
    %331 = math.exp %330 : vector<8x8xf32>
    %cst_132 = arith.constant dense<0.000000e+00> : vector<8xf32>
    %332 = vector.multi_reduction <add>, %331, %cst_132 [1] : vector<8x8xf32> to vector<8xf32>
    %333 = vector.shape_cast %332 : vector<8xf32> to vector<8x1xf32>
    %334 = vector.broadcast %333 : vector<8x1xf32> to vector<8x8xf32>
    %335 = arith.divf %331, %334 : vector<8x8xf32>
    %336 = vector.extract_strided_slice %291 {offsets = [0, 8], sizes = [8, 8], strides = [1, 1]} : vector<8x32xf32> to vector<8x8xf32>
    %337 = arith.truncf %335 : vector<8x8xf32> to vector<8x8xbf16>
    %338 = arith.truncf %336 : vector<8x8xf32> to vector<8x8xbf16>
    %cst_133 = arith.constant dense<0.000000e+00> : vector<8x8xf32>
    %339 = tpu.matmul %337, %338, %cst_133 {dimension_numbers = #tpu.dot_dimension_numbers<[1], [0], [0], [1], [0, 0, 1, 1], [], []>} : vector<8x8xbf16>, vector<8x8xbf16>, vector<8x8xf32> -> vector<8x8xf32>
    %340 = vector.extract_strided_slice %289 {offsets = [0, 16], sizes = [8, 8], strides = [1, 1]} : vector<8x32xf32> to vector<8x8xf32>
    %341 = vector.extract_strided_slice %290 {offsets = [0, 16], sizes = [8, 8], strides = [1, 1]} : vector<8x32xf32> to vector<8x8xf32>
    %342 = arith.truncf %340 : vector<8x8xf32> to vector<8x8xbf16>
    %343 = arith.truncf %341 : vector<8x8xf32> to vector<8x8xbf16>
    %cst_134 = arith.constant dense<0.000000e+00> : vector<8x8xf32>
    %344 = tpu.matmul %342, %343, %cst_134 {dimension_numbers = #tpu.dot_dimension_numbers<[1], [1], [0], [0], [0, 0, 1, 0], [], []>} : vector<8x8xbf16>, vector<8x8xbf16>, vector<8x8xf32> -> vector<8x8xf32>
    %cst_135 = arith.constant 0.353553385 : f32
    %345 = vector.broadcast %cst_135 : f32 to vector<8x8xf32>
    %346 = arith.mulf %344, %345 : vector<8x8xf32>
    %cst_136 = arith.constant 0.000000e+00 : f32
    %347 = vector.broadcast %cst_136 : f32 to vector<8x8xf32>
    %348 = arith.cmpf ogt, %254, %347 : vector<8x8xf32>
    %cst_137 = arith.constant -1.000000e+09 : f32
    %349 = vector.broadcast %cst_137 : f32 to vector<8x8xf32>
    %350 = arith.select %348, %346, %349 : vector<8x8xi1>, vector<8x8xf32>
    %cst_138 = arith.constant dense<0xFF800000> : vector<8xf32>
    %351 = vector.multi_reduction <maximumf>, %350, %cst_138 [1] : vector<8x8xf32> to vector<8xf32>
    %352 = vector.shape_cast %351 : vector<8xf32> to vector<8x1xf32>
    %353 = vector.broadcast %352 : vector<8x1xf32> to vector<8x8xf32>
    %354 = arith.subf %350, %353 : vector<8x8xf32>
    %355 = math.exp %354 : vector<8x8xf32>
    %cst_139 = arith.constant dense<0.000000e+00> : vector<8xf32>
    %356 = vector.multi_reduction <add>, %355, %cst_139 [1] : vector<8x8xf32> to vector<8xf32>
    %357 = vector.shape_cast %356 : vector<8xf32> to vector<8x1xf32>
    %358 = vector.broadcast %357 : vector<8x1xf32> to vector<8x8xf32>
    %359 = arith.divf %355, %358 : vector<8x8xf32>
    %360 = vector.extract_strided_slice %291 {offsets = [0, 16], sizes = [8, 8], strides = [1, 1]} : vector<8x32xf32> to vector<8x8xf32>
    %361 = arith.truncf %359 : vector<8x8xf32> to vector<8x8xbf16>
    %362 = arith.truncf %360 : vector<8x8xf32> to vector<8x8xbf16>
    %cst_140 = arith.constant dense<0.000000e+00> : vector<8x8xf32>
    %363 = tpu.matmul %361, %362, %cst_140 {dimension_numbers = #tpu.dot_dimension_numbers<[1], [0], [0], [1], [0, 0, 1, 1], [], []>} : vector<8x8xbf16>, vector<8x8xbf16>, vector<8x8xf32> -> vector<8x8xf32>
    %364 = vector.extract_strided_slice %289 {offsets = [0, 24], sizes = [8, 8], strides = [1, 1]} : vector<8x32xf32> to vector<8x8xf32>
    %365 = vector.extract_strided_slice %290 {offsets = [0, 24], sizes = [8, 8], strides = [1, 1]} : vector<8x32xf32> to vector<8x8xf32>
    %366 = arith.truncf %364 : vector<8x8xf32> to vector<8x8xbf16>
    %367 = arith.truncf %365 : vector<8x8xf32> to vector<8x8xbf16>
    %cst_141 = arith.constant dense<0.000000e+00> : vector<8x8xf32>
    %368 = tpu.matmul %366, %367, %cst_141 {dimension_numbers = #tpu.dot_dimension_numbers<[1], [1], [0], [0], [0, 0, 1, 0], [], []>} : vector<8x8xbf16>, vector<8x8xbf16>, vector<8x8xf32> -> vector<8x8xf32>
    %cst_142 = arith.constant 0.353553385 : f32
    %369 = vector.broadcast %cst_142 : f32 to vector<8x8xf32>
    %370 = arith.mulf %368, %369 : vector<8x8xf32>
    %cst_143 = arith.constant 0.000000e+00 : f32
    %371 = vector.broadcast %cst_143 : f32 to vector<8x8xf32>
    %372 = arith.cmpf ogt, %254, %371 : vector<8x8xf32>
    %cst_144 = arith.constant -1.000000e+09 : f32
    %373 = vector.broadcast %cst_144 : f32 to vector<8x8xf32>
    %374 = arith.select %372, %370, %373 : vector<8x8xi1>, vector<8x8xf32>
    %cst_145 = arith.constant dense<0xFF800000> : vector<8xf32>
    %375 = vector.multi_reduction <maximumf>, %374, %cst_145 [1] : vector<8x8xf32> to vector<8xf32>
    %376 = vector.shape_cast %375 : vector<8xf32> to vector<8x1xf32>
    %377 = vector.broadcast %376 : vector<8x1xf32> to vector<8x8xf32>
    %378 = arith.subf %374, %377 : vector<8x8xf32>
    %379 = math.exp %378 : vector<8x8xf32>
    %cst_146 = arith.constant dense<0.000000e+00> : vector<8xf32>
    %380 = vector.multi_reduction <add>, %379, %cst_146 [1] : vector<8x8xf32> to vector<8xf32>
    %381 = vector.shape_cast %380 : vector<8xf32> to vector<8x1xf32>
    %382 = vector.broadcast %381 : vector<8x1xf32> to vector<8x8xf32>
    %383 = arith.divf %379, %382 : vector<8x8xf32>
    %384 = vector.extract_strided_slice %291 {offsets = [0, 24], sizes = [8, 8], strides = [1, 1]} : vector<8x32xf32> to vector<8x8xf32>
    %385 = arith.truncf %383 : vector<8x8xf32> to vector<8x8xbf16>
    %386 = arith.truncf %384 : vector<8x8xf32> to vector<8x8xbf16>
    %cst_147 = arith.constant dense<0.000000e+00> : vector<8x8xf32>
    %387 = tpu.matmul %385, %386, %cst_147 {dimension_numbers = #tpu.dot_dimension_numbers<[1], [0], [0], [1], [0, 0, 1, 1], [], []>} : vector<8x8xbf16>, vector<8x8xbf16>, vector<8x8xf32> -> vector<8x8xf32>
    %388 = tpu.concatenate %315, %339, %363, %387 in 1 : vector<8x8xf32>, vector<8x8xf32>, vector<8x8xf32>, vector<8x8xf32> -> vector<8x32xf32>
    %389 = arith.truncf %388 : vector<8x32xf32> to vector<8x32xbf16>
    %cst_148 = arith.constant dense<0.000000e+00> : vector<8x32xf32>
    %390 = tpu.matmul %389, %283, %cst_148 {dimension_numbers = #tpu.dot_dimension_numbers<[1], [0], [0], [1], [0, 0, 1, 1], [], []>} : vector<8x32xbf16>, vector<32x32xbf16>, vector<8x32xf32> -> vector<8x32xf32>
    %391 = vector.broadcast %284 : vector<1x32xf32> to vector<8x32xf32>
    %392 = arith.addf %390, %391 : vector<8x32xf32>
    %393 = arith.addf %252, %392 : vector<8x32xf32>
    %c1_149 = arith.constant 1 : index
    %c0_150 = arith.constant 0 : index
    %c0_151 = arith.constant 0 : index
    %394 = vector.load %arg21[%c1_149, %c0_150, %c0_151] : memref<4x2x32xf32, #tpu.memory_space<vmem>>, vector<1x2x32xf32>
    %395 = vector.shape_cast %394 : vector<1x2x32xf32> to vector<2x32xf32>
    %396 = vector.extract_strided_slice %395 {offsets = [0, 0], sizes = [1, 32], strides = [1, 1]} : vector<2x32xf32> to vector<1x32xf32>
    %397 = vector.extract_strided_slice %395 {offsets = [1, 0], sizes = [1, 32], strides = [1, 1]} : vector<2x32xf32> to vector<1x32xf32>
    %cst_152 = arith.constant dense<0.000000e+00> : vector<8xf32>
    %398 = vector.multi_reduction <add>, %393, %cst_152 [1] : vector<8x32xf32> to vector<8xf32>
    %399 = vector.shape_cast %398 : vector<8xf32> to vector<8x1xf32>
    %cst_153 = arith.constant 3.200000e+01 : f32
    %400 = vector.broadcast %cst_153 : f32 to vector<8x1xf32>
    %401 = arith.divf %399, %400 : vector<8x1xf32>
    %402 = vector.broadcast %401 : vector<8x1xf32> to vector<8x32xf32>
    %403 = arith.subf %393, %402 : vector<8x32xf32>
    %404 = arith.mulf %403, %403 : vector<8x32xf32>
    %cst_154 = arith.constant dense<0.000000e+00> : vector<8xf32>
    %405 = vector.multi_reduction <add>, %404, %cst_154 [1] : vector<8x32xf32> to vector<8xf32>
    %406 = vector.shape_cast %405 : vector<8xf32> to vector<8x1xf32>
    %cst_155 = arith.constant 3.200000e+01 : f32
    %407 = vector.broadcast %cst_155 : f32 to vector<8x1xf32>
    %408 = arith.divf %406, %407 : vector<8x1xf32>
    %409 = vector.broadcast %401 : vector<8x1xf32> to vector<8x32xf32>
    %410 = arith.subf %393, %409 : vector<8x32xf32>
    %cst_156 = arith.constant 9.99999974E-6 : f32
    %411 = vector.broadcast %cst_156 : f32 to vector<8x1xf32>
    %412 = arith.addf %408, %411 : vector<8x1xf32>
    %413 = math.rsqrt %412 : vector<8x1xf32>
    %414 = vector.broadcast %413 : vector<8x1xf32> to vector<8x32xf32>
    %415 = arith.mulf %410, %414 : vector<8x32xf32>
    %416 = vector.broadcast %396 : vector<1x32xf32> to vector<8x32xf32>
    %417 = arith.mulf %415, %416 : vector<8x32xf32>
    %418 = vector.broadcast %397 : vector<1x32xf32> to vector<8x32xf32>
    %419 = arith.addf %417, %418 : vector<8x32xf32>
    %c0_157 = arith.constant 0 : index
    %c0_158 = arith.constant 0 : index
    %420 = vector.load %arg26[%c0_157, %c0_158] : memref<32x32xbf16, #tpu.memory_space<vmem>>, vector<32x32xbf16>
    %c0_159 = arith.constant 0 : index
    %c0_160 = arith.constant 0 : index
    %421 = vector.load %arg27[%c0_159, %c0_160] : memref<1x32xf32, #tpu.memory_space<vmem>>, vector<1x32xf32>
    %c0_161 = arith.constant 0 : index
    %c0_162 = arith.constant 0 : index
    %422 = vector.load %arg28[%c0_161, %c0_162] : memref<32x64xbf16, #tpu.memory_space<vmem>>, vector<32x64xbf16>
    %c0_163 = arith.constant 0 : index
    %c0_164 = arith.constant 0 : index
    %423 = vector.load %arg29[%c0_163, %c0_164] : memref<1x64xf32, #tpu.memory_space<vmem>>, vector<1x64xf32>
    %c0_165 = arith.constant 0 : index
    %c0_166 = arith.constant 0 : index
    %424 = vector.load %arg30[%c0_165, %c0_166] : memref<32x32xbf16, #tpu.memory_space<vmem>>, vector<32x32xbf16>
    %c0_167 = arith.constant 0 : index
    %c0_168 = arith.constant 0 : index
    %425 = vector.load %arg31[%c0_167, %c0_168] : memref<1x32xf32, #tpu.memory_space<vmem>>, vector<1x32xf32>
    %426 = arith.truncf %419 : vector<8x32xf32> to vector<8x32xbf16>
    %cst_169 = arith.constant dense<0.000000e+00> : vector<8x32xf32>
    %427 = tpu.matmul %426, %420, %cst_169 {dimension_numbers = #tpu.dot_dimension_numbers<[1], [0], [0], [1], [0, 0, 1, 1], [], []>} : vector<8x32xbf16>, vector<32x32xbf16>, vector<8x32xf32> -> vector<8x32xf32>
    %428 = vector.broadcast %421 : vector<1x32xf32> to vector<8x32xf32>
    %429 = arith.addf %427, %428 : vector<8x32xf32>
    %430 = arith.truncf %245 : vector<8x32xf32> to vector<8x32xbf16>
    %cst_170 = arith.constant dense<0.000000e+00> : vector<8x64xf32>
    %431 = tpu.matmul %430, %422, %cst_170 {dimension_numbers = #tpu.dot_dimension_numbers<[1], [0], [0], [1], [0, 0, 1, 1], [], []>} : vector<8x32xbf16>, vector<32x64xbf16>, vector<8x64xf32> -> vector<8x64xf32>
    %432 = vector.broadcast %423 : vector<1x64xf32> to vector<8x64xf32>
    %433 = arith.addf %431, %432 : vector<8x64xf32>
    %434 = vector.extract_strided_slice %433 {offsets = [0, 0], sizes = [8, 32], strides = [1, 1]} : vector<8x64xf32> to vector<8x32xf32>
    %435 = vector.extract_strided_slice %433 {offsets = [0, 32], sizes = [8, 32], strides = [1, 1]} : vector<8x64xf32> to vector<8x32xf32>
    %436 = vector.extract_strided_slice %429 {offsets = [0, 0], sizes = [8, 8], strides = [1, 1]} : vector<8x32xf32> to vector<8x8xf32>
    %437 = vector.extract_strided_slice %434 {offsets = [0, 0], sizes = [8, 8], strides = [1, 1]} : vector<8x32xf32> to vector<8x8xf32>
    %438 = arith.truncf %436 : vector<8x8xf32> to vector<8x8xbf16>
    %439 = arith.truncf %437 : vector<8x8xf32> to vector<8x8xbf16>
    %cst_171 = arith.constant dense<0.000000e+00> : vector<8x8xf32>
    %440 = tpu.matmul %438, %439, %cst_171 {dimension_numbers = #tpu.dot_dimension_numbers<[1], [1], [0], [0], [0, 0, 1, 0], [], []>} : vector<8x8xbf16>, vector<8x8xbf16>, vector<8x8xf32> -> vector<8x8xf32>
    %cst_172 = arith.constant 0.353553385 : f32
    %441 = vector.broadcast %cst_172 : f32 to vector<8x8xf32>
    %442 = arith.mulf %440, %441 : vector<8x8xf32>
    %cst_173 = arith.constant 0.000000e+00 : f32
    %443 = vector.broadcast %cst_173 : f32 to vector<1x8xf32>
    %444 = arith.cmpf ogt, %3, %443 : vector<1x8xf32>
    %cst_174 = arith.constant -1.000000e+09 : f32
    %445 = vector.shape_cast %444 : vector<1x8xi1> to vector<1x8xi1>
    %446 = vector.broadcast %445 : vector<1x8xi1> to vector<8x8xi1>
    %447 = vector.broadcast %cst_174 : f32 to vector<8x8xf32>
    %448 = arith.select %446, %442, %447 : vector<8x8xi1>, vector<8x8xf32>
    %cst_175 = arith.constant dense<0xFF800000> : vector<8xf32>
    %449 = vector.multi_reduction <maximumf>, %448, %cst_175 [1] : vector<8x8xf32> to vector<8xf32>
    %450 = vector.shape_cast %449 : vector<8xf32> to vector<8x1xf32>
    %451 = vector.broadcast %450 : vector<8x1xf32> to vector<8x8xf32>
    %452 = arith.subf %448, %451 : vector<8x8xf32>
    %453 = math.exp %452 : vector<8x8xf32>
    %cst_176 = arith.constant dense<0.000000e+00> : vector<8xf32>
    %454 = vector.multi_reduction <add>, %453, %cst_176 [1] : vector<8x8xf32> to vector<8xf32>
    %455 = vector.shape_cast %454 : vector<8xf32> to vector<8x1xf32>
    %456 = vector.broadcast %455 : vector<8x1xf32> to vector<8x8xf32>
    %457 = arith.divf %453, %456 : vector<8x8xf32>
    %458 = vector.extract_strided_slice %435 {offsets = [0, 0], sizes = [8, 8], strides = [1, 1]} : vector<8x32xf32> to vector<8x8xf32>
    %459 = arith.truncf %457 : vector<8x8xf32> to vector<8x8xbf16>
    %460 = arith.truncf %458 : vector<8x8xf32> to vector<8x8xbf16>
    %cst_177 = arith.constant dense<0.000000e+00> : vector<8x8xf32>
    %461 = tpu.matmul %459, %460, %cst_177 {dimension_numbers = #tpu.dot_dimension_numbers<[1], [0], [0], [1], [0, 0, 1, 1], [], []>} : vector<8x8xbf16>, vector<8x8xbf16>, vector<8x8xf32> -> vector<8x8xf32>
    %462 = vector.extract_strided_slice %429 {offsets = [0, 8], sizes = [8, 8], strides = [1, 1]} : vector<8x32xf32> to vector<8x8xf32>
    %463 = vector.extract_strided_slice %434 {offsets = [0, 8], sizes = [8, 8], strides = [1, 1]} : vector<8x32xf32> to vector<8x8xf32>
    %464 = arith.truncf %462 : vector<8x8xf32> to vector<8x8xbf16>
    %465 = arith.truncf %463 : vector<8x8xf32> to vector<8x8xbf16>
    %cst_178 = arith.constant dense<0.000000e+00> : vector<8x8xf32>
    %466 = tpu.matmul %464, %465, %cst_178 {dimension_numbers = #tpu.dot_dimension_numbers<[1], [1], [0], [0], [0, 0, 1, 0], [], []>} : vector<8x8xbf16>, vector<8x8xbf16>, vector<8x8xf32> -> vector<8x8xf32>
    %cst_179 = arith.constant 0.353553385 : f32
    %467 = vector.broadcast %cst_179 : f32 to vector<8x8xf32>
    %468 = arith.mulf %466, %467 : vector<8x8xf32>
    %cst_180 = arith.constant 0.000000e+00 : f32
    %469 = vector.broadcast %cst_180 : f32 to vector<1x8xf32>
    %470 = arith.cmpf ogt, %3, %469 : vector<1x8xf32>
    %cst_181 = arith.constant -1.000000e+09 : f32
    %471 = vector.shape_cast %470 : vector<1x8xi1> to vector<1x8xi1>
    %472 = vector.broadcast %471 : vector<1x8xi1> to vector<8x8xi1>
    %473 = vector.broadcast %cst_181 : f32 to vector<8x8xf32>
    %474 = arith.select %472, %468, %473 : vector<8x8xi1>, vector<8x8xf32>
    %cst_182 = arith.constant dense<0xFF800000> : vector<8xf32>
    %475 = vector.multi_reduction <maximumf>, %474, %cst_182 [1] : vector<8x8xf32> to vector<8xf32>
    %476 = vector.shape_cast %475 : vector<8xf32> to vector<8x1xf32>
    %477 = vector.broadcast %476 : vector<8x1xf32> to vector<8x8xf32>
    %478 = arith.subf %474, %477 : vector<8x8xf32>
    %479 = math.exp %478 : vector<8x8xf32>
    %cst_183 = arith.constant dense<0.000000e+00> : vector<8xf32>
    %480 = vector.multi_reduction <add>, %479, %cst_183 [1] : vector<8x8xf32> to vector<8xf32>
    %481 = vector.shape_cast %480 : vector<8xf32> to vector<8x1xf32>
    %482 = vector.broadcast %481 : vector<8x1xf32> to vector<8x8xf32>
    %483 = arith.divf %479, %482 : vector<8x8xf32>
    %484 = vector.extract_strided_slice %435 {offsets = [0, 8], sizes = [8, 8], strides = [1, 1]} : vector<8x32xf32> to vector<8x8xf32>
    %485 = arith.truncf %483 : vector<8x8xf32> to vector<8x8xbf16>
    %486 = arith.truncf %484 : vector<8x8xf32> to vector<8x8xbf16>
    %cst_184 = arith.constant dense<0.000000e+00> : vector<8x8xf32>
    %487 = tpu.matmul %485, %486, %cst_184 {dimension_numbers = #tpu.dot_dimension_numbers<[1], [0], [0], [1], [0, 0, 1, 1], [], []>} : vector<8x8xbf16>, vector<8x8xbf16>, vector<8x8xf32> -> vector<8x8xf32>
    %488 = vector.extract_strided_slice %429 {offsets = [0, 16], sizes = [8, 8], strides = [1, 1]} : vector<8x32xf32> to vector<8x8xf32>
    %489 = vector.extract_strided_slice %434 {offsets = [0, 16], sizes = [8, 8], strides = [1, 1]} : vector<8x32xf32> to vector<8x8xf32>
    %490 = arith.truncf %488 : vector<8x8xf32> to vector<8x8xbf16>
    %491 = arith.truncf %489 : vector<8x8xf32> to vector<8x8xbf16>
    %cst_185 = arith.constant dense<0.000000e+00> : vector<8x8xf32>
    %492 = tpu.matmul %490, %491, %cst_185 {dimension_numbers = #tpu.dot_dimension_numbers<[1], [1], [0], [0], [0, 0, 1, 0], [], []>} : vector<8x8xbf16>, vector<8x8xbf16>, vector<8x8xf32> -> vector<8x8xf32>
    %cst_186 = arith.constant 0.353553385 : f32
    %493 = vector.broadcast %cst_186 : f32 to vector<8x8xf32>
    %494 = arith.mulf %492, %493 : vector<8x8xf32>
    %cst_187 = arith.constant 0.000000e+00 : f32
    %495 = vector.broadcast %cst_187 : f32 to vector<1x8xf32>
    %496 = arith.cmpf ogt, %3, %495 : vector<1x8xf32>
    %cst_188 = arith.constant -1.000000e+09 : f32
    %497 = vector.shape_cast %496 : vector<1x8xi1> to vector<1x8xi1>
    %498 = vector.broadcast %497 : vector<1x8xi1> to vector<8x8xi1>
    %499 = vector.broadcast %cst_188 : f32 to vector<8x8xf32>
    %500 = arith.select %498, %494, %499 : vector<8x8xi1>, vector<8x8xf32>
    %cst_189 = arith.constant dense<0xFF800000> : vector<8xf32>
    %501 = vector.multi_reduction <maximumf>, %500, %cst_189 [1] : vector<8x8xf32> to vector<8xf32>
    %502 = vector.shape_cast %501 : vector<8xf32> to vector<8x1xf32>
    %503 = vector.broadcast %502 : vector<8x1xf32> to vector<8x8xf32>
    %504 = arith.subf %500, %503 : vector<8x8xf32>
    %505 = math.exp %504 : vector<8x8xf32>
    %cst_190 = arith.constant dense<0.000000e+00> : vector<8xf32>
    %506 = vector.multi_reduction <add>, %505, %cst_190 [1] : vector<8x8xf32> to vector<8xf32>
    %507 = vector.shape_cast %506 : vector<8xf32> to vector<8x1xf32>
    %508 = vector.broadcast %507 : vector<8x1xf32> to vector<8x8xf32>
    %509 = arith.divf %505, %508 : vector<8x8xf32>
    %510 = vector.extract_strided_slice %435 {offsets = [0, 16], sizes = [8, 8], strides = [1, 1]} : vector<8x32xf32> to vector<8x8xf32>
    %511 = arith.truncf %509 : vector<8x8xf32> to vector<8x8xbf16>
    %512 = arith.truncf %510 : vector<8x8xf32> to vector<8x8xbf16>
    %cst_191 = arith.constant dense<0.000000e+00> : vector<8x8xf32>
    %513 = tpu.matmul %511, %512, %cst_191 {dimension_numbers = #tpu.dot_dimension_numbers<[1], [0], [0], [1], [0, 0, 1, 1], [], []>} : vector<8x8xbf16>, vector<8x8xbf16>, vector<8x8xf32> -> vector<8x8xf32>
    %514 = vector.extract_strided_slice %429 {offsets = [0, 24], sizes = [8, 8], strides = [1, 1]} : vector<8x32xf32> to vector<8x8xf32>
    %515 = vector.extract_strided_slice %434 {offsets = [0, 24], sizes = [8, 8], strides = [1, 1]} : vector<8x32xf32> to vector<8x8xf32>
    %516 = arith.truncf %514 : vector<8x8xf32> to vector<8x8xbf16>
    %517 = arith.truncf %515 : vector<8x8xf32> to vector<8x8xbf16>
    %cst_192 = arith.constant dense<0.000000e+00> : vector<8x8xf32>
    %518 = tpu.matmul %516, %517, %cst_192 {dimension_numbers = #tpu.dot_dimension_numbers<[1], [1], [0], [0], [0, 0, 1, 0], [], []>} : vector<8x8xbf16>, vector<8x8xbf16>, vector<8x8xf32> -> vector<8x8xf32>
    %cst_193 = arith.constant 0.353553385 : f32
    %519 = vector.broadcast %cst_193 : f32 to vector<8x8xf32>
    %520 = arith.mulf %518, %519 : vector<8x8xf32>
    %cst_194 = arith.constant 0.000000e+00 : f32
    %521 = vector.broadcast %cst_194 : f32 to vector<1x8xf32>
    %522 = arith.cmpf ogt, %3, %521 : vector<1x8xf32>
    %cst_195 = arith.constant -1.000000e+09 : f32
    %523 = vector.shape_cast %522 : vector<1x8xi1> to vector<1x8xi1>
    %524 = vector.broadcast %523 : vector<1x8xi1> to vector<8x8xi1>
    %525 = vector.broadcast %cst_195 : f32 to vector<8x8xf32>
    %526 = arith.select %524, %520, %525 : vector<8x8xi1>, vector<8x8xf32>
    %cst_196 = arith.constant dense<0xFF800000> : vector<8xf32>
    %527 = vector.multi_reduction <maximumf>, %526, %cst_196 [1] : vector<8x8xf32> to vector<8xf32>
    %528 = vector.shape_cast %527 : vector<8xf32> to vector<8x1xf32>
    %529 = vector.broadcast %528 : vector<8x1xf32> to vector<8x8xf32>
    %530 = arith.subf %526, %529 : vector<8x8xf32>
    %531 = math.exp %530 : vector<8x8xf32>
    %cst_197 = arith.constant dense<0.000000e+00> : vector<8xf32>
    %532 = vector.multi_reduction <add>, %531, %cst_197 [1] : vector<8x8xf32> to vector<8xf32>
    %533 = vector.shape_cast %532 : vector<8xf32> to vector<8x1xf32>
    %534 = vector.broadcast %533 : vector<8x1xf32> to vector<8x8xf32>
    %535 = arith.divf %531, %534 : vector<8x8xf32>
    %536 = vector.extract_strided_slice %435 {offsets = [0, 24], sizes = [8, 8], strides = [1, 1]} : vector<8x32xf32> to vector<8x8xf32>
    %537 = arith.truncf %535 : vector<8x8xf32> to vector<8x8xbf16>
    %538 = arith.truncf %536 : vector<8x8xf32> to vector<8x8xbf16>
    %cst_198 = arith.constant dense<0.000000e+00> : vector<8x8xf32>
    %539 = tpu.matmul %537, %538, %cst_198 {dimension_numbers = #tpu.dot_dimension_numbers<[1], [0], [0], [1], [0, 0, 1, 1], [], []>} : vector<8x8xbf16>, vector<8x8xbf16>, vector<8x8xf32> -> vector<8x8xf32>
    %540 = tpu.concatenate %461, %487, %513, %539 in 1 : vector<8x8xf32>, vector<8x8xf32>, vector<8x8xf32>, vector<8x8xf32> -> vector<8x32xf32>
    %541 = arith.truncf %540 : vector<8x32xf32> to vector<8x32xbf16>
    %cst_199 = arith.constant dense<0.000000e+00> : vector<8x32xf32>
    %542 = tpu.matmul %541, %424, %cst_199 {dimension_numbers = #tpu.dot_dimension_numbers<[1], [0], [0], [1], [0, 0, 1, 1], [], []>} : vector<8x32xbf16>, vector<32x32xbf16>, vector<8x32xf32> -> vector<8x32xf32>
    %543 = vector.broadcast %425 : vector<1x32xf32> to vector<8x32xf32>
    %544 = arith.addf %542, %543 : vector<8x32xf32>
    %545 = arith.addf %393, %544 : vector<8x32xf32>
    %c2_200 = arith.constant 2 : index
    %c0_201 = arith.constant 0 : index
    %c0_202 = arith.constant 0 : index
    %546 = vector.load %arg21[%c2_200, %c0_201, %c0_202] : memref<4x2x32xf32, #tpu.memory_space<vmem>>, vector<1x2x32xf32>
    %547 = vector.shape_cast %546 : vector<1x2x32xf32> to vector<2x32xf32>
    %548 = vector.extract_strided_slice %547 {offsets = [0, 0], sizes = [1, 32], strides = [1, 1]} : vector<2x32xf32> to vector<1x32xf32>
    %549 = vector.extract_strided_slice %547 {offsets = [1, 0], sizes = [1, 32], strides = [1, 1]} : vector<2x32xf32> to vector<1x32xf32>
    %cst_203 = arith.constant dense<0.000000e+00> : vector<8xf32>
    %550 = vector.multi_reduction <add>, %545, %cst_203 [1] : vector<8x32xf32> to vector<8xf32>
    %551 = vector.shape_cast %550 : vector<8xf32> to vector<8x1xf32>
    %cst_204 = arith.constant 3.200000e+01 : f32
    %552 = vector.broadcast %cst_204 : f32 to vector<8x1xf32>
    %553 = arith.divf %551, %552 : vector<8x1xf32>
    %554 = vector.broadcast %553 : vector<8x1xf32> to vector<8x32xf32>
    %555 = arith.subf %545, %554 : vector<8x32xf32>
    %556 = arith.mulf %555, %555 : vector<8x32xf32>
    %cst_205 = arith.constant dense<0.000000e+00> : vector<8xf32>
    %557 = vector.multi_reduction <add>, %556, %cst_205 [1] : vector<8x32xf32> to vector<8xf32>
    %558 = vector.shape_cast %557 : vector<8xf32> to vector<8x1xf32>
    %cst_206 = arith.constant 3.200000e+01 : f32
    %559 = vector.broadcast %cst_206 : f32 to vector<8x1xf32>
    %560 = arith.divf %558, %559 : vector<8x1xf32>
    %561 = vector.broadcast %553 : vector<8x1xf32> to vector<8x32xf32>
    %562 = arith.subf %545, %561 : vector<8x32xf32>
    %cst_207 = arith.constant 9.99999974E-6 : f32
    %563 = vector.broadcast %cst_207 : f32 to vector<8x1xf32>
    %564 = arith.addf %560, %563 : vector<8x1xf32>
    %565 = math.rsqrt %564 : vector<8x1xf32>
    %566 = vector.broadcast %565 : vector<8x1xf32> to vector<8x32xf32>
    %567 = arith.mulf %562, %566 : vector<8x32xf32>
    %568 = vector.broadcast %548 : vector<1x32xf32> to vector<8x32xf32>
    %569 = arith.mulf %567, %568 : vector<8x32xf32>
    %570 = vector.broadcast %549 : vector<1x32xf32> to vector<8x32xf32>
    %571 = arith.addf %569, %570 : vector<8x32xf32>
    %c0_208 = arith.constant 0 : index
    %c0_209 = arith.constant 0 : index
    %572 = vector.load %arg32[%c0_208, %c0_209] : memref<32x64xbf16, #tpu.memory_space<vmem>>, vector<32x64xbf16>
    %c0_210 = arith.constant 0 : index
    %c0_211 = arith.constant 0 : index
    %573 = vector.load %arg33[%c0_210, %c0_211] : memref<1x64xf32, #tpu.memory_space<vmem>>, vector<1x64xf32>
    %c0_212 = arith.constant 0 : index
    %c0_213 = arith.constant 0 : index
    %574 = vector.load %arg34[%c0_212, %c0_213] : memref<64x32xbf16, #tpu.memory_space<vmem>>, vector<64x32xbf16>
    %c0_214 = arith.constant 0 : index
    %c0_215 = arith.constant 0 : index
    %575 = vector.load %arg35[%c0_214, %c0_215] : memref<1x32xf32, #tpu.memory_space<vmem>>, vector<1x32xf32>
    %576 = arith.truncf %571 : vector<8x32xf32> to vector<8x32xbf16>
    %cst_216 = arith.constant dense<0.000000e+00> : vector<8x64xf32>
    %577 = tpu.matmul %576, %572, %cst_216 {dimension_numbers = #tpu.dot_dimension_numbers<[1], [0], [0], [1], [0, 0, 1, 1], [], []>} : vector<8x32xbf16>, vector<32x64xbf16>, vector<8x64xf32> -> vector<8x64xf32>
    %578 = vector.broadcast %573 : vector<1x64xf32> to vector<8x64xf32>
    %579 = arith.addf %577, %578 : vector<8x64xf32>
    %cst_217 = arith.constant 0.000000e+00 : f32
    %580 = vector.broadcast %cst_217 : f32 to vector<8x64xf32>
    %581 = arith.maximumf %579, %580 : vector<8x64xf32>
    %582 = arith.truncf %581 : vector<8x64xf32> to vector<8x64xbf16>
    %cst_218 = arith.constant dense<0.000000e+00> : vector<8x32xf32>
    %583 = tpu.matmul %582, %574, %cst_218 {dimension_numbers = #tpu.dot_dimension_numbers<[1], [0], [0], [1], [0, 0, 1, 1], [], []>} : vector<8x64xbf16>, vector<64x32xbf16>, vector<8x32xf32> -> vector<8x32xf32>
    %584 = vector.broadcast %575 : vector<1x32xf32> to vector<8x32xf32>
    %585 = arith.addf %583, %584 : vector<8x32xf32>
    %586 = arith.addf %545, %585 : vector<8x32xf32>
    %c3 = arith.constant 3 : index
    %c0_219 = arith.constant 0 : index
    %c0_220 = arith.constant 0 : index
    %587 = vector.load %arg21[%c3, %c0_219, %c0_220] : memref<4x2x32xf32, #tpu.memory_space<vmem>>, vector<1x2x32xf32>
    %588 = vector.shape_cast %587 : vector<1x2x32xf32> to vector<2x32xf32>
    %589 = vector.extract_strided_slice %588 {offsets = [0, 0], sizes = [1, 32], strides = [1, 1]} : vector<2x32xf32> to vector<1x32xf32>
    %590 = vector.extract_strided_slice %588 {offsets = [1, 0], sizes = [1, 32], strides = [1, 1]} : vector<2x32xf32> to vector<1x32xf32>
    %cst_221 = arith.constant dense<0.000000e+00> : vector<8xf32>
    %591 = vector.multi_reduction <add>, %586, %cst_221 [1] : vector<8x32xf32> to vector<8xf32>
    %592 = vector.shape_cast %591 : vector<8xf32> to vector<8x1xf32>
    %cst_222 = arith.constant 3.200000e+01 : f32
    %593 = vector.broadcast %cst_222 : f32 to vector<8x1xf32>
    %594 = arith.divf %592, %593 : vector<8x1xf32>
    %595 = vector.broadcast %594 : vector<8x1xf32> to vector<8x32xf32>
    %596 = arith.subf %586, %595 : vector<8x32xf32>
    %597 = arith.mulf %596, %596 : vector<8x32xf32>
    %cst_223 = arith.constant dense<0.000000e+00> : vector<8xf32>
    %598 = vector.multi_reduction <add>, %597, %cst_223 [1] : vector<8x32xf32> to vector<8xf32>
    %599 = vector.shape_cast %598 : vector<8xf32> to vector<8x1xf32>
    %cst_224 = arith.constant 3.200000e+01 : f32
    %600 = vector.broadcast %cst_224 : f32 to vector<8x1xf32>
    %601 = arith.divf %599, %600 : vector<8x1xf32>
    %602 = vector.broadcast %594 : vector<8x1xf32> to vector<8x32xf32>
    %603 = arith.subf %586, %602 : vector<8x32xf32>
    %cst_225 = arith.constant 9.99999974E-6 : f32
    %604 = vector.broadcast %cst_225 : f32 to vector<8x1xf32>
    %605 = arith.addf %601, %604 : vector<8x1xf32>
    %606 = math.rsqrt %605 : vector<8x1xf32>
    %607 = vector.broadcast %606 : vector<8x1xf32> to vector<8x32xf32>
    %608 = arith.mulf %603, %607 : vector<8x32xf32>
    %609 = vector.broadcast %589 : vector<1x32xf32> to vector<8x32xf32>
    %610 = arith.mulf %608, %609 : vector<8x32xf32>
    %611 = vector.broadcast %590 : vector<1x32xf32> to vector<8x32xf32>
    %612 = arith.addf %610, %611 : vector<8x32xf32>
    %c0_226 = arith.constant 0 : index
    %c0_227 = arith.constant 0 : index
    %613 = vector.load %arg36[%c0_226, %c0_227] : memref<32x25xbf16, #tpu.memory_space<vmem>>, vector<32x25xbf16>
    %614 = arith.truncf %612 : vector<8x32xf32> to vector<8x32xbf16>
    %cst_228 = arith.constant dense<0.000000e+00> : vector<8x25xf32>
    %615 = tpu.matmul %614, %613, %cst_228 {dimension_numbers = #tpu.dot_dimension_numbers<[1], [0], [0], [1], [0, 0, 1, 1], [], []>} : vector<8x32xbf16>, vector<32x25xbf16>, vector<8x25xf32> -> vector<8x25xf32>
    %c0_229 = arith.constant 0 : index
    %c0_230 = arith.constant 0 : index
    %616 = vector.load %arg37[%c0_229, %c0_230] : memref<1x25xf32, #tpu.memory_space<vmem>>, vector<1x25xf32>
    %617 = vector.broadcast %616 : vector<1x25xf32> to vector<8x25xf32>
    %618 = arith.addf %615, %617 : vector<8x25xf32>
    %cst_231 = arith.constant dense<0xFF800000> : vector<8xf32>
    %619 = vector.multi_reduction <maximumf>, %618, %cst_231 [1] : vector<8x25xf32> to vector<8xf32>
    %620 = vector.shape_cast %619 : vector<8xf32> to vector<8x1xf32>
    %621 = vector.broadcast %620 : vector<8x1xf32> to vector<8x25xf32>
    %622 = arith.subf %618, %621 : vector<8x25xf32>
    %623 = math.exp %622 : vector<8x25xf32>
    %cst_232 = arith.constant dense<0.000000e+00> : vector<8xf32>
    %624 = vector.multi_reduction <add>, %623, %cst_232 [1] : vector<8x25xf32> to vector<8xf32>
    %625 = vector.shape_cast %624 : vector<8xf32> to vector<8x1xf32>
    %626 = math.log %625 : vector<8x1xf32>
    %627 = arith.addf %626, %620 : vector<8x1xf32>
    %628 = vector.broadcast %627 : vector<8x1xf32> to vector<8x25xf32>
    %629 = arith.subf %618, %628 : vector<8x25xf32>
    %c0_233 = arith.constant 0 : index
    %c0_234 = arith.constant 0 : index
    %c0_235 = arith.constant 0 : index
    %630 = vector.load %arg42[%c0_233, %c0_234, %c0_235] : memref<1x8x25xf32, #tpu.memory_space<vmem>>, vector<1x8x25xf32>
    %631 = vector.shape_cast %630 : vector<1x8x25xf32> to vector<8x25xf32>
    %632 = vector.shape_cast %629 : vector<8x25xf32> to vector<1x8x25xf32>
    tpu.vector_store %arg42[%c0_233, %c0_234, %c0_235], %632 {strides = array<i32>} : memref<1x8x25xf32, #tpu.memory_space<vmem>>, vector<1x8x25xf32>,
    %c0_236 = arith.constant 0 : index
    %c0_237 = arith.constant 0 : index
    %633 = vector.load %arg38[%c0_236, %c0_237] : memref<16x16xbf16, #tpu.memory_space<vmem>>, vector<16x16xbf16>
    %634 = arith.truncf %230 : vector<1x16xf32> to vector<1x16xbf16>
    %cst_238 = arith.constant dense<0.000000e+00> : vector<1x16xf32>
    %635 = tpu.matmul %634, %633, %cst_238 {dimension_numbers = #tpu.dot_dimension_numbers<[1], [0], [0], [1], [0, 0, 1, 1], [], []>} : vector<1x16xbf16>, vector<16x16xbf16>, vector<1x16xf32> -> vector<1x16xf32>
    %c0_239 = arith.constant 0 : index
    %c0_240 = arith.constant 0 : index
    %636 = vector.load %arg39[%c0_239, %c0_240] : memref<1x16xf32, #tpu.memory_space<vmem>>, vector<1x16xf32>
    %637 = arith.addf %635, %636 : vector<1x16xf32>
    %cst_241 = arith.constant 0.000000e+00 : f32
    %638 = vector.broadcast %cst_241 : f32 to vector<1x16xf32>
    %639 = arith.maximumf %637, %638 : vector<1x16xf32>
    %c0_242 = arith.constant 0 : index
    %c0_243 = arith.constant 0 : index
    %640 = vector.load %arg40[%c0_242, %c0_243] : memref<16x1xbf16, #tpu.memory_space<vmem>>, vector<16x1xbf16>
    %641 = arith.truncf %639 : vector<1x16xf32> to vector<1x16xbf16>
    %cst_244 = arith.constant dense<0.000000e+00> : vector<1x1xf32>
    %642 = tpu.matmul %641, %640, %cst_244 {dimension_numbers = #tpu.dot_dimension_numbers<[1], [0], [0], [1], [0, 0, 1, 1], [], []>} : vector<1x16xbf16>, vector<16x1xbf16>, vector<1x1xf32> -> vector<1x1xf32>
    %c0_245 = arith.constant 0 : index
    %c0_246 = arith.constant 0 : index
    %643 = vector.load %arg41[%c0_245, %c0_246] : memref<1x1xf32, #tpu.memory_space<vmem>>, vector<1x1xf32>
    %644 = arith.addf %642, %643 : vector<1x1xf32>
    %c0_247 = arith.constant 0 : index
    %c0_248 = arith.constant 0 : index
    %c0_249 = arith.constant 0 : index
    %645 = vector.load %arg43[%c0_247, %c0_248, %c0_249] : memref<1x1x16xf32, #tpu.memory_space<vmem>>, vector<1x1x16xf32>
    %646 = vector.shape_cast %645 : vector<1x1x16xf32> to vector<1x16xf32>
    %647 = vector.shape_cast %230 : vector<1x16xf32> to vector<1x1x16xf32>
    tpu.vector_store %arg43[%c0_247, %c0_248, %c0_249], %647 {strides = array<i32>} : memref<1x1x16xf32, #tpu.memory_space<vmem>>, vector<1x1x16xf32>,
    %c0_250 = arith.constant 0 : index
    %c0_251 = arith.constant 0 : index
    %c0_252 = arith.constant 0 : index
    %648 = vector.load %arg44[%c0_250, %c0_251, %c0_252] : memref<1x1x16xf32, #tpu.memory_space<vmem>>, vector<1x1x16xf32>
    %649 = vector.shape_cast %648 : vector<1x1x16xf32> to vector<1x16xf32>
    %650 = vector.shape_cast %231 : vector<1x16xf32> to vector<1x1x16xf32>
    tpu.vector_store %arg44[%c0_250, %c0_251, %c0_252], %650 {strides = array<i32>} : memref<1x1x16xf32, #tpu.memory_space<vmem>>, vector<1x1x16xf32>,
    %c0_253 = arith.constant 0 : index
    %c0_254 = arith.constant 0 : index
    %c0_255 = arith.constant 0 : index
    %651 = vector.load %arg45[%c0_253, %c0_254, %c0_255] : memref<1x1x8xf32, #tpu.memory_space<vmem>>, vector<1x1x8xf32>
    %652 = vector.shape_cast %651 : vector<1x1x8xf32> to vector<1x8xf32>
    %653 = vector.shape_cast %250 : vector<1x8xf32> to vector<1x1x8xf32>
    tpu.vector_store %arg45[%c0_253, %c0_254, %c0_255], %653 {strides = array<i32>} : memref<1x1x8xf32, #tpu.memory_space<vmem>>, vector<1x1x8xf32>,
    %c0_256 = arith.constant 0 : index
    %c0_257 = arith.constant 0 : index
    %c0_258 = arith.constant 0 : index
    %654 = vector.load %arg46[%c0_256, %c0_257, %c0_258] : memref<1x1x1xf32, #tpu.memory_space<vmem>>, vector<1x1x1xf32>
    %655 = vector.shape_cast %654 : vector<1x1x1xf32> to vector<1x1xf32>
    %656 = vector.shape_cast %644 : vector<1x1xf32> to vector<1x1x1xf32>
    tpu.vector_store %arg46[%c0_256, %c0_257, %c0_258], %656 {strides = array<i32>} : memref<1x1x1xf32, #tpu.memory_space<vmem>>, vector<1x1x1xf32>,
    return
  }
  func.func @transform_0(%arg0: i32) -> (i32, i32, i32) {
    %c0_i32 = arith.constant 0 : i32
    %c0_i32_0 = arith.constant 0 : i32
    %c0_i32_1 = arith.constant 0 : i32
    return %arg0, %c0_i32, %c0_i32_0 : i32, i32, i32
  }
  func.func @transform_1(%arg0: i32) -> (i32, i32, i32) {
    %c0_i32 = arith.constant 0 : i32
    %c0_i32_0 = arith.constant 0 : i32
    %c0_i32_1 = arith.constant 0 : i32
    return %arg0, %c0_i32, %c0_i32_0 : i32, i32, i32
  }
  func.func @transform_2(%arg0: i32) -> (i32, i32, i32) {
    %c0_i32 = arith.constant 0 : i32
    %c0_i32_0 = arith.constant 0 : i32
    %c0_i32_1 = arith.constant 0 : i32
    return %arg0, %c0_i32, %c0_i32_0 : i32, i32, i32
  }
  func.func @transform_3(%arg0: i32) -> (i32, i32, i32) {
    %c0_i32 = arith.constant 0 : i32
    %c0_i32_0 = arith.constant 0 : i32
    %c0_i32_1 = arith.constant 0 : i32
    return %arg0, %c0_i32, %c0_i32_0 : i32, i32, i32
  }
  func.func @transform_4(%arg0: i32) -> (i32, i32, i32) {
    %c0_i32 = arith.constant 0 : i32
    %c0_i32_0 = arith.constant 0 : i32
    %c0_i32_1 = arith.constant 0 : i32
    return %arg0, %c0_i32, %c0_i32_0 : i32, i32, i32
  }
  func.func @transform_5(%arg0: i32) -> (i32, i32, i32) {
    %c0_i32 = arith.constant 0 : i32
    %c0_i32_0 = arith.constant 0 : i32
    %c0_i32_1 = arith.constant 0 : i32
    %c0_i32_2 = arith.constant 0 : i32
    return %c0_i32, %c0_i32_0, %c0_i32_1 : i32, i32, i32
  }
  func.func @transform_6(%arg0: i32) -> (i32, i32) {
    %c0_i32 = arith.constant 0 : i32
    %c0_i32_0 = arith.constant 0 : i32
    %c0_i32_1 = arith.constant 0 : i32
    return %c0_i32, %c0_i32_0 : i32, i32
  }
  func.func @transform_7(%arg0: i32) -> (i32, i32) {
    %c0_i32 = arith.constant 0 : i32
    %c0_i32_0 = arith.constant 0 : i32
    %c0_i32_1 = arith.constant 0 : i32
    return %c0_i32, %c0_i32_0 : i32, i32
  }
  func.func @transform_8(%arg0: i32) -> (i32, i32) {
    %c0_i32 = arith.constant 0 : i32
    %c0_i32_0 = arith.constant 0 : i32
    %c0_i32_1 = arith.constant 0 : i32
    return %c0_i32, %c0_i32_0 : i32, i32
  }
  func.func @transform_9(%arg0: i32) -> (i32, i32) {
    %c0_i32 = arith.constant 0 : i32
    %c0_i32_0 = arith.constant 0 : i32
    %c0_i32_1 = arith.constant 0 : i32
    return %c0_i32, %c0_i32_0 : i32, i32
  }
  func.func @transform_10(%arg0: i32) -> (i32, i32) {
    %c0_i32 = arith.constant 0 : i32
    %c0_i32_0 = arith.constant 0 : i32
    %c0_i32_1 = arith.constant 0 : i32
    return %c0_i32, %c0_i32_0 : i32, i32
  }
  func.func @transform_11(%arg0: i32) -> (i32, i32) {
    %c0_i32 = arith.constant 0 : i32
    %c0_i32_0 = arith.constant 0 : i32
    %c0_i32_1 = arith.constant 0 : i32
    return %c0_i32, %c0_i32_0 : i32, i32
  }
  func.func @transform_12(%arg0: i32) -> (i32, i32) {
    %c0_i32 = arith.constant 0 : i32
    %c0_i32_0 = arith.constant 0 : i32
    %c0_i32_1 = arith.constant 0 : i32
    return %c0_i32, %c0_i32_0 : i32, i32
  }
  func.func @transform_13(%arg0: i32) -> (i32, i32) {
    %c0_i32 = arith.constant 0 : i32
    %c0_i32_0 = arith.constant 0 : i32
    %c0_i32_1 = arith.constant 0 : i32
    return %c0_i32, %c0_i32_0 : i32, i32
  }
  func.func @transform_14(%arg0: i32) -> (i32, i32) {
    %c0_i32 = arith.constant 0 : i32
    %c0_i32_0 = arith.constant 0 : i32
    %c0_i32_1 = arith.constant 0 : i32
    return %c0_i32, %c0_i32_0 : i32, i32
  }
  func.func @transform_15(%arg0: i32) -> (i32, i32) {
    %c0_i32 = arith.constant 0 : i32
    %c0_i32_0 = arith.constant 0 : i32
    %c0_i32_1 = arith.constant 0 : i32
    return %c0_i32, %c0_i32_0 : i32, i32
  }
  func.func @transform_16(%arg0: i32) -> (i32, i32) {
    %c0_i32 = arith.constant 0 : i32
    %c0_i32_0 = arith.constant 0 : i32
    %c0_i32_1 = arith.constant 0 : i32
    return %c0_i32, %c0_i32_0 : i32, i32
  }
  func.func @transform_17(%arg0: i32) -> (i32, i32) {
    %c0_i32 = arith.constant 0 : i32
    %c0_i32_0 = arith.constant 0 : i32
    %c0_i32_1 = arith.constant 0 : i32
    return %c0_i32, %c0_i32_0 : i32, i32
  }
  func.func @transform_18(%arg0: i32) -> (i32, i32) {
    %c0_i32 = arith.constant 0 : i32
    %c0_i32_0 = arith.constant 0 : i32
    %c0_i32_1 = arith.constant 0 : i32
    return %c0_i32, %c0_i32_0 : i32, i32
  }
  func.func @transform_19(%arg0: i32) -> (i32, i32) {
    %c0_i32 = arith.constant 0 : i32
    %c0_i32_0 = arith.constant 0 : i32
    %c0_i32_1 = arith.constant 0 : i32
    return %c0_i32, %c0_i32_0 : i32, i32
  }
  func.func @transform_20(%arg0: i32) -> (i32, i32, i32) {
    %c0_i32 = arith.constant 0 : i32
    %c0_i32_0 = arith.constant 0 : i32
    %c0_i32_1 = arith.constant 0 : i32
    %c0_i32_2 = arith.constant 0 : i32
    return %c0_i32, %c0_i32_0, %c0_i32_1 : i32, i32, i32
  }
  func.func @transform_21(%arg0: i32) -> (i32, i32) {
    %c0_i32 = arith.constant 0 : i32
    %c0_i32_0 = arith.constant 0 : i32
    %c0_i32_1 = arith.constant 0 : i32
    return %c0_i32, %c0_i32_0 : i32, i32
  }
  func.func @transform_22(%arg0: i32) -> (i32, i32) {
    %c0_i32 = arith.constant 0 : i32
    %c0_i32_0 = arith.constant 0 : i32
    %c0_i32_1 = arith.constant 0 : i32
    return %c0_i32, %c0_i32_0 : i32, i32
  }
  func.func @transform_23(%arg0: i32) -> (i32, i32) {
    %c0_i32 = arith.constant 0 : i32
    %c0_i32_0 = arith.constant 0 : i32
    %c0_i32_1 = arith.constant 0 : i32
    return %c0_i32, %c0_i32_0 : i32, i32
  }
  func.func @transform_24(%arg0: i32) -> (i32, i32) {
    %c0_i32 = arith.constant 0 : i32
    %c0_i32_0 = arith.constant 0 : i32
    %c0_i32_1 = arith.constant 0 : i32
    return %c0_i32, %c0_i32_0 : i32, i32
  }
  func.func @transform_25(%arg0: i32) -> (i32, i32) {
    %c0_i32 = arith.constant 0 : i32
    %c0_i32_0 = arith.constant 0 : i32
    %c0_i32_1 = arith.constant 0 : i32
    return %c0_i32, %c0_i32_0 : i32, i32
  }
  func.func @transform_26(%arg0: i32) -> (i32, i32) {
    %c0_i32 = arith.constant 0 : i32
    %c0_i32_0 = arith.constant 0 : i32
    %c0_i32_1 = arith.constant 0 : i32
    return %c0_i32, %c0_i32_0 : i32, i32
  }
  func.func @transform_27(%arg0: i32) -> (i32, i32) {
    %c0_i32 = arith.constant 0 : i32
    %c0_i32_0 = arith.constant 0 : i32
    %c0_i32_1 = arith.constant 0 : i32
    return %c0_i32, %c0_i32_0 : i32, i32
  }
  func.func @transform_28(%arg0: i32) -> (i32, i32) {
    %c0_i32 = arith.constant 0 : i32
    %c0_i32_0 = arith.constant 0 : i32
    %c0_i32_1 = arith.constant 0 : i32
    return %c0_i32, %c0_i32_0 : i32, i32
  }
  func.func @transform_29(%arg0: i32) -> (i32, i32) {
    %c0_i32 = arith.constant 0 : i32
    %c0_i32_0 = arith.constant 0 : i32
    %c0_i32_1 = arith.constant 0 : i32
    return %c0_i32, %c0_i32_0 : i32, i32
  }
  func.func @transform_30(%arg0: i32) -> (i32, i32) {
    %c0_i32 = arith.constant 0 : i32
    %c0_i32_0 = arith.constant 0 : i32
    %c0_i32_1 = arith.constant 0 : i32
    return %c0_i32, %c0_i32_0 : i32, i32
  }
  func.func @transform_31(%arg0: i32) -> (i32, i32) {
    %c0_i32 = arith.constant 0 : i32
    %c0_i32_0 = arith.constant 0 : i32
    %c0_i32_1 = arith.constant 0 : i32
    return %c0_i32, %c0_i32_0 : i32, i32
  }
  func.func @transform_32(%arg0: i32) -> (i32, i32) {
    %c0_i32 = arith.constant 0 : i32
    %c0_i32_0 = arith.constant 0 : i32
    %c0_i32_1 = arith.constant 0 : i32
    return %c0_i32, %c0_i32_0 : i32, i32
  }
  func.func @transform_33(%arg0: i32) -> (i32, i32) {
    %c0_i32 = arith.constant 0 : i32
    %c0_i32_0 = arith.constant 0 : i32
    %c0_i32_1 = arith.constant 0 : i32
    return %c0_i32, %c0_i32_0 : i32, i32
  }
  func.func @transform_34(%arg0: i32) -> (i32, i32) {
    %c0_i32 = arith.constant 0 : i32
    %c0_i32_0 = arith.constant 0 : i32
    %c0_i32_1 = arith.constant 0 : i32
    return %c0_i32, %c0_i32_0 : i32, i32
  }
  func.func @transform_35(%arg0: i32) -> (i32, i32) {
    %c0_i32 = arith.constant 0 : i32
    %c0_i32_0 = arith.constant 0 : i32
    %c0_i32_1 = arith.constant 0 : i32
    return %c0_i32, %c0_i32_0 : i32, i32
  }
  func.func @transform_36(%arg0: i32) -> (i32, i32) {
    %c0_i32 = arith.constant 0 : i32
    %c0_i32_0 = arith.constant 0 : i32
    %c0_i32_1 = arith.constant 0 : i32
    return %c0_i32, %c0_i32_0 : i32, i32
  }
  func.func @transform_37(%arg0: i32) -> (i32, i32) {
    %c0_i32 = arith.constant 0 : i32
    %c0_i32_0 = arith.constant 0 : i32
    %c0_i32_1 = arith.constant 0 : i32
    return %c0_i32, %c0_i32_0 : i32, i32
  }
  func.func @transform_38(%arg0: i32) -> (i32, i32) {
    %c0_i32 = arith.constant 0 : i32
    %c0_i32_0 = arith.constant 0 : i32
    %c0_i32_1 = arith.constant 0 : i32
    return %c0_i32, %c0_i32_0 : i32, i32
  }
  func.func @transform_39(%arg0: i32) -> (i32, i32) {
    %c0_i32 = arith.constant 0 : i32
    %c0_i32_0 = arith.constant 0 : i32
    %c0_i32_1 = arith.constant 0 : i32
    return %c0_i32, %c0_i32_0 : i32, i32
  }
  func.func @transform_40(%arg0: i32) -> (i32, i32) {
    %c0_i32 = arith.constant 0 : i32
    %c0_i32_0 = arith.constant 0 : i32
    %c0_i32_1 = arith.constant 0 : i32
    return %c0_i32, %c0_i32_0 : i32, i32
  }
  func.func @transform_41(%arg0: i32) -> (i32, i32, i32) {
    %c0_i32 = arith.constant 0 : i32
    %c0_i32_0 = arith.constant 0 : i32
    %c0_i32_1 = arith.constant 0 : i32
    return %arg0, %c0_i32, %c0_i32_0 : i32, i32, i32
  }
  func.func @transform_42(%arg0: i32) -> (i32, i32, i32) {
    %c0_i32 = arith.constant 0 : i32
    %c0_i32_0 = arith.constant 0 : i32
    %c0_i32_1 = arith.constant 0 : i32
    return %arg0, %c0_i32, %c0_i32_0 : i32, i32, i32
  }
  func.func @transform_43(%arg0: i32) -> (i32, i32, i32) {
    %c0_i32 = arith.constant 0 : i32
    %c0_i32_0 = arith.constant 0 : i32
    %c0_i32_1 = arith.constant 0 : i32
    return %arg0, %c0_i32, %c0_i32_0 : i32, i32, i32
  }
  func.func @transform_44(%arg0: i32) -> (i32, i32, i32) {
    %c0_i32 = arith.constant 0 : i32
    %c0_i32_0 = arith.constant 0 : i32
    %c0_i32_1 = arith.constant 0 : i32
    return %arg0, %c0_i32, %c0_i32_0 : i32, i32, i32
  }
  func.func @transform_45(%arg0: i32) -> (i32, i32, i32) {
    %c0_i32 = arith.constant 0 : i32
    %c0_i32_0 = arith.constant 0 : i32
    %c0_i32_1 = arith.constant 0 : i32
    return %arg0, %c0_i32, %c0_i32_0 : i32, i32, i32
  }
}

</mosaic_0001>

<llo_original>
// kernel: forward.1
$region0: #{forward.1}
  #allocation0 [shape = 'u32[]', space=smem, size = 0x4, offset = 0x4, fixed_abs, tag = 'smem constant byte address 0x4 - core index']
  #allocation1 [shape = 'u32[144,128]{1,0:T(1,128)}', space=vmem, size = 0x12000, scoped, tag = 'internal scratch']
  #allocation2 [shape = 'f32[1,1]{1,0:T(1,128)S(1)}', space=vmem, size = 0x200, scoped, tag = 'scoped memory for forward.1']
  %s0 = inlined_call_operand.smem [shape: u32[46], index: -1, kind: input, shape index: {}]
  %s1 = sld [smem:[%s0]]
  %s2 = scalar_lea.smem %s0, 1
  %s3 = sld [smem:[%s2]]
  %s4 = scalar_lea.smem %s0, 2
  %s5 = sld [smem:[%s4]]
  %s6 = scalar_lea.smem %s0, 3
  %s7 = sld [smem:[%s6]]
  %s8 = scalar_lea.smem %s0, 4
  %s9 = sld [smem:[%s8]]
  %s10 = scalar_lea.smem %s0, 5
  %s11 = sld [smem:[%s10]]
  %s12 = scalar_lea.smem %s0, 6
  %s13 = sld [smem:[%s12]]
  %s14 = scalar_lea.smem %s0, 7
  %s15 = sld [smem:[%s14]]
  %s16 = scalar_lea.smem %s0, 8
  %s17 = sld [smem:[%s16]]
  %s18 = scalar_lea.smem %s0, 9
  %s19 = sld [smem:[%s18]]
  %s20 = scalar_lea.smem %s0, 10
  %s21 = sld [smem:[%s20]]
  %s22 = scalar_lea.smem %s0, 11
  %s23 = sld [smem:[%s22]]
  %s24 = scalar_lea.smem %s0, 12
  %s25 = sld [smem:[%s24]]
  %s26 = scalar_lea.smem %s0, 13
  %s27 = sld [smem:[%s26]]
  %s28 = scalar_lea.smem %s0, 14
  %s29 = sld [smem:[%s28]]
  %s30 = scalar_lea.smem %s0, 15
  %s31 = sld [smem:[%s30]]
  %s32 = scalar_lea.smem %s0, 16
  %s33 = sld [smem:[%s32]]
  %s34 = scalar_lea.smem %s0, 17
  %s35 = sld [smem:[%s34]]
  %s36 = scalar_lea.smem %s0, 18
  %s37 = sld [smem:[%s36]]
  %s38 = scalar_lea.smem %s0, 19
  %s39 = sld [smem:[%s38]]
  %s40 = scalar_lea.smem %s0, 20
  %s41 = sld [smem:[%s40]]
  %s42 = scalar_lea.smem %s0, 21
  %s43 = sld [smem:[%s42]]
  %s44 = scalar_lea.smem %s0, 22
  %s45 = sld [smem:[%s44]]
  %s46 = scalar_lea.smem %s0, 23
  %s47 = sld [smem:[%s46]]
  %s48 = scalar_lea.smem %s0, 24
  %s49 = sld [smem:[%s48]]
  %s50 = scalar_lea.smem %s0, 25
  %s51 = sld [smem:[%s50]]
  %s52 = scalar_lea.smem %s0, 26
  %s53 = sld [smem:[%s52]]
  %s54 = scalar_lea.smem %s0, 27
  %s55 = sld [smem:[%s54]]
  %s56 = scalar_lea.smem %s0, 28
  %s57 = sld [smem:[%s56]]
  %s58 = scalar_lea.smem %s0, 29
  %s59 = sld [smem:[%s58]]
  %s60 = scalar_lea.smem %s0, 30
  %s61 = sld [smem:[%s60]]
  %s62 = scalar_lea.smem %s0, 31
  %s63 = sld [smem:[%s62]]
  %s64 = scalar_lea.smem %s0, 32
  %s65 = sld [smem:[%s64]]
  %s66 = scalar_lea.smem %s0, 33
  %s67 = sld [smem:[%s66]]
  %s68 = scalar_lea.smem %s0, 34
  %s69 = sld [smem:[%s68]]
  %s70 = scalar_lea.smem %s0, 35
  %s71 = sld [smem:[%s70]]
  %s72 = scalar_lea.smem %s0, 36
  %s73 = sld [smem:[%s72]]
  %s74 = scalar_lea.smem %s0, 37
  %s75 = sld [smem:[%s74]]
  %s76 = scalar_lea.smem %s0, 38
  %s77 = sld [smem:[%s76]]
  %s78 = scalar_lea.smem %s0, 39
  %s79 = sld [smem:[%s78]]
  %s80 = scalar_lea.smem %s0, 40
  %s81 = sld [smem:[%s80]]
  %s82 = scalar_lea.smem %s0, 41
  %s83 = sld [smem:[%s82]]
  %s84 = scalar_lea.smem %s0, 42
  %s85 = sld [smem:[%s84]]
  %s86 = scalar_lea.smem %s0, 43
  %s87 = sld [smem:[%s86]]
  %s88 = scalar_lea.smem %s0, 44
  %s89 = sld [smem:[%s88]]
  %s90 = scalar_lea.smem %s0, 45
  %s91 = sld [smem:[%s90]]
  %92 = xla_tuple %s83, %s85, %s87, %s89, %s91
  %s93 = sld [smem:[#allocation0]]
  $region229: #{forward.1} parent=0
    _
  %s95 = ssub.s32 1, %s93
  %s96 = scalar_select 0, %s95, %s93
  %v97 = vstv %s81
  %98 = vst [vmem:[#allocation2] sm:$0x1] %v97
  $region1: #{forward.1} parent=0
    #allocation3 [shape = 'u8[8192]{0}', space=vmem, size = 0x2000, scoped, tag = 'output window, operand 0']
    #allocation4 [shape = 's32[2]{0}', space=sflag, size = 0x8, scoped, tag = 'scoped memory for forward.1']
    #allocation5 [shape = 'u8[1024]{0}', space=vmem, size = 0x400, scoped, tag = 'output window, operand 1']
    #allocation6 [shape = 's32[2]{0}', space=sflag, size = 0x8, scoped, tag = 'scoped memory for forward.1']
    #allocation7 [shape = 'u8[1024]{0}', space=vmem, size = 0x400, scoped, tag = 'output window, operand 2']
    #allocation8 [shape = 'u8[1024]{0}', space=vmem, size = 0x400, scoped, tag = 'output window, operand 3']
    #allocation9 [shape = 's32[2]{0}', space=sflag, size = 0x8, scoped, tag = 'scoped memory for forward.1']
    %99 = vsyncpa [#allocation4], 0
    %s100 = scalar_lea.sflag [#allocation4], 1
    %101 = vsyncpa %s100, 0
    %102 = vsyncpa [#allocation6], 0
    %s103 = scalar_lea.sflag [#allocation6], 1
    %104 = vsyncpa %s103, 0
    %105 = vsyncpa [#allocation9], 0
    %s106 = scalar_lea.sflag [#allocation9], 1
    %107 = vsyncpa %s106, 0
    loop: start=0, step=1, limit=4
    $region2: #{forward.1} parent=1 // loop_pre_header
      _
    $region3: #{forward.1} parent=1 // loop_header
      %s109 = sphi 0, %s113
      %p110 = scmp.ge.s32.totalorder %s109, 4
      %s119 = sphi 0, %s121
      %s122 = sphi 0, %s119
      %s123 = sphi 0, %s122
      %s139 = sphi 0, %s123
      %s145 = sphi 0, %s147
      %s148 = sphi 0, %s145
      %s149 = sphi 0, %s148
      %s165 = sphi 0, %s149
      %s171 = sphi 0, %s173
      %s174 = sphi 0, %s171
      %s175 = sphi 0, %s174
      %s191 = sphi 0, %s175
      %s197 = sphi 0, %s199
      %s200 = sphi 0, %s197
      %s201 = sphi 0, %s200
      %s217 = sphi 0, %s201
      %s223 = sphi 0, %s225
      %s226 = sphi 0, %s223
      %s227 = sphi 0, %s226
      %s243 = sphi 0, %s227
      %s247 = sphi 0, %s247
      %s249 = sphi 0, %s247
      %s250 = sphi 0, %s249
      %s264 = sphi 0, %s250
      %s268 = sphi 0, %s268
      %s270 = sphi 0, %s268
      %s271 = sphi 0, %s270
      %s285 = sphi 0, %s271
      %s289 = sphi 0, %s289
      %s291 = sphi 0, %s289
      %s292 = sphi 0, %s291
      %s306 = sphi 0, %s292
      %s310 = sphi 0, %s310
      %s312 = sphi 0, %s310
      %s313 = sphi 0, %s312
      %s327 = sphi 0, %s313
      %s331 = sphi 0, %s331
      %s333 = sphi 0, %s331
      %s334 = sphi 0, %s333
      %s348 = sphi 0, %s334
      %s352 = sphi 0, %s352
      %s354 = sphi 0, %s352
      %s355 = sphi 0, %s354
      %s369 = sphi 0, %s355
      %s373 = sphi 0, %s373
      %s375 = sphi 0, %s373
      %s376 = sphi 0, %s375
      %s390 = sphi 0, %s376
      %s394 = sphi 0, %s394
      %s396 = sphi 0, %s394
      %s397 = sphi 0, %s396
      %s411 = sphi 0, %s397
      %s415 = sphi 0, %s415
      %s417 = sphi 0, %s415
      %s418 = sphi 0, %s417
      %s432 = sphi 0, %s418
      %s436 = sphi 0, %s436
      %s438 = sphi 0, %s436
      %s439 = sphi 0, %s438
      %s453 = sphi 0, %s439
      %s457 = sphi 0, %s457
      %s459 = sphi 0, %s457
      %s460 = sphi 0, %s459
      %s474 = sphi 0, %s460
      %s478 = sphi 0, %s478
      %s480 = sphi 0, %s478
      %s481 = sphi 0, %s480
      %s495 = sphi 0, %s481
      %s499 = sphi 0, %s499
      %s501 = sphi 0, %s499
      %s502 = sphi 0, %s501
      %s516 = sphi 0, %s502
      %s520 = sphi 0, %s520
      %s522 = sphi 0, %s520
      %s523 = sphi 0, %s522
      %s537 = sphi 0, %s523
      %s541 = sphi 0, %s541
      %s543 = sphi 0, %s541
      %s544 = sphi 0, %s543
      %s558 = sphi 0, %s544
      %s562 = sphi 0, %s562
      %s564 = sphi 0, %s562
      %s565 = sphi 0, %s564
      %s579 = sphi 0, %s565
      %s583 = sphi 0, %s583
      %s585 = sphi 0, %s583
      %s586 = sphi 0, %s585
      %s600 = sphi 0, %s586
      %s604 = sphi 0, %s604
      %s606 = sphi 0, %s604
      %s607 = sphi 0, %s606
      %s621 = sphi 0, %s607
      %s625 = sphi 0, %s625
      %s627 = sphi 0, %s625
      %s628 = sphi 0, %s627
      %s642 = sphi 0, %s628
      %s646 = sphi 0, %s646
      %s648 = sphi 0, %s646
      %s649 = sphi 0, %s648
      %s663 = sphi 0, %s649
      %s667 = sphi 0, %s667
      %s669 = sphi 0, %s667
      %s670 = sphi 0, %s669
      %s684 = sphi 0, %s670
      %s688 = sphi 0, %s688
      %s690 = sphi 0, %s688
      %s691 = sphi 0, %s690
      %s705 = sphi 0, %s691
      %s709 = sphi 0, %s709
      %s711 = sphi 0, %s709
      %s712 = sphi 0, %s711
      %s726 = sphi 0, %s712
      %s730 = sphi 0, %s730
      %s732 = sphi 0, %s730
      %s733 = sphi 0, %s732
      %s747 = sphi 0, %s733
      %s751 = sphi 0, %s751
      %s753 = sphi 0, %s751
      %s754 = sphi 0, %s753
      %s768 = sphi 0, %s754
      %s772 = sphi 0, %s772
      %s774 = sphi 0, %s772
      %s775 = sphi 0, %s774
      %s789 = sphi 0, %s775
      %s793 = sphi 0, %s793
      %s795 = sphi 0, %s793
      %s796 = sphi 0, %s795
      %s810 = sphi 0, %s796
      %s814 = sphi 0, %s814
      %s816 = sphi 0, %s814
      %s817 = sphi 0, %s816
      %s831 = sphi 0, %s817
      %s835 = sphi 0, %s835
      %s837 = sphi 0, %s835
      %s838 = sphi 0, %s837
      %s852 = sphi 0, %s838
      %s856 = sphi 0, %s856
      %s858 = sphi 0, %s856
      %s859 = sphi 0, %s858
      %s873 = sphi 0, %s859
      %s877 = sphi 0, %s877
      %s879 = sphi 0, %s877
      %s880 = sphi 0, %s879
      %s894 = sphi 0, %s880
      %s898 = sphi 0, %s898
      %s900 = sphi 0, %s898
      %s901 = sphi 0, %s900
      %s915 = sphi 0, %s901
      %s919 = sphi 0, %s919
      %s921 = sphi 0, %s919
      %s922 = sphi 0, %s921
      %s936 = sphi 0, %s922
      %s940 = sphi 0, %s940
      %s942 = sphi 0, %s940
      %s943 = sphi 0, %s942
      %s957 = sphi 0, %s943
      %s961 = sphi 0, %s961
      %s963 = sphi 0, %s961
      %s964 = sphi 0, %s963
      %s978 = sphi 0, %s964
      %s982 = sphi 0, %s982
      %s984 = sphi 0, %s982
      %s985 = sphi 0, %s984
      %s999 = sphi 0, %s985
      %s1005 = sphi 0, %s1007
      %s1008 = sphi 0, %s1005
      %s1009 = sphi 0, %s1008
      %s1025 = sphi 0, %s1009
      %s1031 = sphi 0, %s1033
      %s1034 = sphi 0, %s1031
      %s1035 = sphi 0, %s1034
      %s1051 = sphi 0, %s1035
      %s1057 = sphi 0, %s1059
      %s1060 = sphi 0, %s1057
      %s1061 = sphi 0, %s1060
      %s1077 = sphi 0, %s1061
      %s1083 = sphi 0, %s1085
      %s1086 = sphi 0, %s1083
      %s1087 = sphi 0, %s1086
      %s1103 = sphi 0, %s1087
      %s1109 = sphi 0, %s1111
      %s1112 = sphi 0, %s1109
      %s1113 = sphi 0, %s1112
      %s1129 = sphi 0, %s1113
    $region4: #{forward.1} parent=1 // loop_header_branch
      %112 = sbr.rel (%p110) target = $region8
    $region5: #{forward.1} parent=1 // loop_body
      %s114 = ssub.s32 %s109, 1
      %s115 = ssub.s32 %s109, 2
      %s116 = sadd.s32 %s109, 1
      %s117 = ssub.s32 %s109, %s116
      %p118 = scmp.eq.s32.totalorder %s117, 0
      %s120 = sadd.s32 %s119, 1
      %s121 = scalar_select %p118, %s119, %s120
      %p124 = pneg %p118
      %p125 = scmp.eq.s32.totalorder %s109, 1
      %p126 = por %p124, %p125
      %p127 = scmp.ne.s32.totalorder %s119, %s122
      %p128 = scmp.eq.s32.totalorder %s109, 0
      %p129 = por %p127, %p128
      %p130 = scmp.ne.s32.totalorder %s119, %s122
      %p131 = scmp.eq.s32.totalorder %s114, 1
      %p132 = por %p130, %p131
      %p133 = scmp.ne.s32.totalorder %s122, %s123
      %p134 = scmp.eq.s32.totalorder %s114, 0
      %p135 = por %p133, %p134
      %p136 = scmp.ne.s32.totalorder %s122, %s123
      %p137 = scmp.eq.s32.totalorder %s115, 1
      %p138 = por %p136, %p137
      %p140 = scmp.ne.s32.totalorder %s123, %s139
      %p141 = scmp.eq.s32.totalorder %s115, 0
      %p142 = por %p140, %p141
      %s143 = ssub.s32 %s109, %s116
      %p144 = scmp.eq.s32.totalorder %s143, 0
      %s146 = sadd.s32 %s145, 1
      %s147 = scalar_select %p144, %s145, %s146
      %p150 = pneg %p144
      %p151 = scmp.eq.s32.totalorder %s109, 1
      %p152 = por %p150, %p151
      %p153 = scmp.ne.s32.totalorder %s145, %s148
      %p154 = scmp.eq.s32.totalorder %s109, 0
      %p155 = por %p153, %p154
      %p156 = scmp.ne.s32.totalorder %s145, %s148
      %p157 = scmp.eq.s32.totalorder %s114, 1
      %p158 = por %p156, %p157
      %p159 = scmp.ne.s32.totalorder %s148, %s149
      %p160 = scmp.eq.s32.totalorder %s114, 0
      %p161 = por %p159, %p160
      %p162 = scmp.ne.s32.totalorder %s148, %s149
      %p163 = scmp.eq.s32.totalorder %s115, 1
      %p164 = por %p162, %p163
      %p166 = scmp.ne.s32.totalorder %s149, %s165
      %p167 = scmp.eq.s32.totalorder %s115, 0
      %p168 = por %p166, %p167
      %s169 = ssub.s32 %s109, %s116
      %p170 = scmp.eq.s32.totalorder %s169, 0
      %s172 = sadd.s32 %s171, 1
      %s173 = scalar_select %p170, %s171, %s172
      %p176 = pneg %p170
      %p177 = scmp.eq.s32.totalorder %s109, 1
      %p178 = por %p176, %p177
      %p179 = scmp.ne.s32.totalorder %s171, %s174
      %p180 = scmp.eq.s32.totalorder %s109, 0
      %p181 = por %p179, %p180
      %p182 = scmp.ne.s32.totalorder %s171, %s174
      %p183 = scmp.eq.s32.totalorder %s114, 1
      %p184 = por %p182, %p183
      %p185 = scmp.ne.s32.totalorder %s174, %s175
      %p186 = scmp.eq.s32.totalorder %s114, 0
      %p187 = por %p185, %p186
      %p188 = scmp.ne.s32.totalorder %s174, %s175
      %p189 = scmp.eq.s32.totalorder %s115, 1
      %p190 = por %p188, %p189
      %p192 = scmp.ne.s32.totalorder %s175, %s191
      %p193 = scmp.eq.s32.totalorder %s115, 0
      %p194 = por %p192, %p193
      %s195 = ssub.s32 %s109, %s116
      %p196 = scmp.eq.s32.totalorder %s195, 0
      %s198 = sadd.s32 %s197, 1
      %s199 = scalar_select %p196, %s197, %s198
      %p202 = pneg %p196
      %p203 = scmp.eq.s32.totalorder %s109, 1
      %p204 = por %p202, %p203
      %p205 = scmp.ne.s32.totalorder %s197, %s200
      %p206 = scmp.eq.s32.totalorder %s109, 0
      %p207 = por %p205, %p206
      %p208 = scmp.ne.s32.totalorder %s197, %s200
      %p209 = scmp.eq.s32.totalorder %s114, 1
      %p210 = por %p208, %p209
      %p211 = scmp.ne.s32.totalorder %s200, %s201
      %p212 = scmp.eq.s32.totalorder %s114, 0
      %p213 = por %p211, %p212
      %p214 = scmp.ne.s32.totalorder %s200, %s201
      %p215 = scmp.eq.s32.totalorder %s115, 1
      %p216 = por %p214, %p215
      %p218 = scmp.ne.s32.totalorder %s201, %s217
      %p219 = scmp.eq.s32.totalorder %s115, 0
      %p220 = por %p218, %p219
      %s221 = ssub.s32 %s109, %s116
      %p222 = scmp.eq.s32.totalorder %s221, 0
      %s224 = sadd.s32 %s223, 1
      %s225 = scalar_select %p222, %s223, %s224
      %p228 = pneg %p222
      %p229 = scmp.eq.s32.totalorder %s109, 1
      %p230 = por %p228, %p229
      %p231 = scmp.ne.s32.totalorder %s223, %s226
      %p232 = scmp.eq.s32.totalorder %s109, 0
      %p233 = por %p231, %p232
      %p234 = scmp.ne.s32.totalorder %s223, %s226
      %p235 = scmp.eq.s32.totalorder %s114, 1
      %p236 = por %p234, %p235
      %p237 = scmp.ne.s32.totalorder %s226, %s227
      %p238 = scmp.eq.s32.totalorder %s114, 0
      %p239 = por %p237, %p238
      %p240 = scmp.ne.s32.totalorder %s226, %s227
      %p241 = scmp.eq.s32.totalorder %s115, 1
      %p242 = por %p240, %p241
      %p244 = scmp.ne.s32.totalorder %s227, %s243
      %p245 = scmp.eq.s32.totalorder %s115, 0
      %p246 = por %p244, %p245
      %s248 = sadd.s32 %s247, 1
      %p251 = scmp.eq.s32.totalorder %s109, 1
      %p252 = scmp.ne.s32.totalorder %s247, %s249
      %p253 = scmp.eq.s32.totalorder %s109, 0
      %p254 = por %p252, %p253
      %p255 = scmp.ne.s32.totalorder %s247, %s249
      %p256 = scmp.eq.s32.totalorder %s114, 1
      %p257 = por %p255, %p256
      %p258 = scmp.ne.s32.totalorder %s249, %s250
      %p259 = scmp.eq.s32.totalorder %s114, 0
      %p260 = por %p258, %p259
      %p261 = scmp.ne.s32.totalorder %s249, %s250
      %p262 = scmp.eq.s32.totalorder %s115, 1
      %p263 = por %p261, %p262
      %p265 = scmp.ne.s32.totalorder %s250, %s264
      %p266 = scmp.eq.s32.totalorder %s115, 0
      %p267 = por %p265, %p266
      %s269 = sadd.s32 %s268, 1
      %p272 = scmp.eq.s32.totalorder %s109, 1
      %p273 = scmp.ne.s32.totalorder %s268, %s270
      %p274 = scmp.eq.s32.totalorder %s109, 0
      %p275 = por %p273, %p274
      %p276 = scmp.ne.s32.totalorder %s268, %s270
      %p277 = scmp.eq.s32.totalorder %s114, 1
      %p278 = por %p276, %p277
      %p279 = scmp.ne.s32.totalorder %s270, %s271
      %p280 = scmp.eq.s32.totalorder %s114, 0
      %p281 = por %p279, %p280
      %p282 = scmp.ne.s32.totalorder %s270, %s271
      %p283 = scmp.eq.s32.totalorder %s115, 1
      %p284 = por %p282, %p283
      %p286 = scmp.ne.s32.totalorder %s271, %s285
      %p287 = scmp.eq.s32.totalorder %s115, 0
      %p288 = por %p286, %p287
      %s290 = sadd.s32 %s289, 1
      %p293 = scmp.eq.s32.totalorder %s109, 1
      %p294 = scmp.ne.s32.totalorder %s289, %s291
      %p295 = scmp.eq.s32.totalorder %s109, 0
      %p296 = por %p294, %p295
      %p297 = scmp.ne.s32.totalorder %s289, %s291
      %p298 = scmp.eq.s32.totalorder %s114, 1
      %p299 = por %p297, %p298
      %p300 = scmp.ne.s32.totalorder %s291, %s292
      %p301 = scmp.eq.s32.totalorder %s114, 0
      %p302 = por %p300, %p301
      %p303 = scmp.ne.s32.totalorder %s291, %s292
      %p304 = scmp.eq.s32.totalorder %s115, 1
      %p305 = por %p303, %p304
      %p307 = scmp.ne.s32.totalorder %s292, %s306
      %p308 = scmp.eq.s32.totalorder %s115, 0
      %p309 = por %p307, %p308
      %s311 = sadd.s32 %s310, 1
      %p314 = scmp.eq.s32.totalorder %s109, 1
      %p315 = scmp.ne.s32.totalorder %s310, %s312
      %p316 = scmp.eq.s32.totalorder %s109, 0
      %p317 = por %p315, %p316
      %p318 = scmp.ne.s32.totalorder %s310, %s312
      %p319 = scmp.eq.s32.totalorder %s114, 1
      %p320 = por %p318, %p319
      %p321 = scmp.ne.s32.totalorder %s312, %s313
      %p322 = scmp.eq.s32.totalorder %s114, 0
      %p323 = por %p321, %p322
      %p324 = scmp.ne.s32.totalorder %s312, %s313
      %p325 = scmp.eq.s32.totalorder %s115, 1
      %p326 = por %p324, %p325
      %p328 = scmp.ne.s32.totalorder %s313, %s327
      %p329 = scmp.eq.s32.totalorder %s115, 0
      %p330 = por %p328, %p329
      %s332 = sadd.s32 %s331, 1
      %p335 = scmp.eq.s32.totalorder %s109, 1
      %p336 = scmp.ne.s32.totalorder %s331, %s333
      %p337 = scmp.eq.s32.totalorder %s109, 0
      %p338 = por %p336, %p337
      %p339 = scmp.ne.s32.totalorder %s331, %s333
      %p340 = scmp.eq.s32.totalorder %s114, 1
      %p341 = por %p339, %p340
      %p342 = scmp.ne.s32.totalorder %s333, %s334
      %p343 = scmp.eq.s32.totalorder %s114, 0
      %p344 = por %p342, %p343
      %p345 = scmp.ne.s32.totalorder %s333, %s334
      %p346 = scmp.eq.s32.totalorder %s115, 1
      %p347 = por %p345, %p346
      %p349 = scmp.ne.s32.totalorder %s334, %s348
      %p350 = scmp.eq.s32.totalorder %s115, 0
      %p351 = por %p349, %p350
      %s353 = sadd.s32 %s352, 1
      %p356 = scmp.eq.s32.totalorder %s109, 1
      %p357 = scmp.ne.s32.totalorder %s352, %s354
      %p358 = scmp.eq.s32.totalorder %s109, 0
      %p359 = por %p357, %p358
      %p360 = scmp.ne.s32.totalorder %s352, %s354
      %p361 = scmp.eq.s32.totalorder %s114, 1
      %p362 = por %p360, %p361
      %p363 = scmp.ne.s32.totalorder %s354, %s355
      %p364 = scmp.eq.s32.totalorder %s114, 0
      %p365 = por %p363, %p364
      %p366 = scmp.ne.s32.totalorder %s354, %s355
      %p367 = scmp.eq.s32.totalorder %s115, 1
      %p368 = por %p366, %p367
      %p370 = scmp.ne.s32.totalorder %s355, %s369
      %p371 = scmp.eq.s32.totalorder %s115, 0
      %p372 = por %p370, %p371
      %s374 = sadd.s32 %s373, 1
      %p377 = scmp.eq.s32.totalorder %s109, 1
      %p378 = scmp.ne.s32.totalorder %s373, %s375
      %p379 = scmp.eq.s32.totalorder %s109, 0
      %p380 = por %p378, %p379
      %p381 = scmp.ne.s32.totalorder %s373, %s375
      %p382 = scmp.eq.s32.totalorder %s114, 1
      %p383 = por %p381, %p382
      %p384 = scmp.ne.s32.totalorder %s375, %s376
      %p385 = scmp.eq.s32.totalorder %s114, 0
      %p386 = por %p384, %p385
      %p387 = scmp.ne.s32.totalorder %s375, %s376
      %p388 = scmp.eq.s32.totalorder %s115, 1
      %p389 = por %p387, %p388
      %p391 = scmp.ne.s32.totalorder %s376, %s390
      %p392 = scmp.eq.s32.totalorder %s115, 0
      %p393 = por %p391, %p392
      %s395 = sadd.s32 %s394, 1
      %p398 = scmp.eq.s32.totalorder %s109, 1
      %p399 = scmp.ne.s32.totalorder %s394, %s396
      %p400 = scmp.eq.s32.totalorder %s109, 0
      %p401 = por %p399, %p400
      %p402 = scmp.ne.s32.totalorder %s394, %s396
      %p403 = scmp.eq.s32.totalorder %s114, 1
      %p404 = por %p402, %p403
      %p405 = scmp.ne.s32.totalorder %s396, %s397
      %p406 = scmp.eq.s32.totalorder %s114, 0
      %p407 = por %p405, %p406
      %p408 = scmp.ne.s32.totalorder %s396, %s397
      %p409 = scmp.eq.s32.totalorder %s115, 1
      %p410 = por %p408, %p409
      %p412 = scmp.ne.s32.totalorder %s397, %s411
      %p413 = scmp.eq.s32.totalorder %s115, 0
      %p414 = por %p412, %p413
      %s416 = sadd.s32 %s415, 1
      %p419 = scmp.eq.s32.totalorder %s109, 1
      %p420 = scmp.ne.s32.totalorder %s415, %s417
      %p421 = scmp.eq.s32.totalorder %s109, 0
      %p422 = por %p420, %p421
      %p423 = scmp.ne.s32.totalorder %s415, %s417
      %p424 = scmp.eq.s32.totalorder %s114, 1
      %p425 = por %p423, %p424
      %p426 = scmp.ne.s32.totalorder %s417, %s418
      %p427 = scmp.eq.s32.totalorder %s114, 0
      %p428 = por %p426, %p427
      %p429 = scmp.ne.s32.totalorder %s417, %s418
      %p430 = scmp.eq.s32.totalorder %s115, 1
      %p431 = por %p429, %p430
      %p433 = scmp.ne.s32.totalorder %s418, %s432
      %p434 = scmp.eq.s32.totalorder %s115, 0
      %p435 = por %p433, %p434
      %s437 = sadd.s32 %s436, 1
      %p440 = scmp.eq.s32.totalorder %s109, 1
      %p441 = scmp.ne.s32.totalorder %s436, %s438
      %p442 = scmp.eq.s32.totalorder %s109, 0
      %p443 = por %p441, %p442
      %p444 = scmp.ne.s32.totalorder %s436, %s438
      %p445 = scmp.eq.s32.totalorder %s114, 1
      %p446 = por %p444, %p445
      %p447 = scmp.ne.s32.totalorder %s438, %s439
      %p448 = scmp.eq.s32.totalorder %s114, 0
      %p449 = por %p447, %p448
      %p450 = scmp.ne.s32.totalorder %s438, %s439
      %p451 = scmp.eq.s32.totalorder %s115, 1
      %p452 = por %p450, %p451
      %p454 = scmp.ne.s32.totalorder %s439, %s453
      %p455 = scmp.eq.s32.totalorder %s115, 0
      %p456 = por %p454, %p455
      %s458 = sadd.s32 %s457, 1
      %p461 = scmp.eq.s32.totalorder %s109, 1
      %p462 = scmp.ne.s32.totalorder %s457, %s459
      %p463 = scmp.eq.s32.totalorder %s109, 0
      %p464 = por %p462, %p463
      %p465 = scmp.ne.s32.totalorder %s457, %s459
      %p466 = scmp.eq.s32.totalorder %s114, 1
      %p467 = por %p465, %p466
      %p468 = scmp.ne.s32.totalorder %s459, %s460
      %p469 = scmp.eq.s32.totalorder %s114, 0
      %p470 = por %p468, %p469
      %p471 = scmp.ne.s32.totalorder %s459, %s460
      %p472 = scmp.eq.s32.totalorder %s115, 1
      %p473 = por %p471, %p472
      %p475 = scmp.ne.s32.totalorder %s460, %s474
      %p476 = scmp.eq.s32.totalorder %s115, 0
      %p477 = por %p475, %p476
      %s479 = sadd.s32 %s478, 1
      %p482 = scmp.eq.s32.totalorder %s109, 1
      %p483 = scmp.ne.s32.totalorder %s478, %s480
      %p484 = scmp.eq.s32.totalorder %s109, 0
      %p485 = por %p483, %p484
      %p486 = scmp.ne.s32.totalorder %s478, %s480
      %p487 = scmp.eq.s32.totalorder %s114, 1
      %p488 = por %p486, %p487
      %p489 = scmp.ne.s32.totalorder %s480, %s481
      %p490 = scmp.eq.s32.totalorder %s114, 0
      %p491 = por %p489, %p490
      %p492 = scmp.ne.s32.totalorder %s480, %s481
      %p493 = scmp.eq.s32.totalorder %s115, 1
      %p494 = por %p492, %p493
      %p496 = scmp.ne.s32.totalorder %s481, %s495
      %p497 = scmp.eq.s32.totalorder %s115, 0
      %p498 = por %p496, %p497
      %s500 = sadd.s32 %s499, 1
      %p503 = scmp.eq.s32.totalorder %s109, 1
      %p504 = scmp.ne.s32.totalorder %s499, %s501
      %p505 = scmp.eq.s32.totalorder %s109, 0
      %p506 = por %p504, %p505
      %p507 = scmp.ne.s32.totalorder %s499, %s501
      %p508 = scmp.eq.s32.totalorder %s114, 1
      %p509 = por %p507, %p508
      %p510 = scmp.ne.s32.totalorder %s501, %s502
      %p511 = scmp.eq.s32.totalorder %s114, 0
      %p512 = por %p510, %p511
      %p513 = scmp.ne.s32.totalorder %s501, %s502
      %p514 = scmp.eq.s32.totalorder %s115, 1
      %p515 = por %p513, %p514
      %p517 = scmp.ne.s32.totalorder %s502, %s516
      %p518 = scmp.eq.s32.totalorder %s115, 0
      %p519 = por %p517, %p518
      %s521 = sadd.s32 %s520, 1
      %p524 = scmp.eq.s32.totalorder %s109, 1
      %p525 = scmp.ne.s32.totalorder %s520, %s522
      %p526 = scmp.eq.s32.totalorder %s109, 0
      %p527 = por %p525, %p526
      %p528 = scmp.ne.s32.totalorder %s520, %s522
      %p529 = scmp.eq.s32.totalorder %s114, 1
      %p530 = por %p528, %p529
      %p531 = scmp.ne.s32.totalorder %s522, %s523
      %p532 = scmp.eq.s32.totalorder %s114, 0
      %p533 = por %p531, %p532
      %p534 = scmp.ne.s32.totalorder %s522, %s523
      %p535 = scmp.eq.s32.totalorder %s115, 1
      %p536 = por %p534, %p535
      %p538 = scmp.ne.s32.totalorder %s523, %s537
      %p539 = scmp.eq.s32.totalorder %s115, 0
      %p540 = por %p538, %p539
      %s542 = sadd.s32 %s541, 1
      %p545 = scmp.eq.s32.totalorder %s109, 1
      %p546 = scmp.ne.s32.totalorder %s541, %s543
      %p547 = scmp.eq.s32.totalorder %s109, 0
      %p548 = por %p546, %p547
      %p549 = scmp.ne.s32.totalorder %s541, %s543
      %p550 = scmp.eq.s32.totalorder %s114, 1
      %p551 = por %p549, %p550
      %p552 = scmp.ne.s32.totalorder %s543, %s544
      %p553 = scmp.eq.s32.totalorder %s114, 0
      %p554 = por %p552, %p553
      %p555 = scmp.ne.s32.totalorder %s543, %s544
      %p556 = scmp.eq.s32.totalorder %s115, 1
      %p557 = por %p555, %p556
      %p559 = scmp.ne.s32.totalorder %s544, %s558
      %p560 = scmp.eq.s32.totalorder %s115, 0
      %p561 = por %p559, %p560
      %s563 = sadd.s32 %s562, 1
      %p566 = scmp.eq.s32.totalorder %s109, 1
      %p567 = scmp.ne.s32.totalorder %s562, %s564
      %p568 = scmp.eq.s32.totalorder %s109, 0
      %p569 = por %p567, %p568
      %p570 = scmp.ne.s32.totalorder %s562, %s564
      %p571 = scmp.eq.s32.totalorder %s114, 1
      %p572 = por %p570, %p571
      %p573 = scmp.ne.s32.totalorder %s564, %s565
      %p574 = scmp.eq.s32.totalorder %s114, 0
      %p575 = por %p573, %p574
      %p576 = scmp.ne.s32.totalorder %s564, %s565
      %p577 = scmp.eq.s32.totalorder %s115, 1
      %p578 = por %p576, %p577
      %p580 = scmp.ne.s32.totalorder %s565, %s579
      %p581 = scmp.eq.s32.totalorder %s115, 0
      %p582 = por %p580, %p581
      %s584 = sadd.s32 %s583, 1
      %p587 = scmp.eq.s32.totalorder %s109, 1
      %p588 = scmp.ne.s32.totalorder %s583, %s585
      %p589 = scmp.eq.s32.totalorder %s109, 0
      %p590 = por %p588, %p589
      %p591 = scmp.ne.s32.totalorder %s583, %s585
      %p592 = scmp.eq.s32.totalorder %s114, 1
      %p593 = por %p591, %p592
      %p594 = scmp.ne.s32.totalorder %s585, %s586
      %p595 = scmp.eq.s32.totalorder %s114, 0
      %p596 = por %p594, %p595
      %p597 = scmp.ne.s32.totalorder %s585, %s586
      %p598 = scmp.eq.s32.totalorder %s115, 1
      %p599 = por %p597, %p598
      %p601 = scmp.ne.s32.totalorder %s586, %s600
      %p602 = scmp.eq.s32.totalorder %s115, 0
      %p603 = por %p601, %p602
      %s605 = sadd.s32 %s604, 1
      %p608 = scmp.eq.s32.totalorder %s109, 1
      %p609 = scmp.ne.s32.totalorder %s604, %s606
      %p610 = scmp.eq.s32.totalorder %s109, 0
      %p611 = por %p609, %p610
      %p612 = scmp.ne.s32.totalorder %s604, %s606
      %p613 = scmp.eq.s32.totalorder %s114, 1
      %p614 = por %p612, %p613
      %p615 = scmp.ne.s32.totalorder %s606, %s607
      %p616 = scmp.eq.s32.totalorder %s114, 0
      %p617 = por %p615, %p616
      %p618 = scmp.ne.s32.totalorder %s606, %s607
      %p619 = scmp.eq.s32.totalorder %s115, 1
      %p620 = por %p618, %p619
      %p622 = scmp.ne.s32.totalorder %s607, %s621
      %p623 = scmp.eq.s32.totalorder %s115, 0
      %p624 = por %p622, %p623
      %s626 = sadd.s32 %s625, 1
      %p629 = scmp.eq.s32.totalorder %s109, 1
      %p630 = scmp.ne.s32.totalorder %s625, %s627
      %p631 = scmp.eq.s32.totalorder %s109, 0
      %p632 = por %p630, %p631
      %p633 = scmp.ne.s32.totalorder %s625, %s627
      %p634 = scmp.eq.s32.totalorder %s114, 1
      %p635 = por %p633, %p634
      %p636 = scmp.ne.s32.totalorder %s627, %s628
      %p637 = scmp.eq.s32.totalorder %s114, 0
      %p638 = por %p636, %p637
      %p639 = scmp.ne.s32.totalorder %s627, %s628
      %p640 = scmp.eq.s32.totalorder %s115, 1
      %p641 = por %p639, %p640
      %p643 = scmp.ne.s32.totalorder %s628, %s642
      %p644 = scmp.eq.s32.totalorder %s115, 0
      %p645 = por %p643, %p644
      %s647 = sadd.s32 %s646, 1
      %p650 = scmp.eq.s32.totalorder %s109, 1
      %p651 = scmp.ne.s32.totalorder %s646, %s648
      %p652 = scmp.eq.s32.totalorder %s109, 0
      %p653 = por %p651, %p652
      %p654 = scmp.ne.s32.totalorder %s646, %s648
      %p655 = scmp.eq.s32.totalorder %s114, 1
      %p656 = por %p654, %p655
      %p657 = scmp.ne.s32.totalorder %s648, %s649
      %p658 = scmp.eq.s32.totalorder %s114, 0
      %p659 = por %p657, %p658
      %p660 = scmp.ne.s32.totalorder %s648, %s649
      %p661 = scmp.eq.s32.totalorder %s115, 1
      %p662 = por %p660, %p661
      %p664 = scmp.ne.s32.totalorder %s649, %s663
      %p665 = scmp.eq.s32.totalorder %s115, 0
      %p666 = por %p664, %p665
      %s668 = sadd.s32 %s667, 1
      %p671 = scmp.eq.s32.totalorder %s109, 1
      %p672 = scmp.ne.s32.totalorder %s667, %s669
      %p673 = scmp.eq.s32.totalorder %s109, 0
      %p674 = por %p672, %p673
      %p675 = scmp.ne.s32.totalorder %s667, %s669
      %p676 = scmp.eq.s32.totalorder %s114, 1
      %p677 = por %p675, %p676
      %p678 = scmp.ne.s32.totalorder %s669, %s670
      %p679 = scmp.eq.s32.totalorder %s114, 0
      %p680 = por %p678, %p679
      %p681 = scmp.ne.s32.totalorder %s669, %s670
      %p682 = scmp.eq.s32.totalorder %s115, 1
      %p683 = por %p681, %p682
      %p685 = scmp.ne.s32.totalorder %s670, %s684
      %p686 = scmp.eq.s32.totalorder %s115, 0
      %p687 = por %p685, %p686
      %s689 = sadd.s32 %s688, 1
      %p692 = scmp.eq.s32.totalorder %s109, 1
      %p693 = scmp.ne.s32.totalorder %s688, %s690
      %p694 = scmp.eq.s32.totalorder %s109, 0
      %p695 = por %p693, %p694
      %p696 = scmp.ne.s32.totalorder %s688, %s690
      %p697 = scmp.eq.s32.totalorder %s114, 1
      %p698 = por %p696, %p697
      %p699 = scmp.ne.s32.totalorder %s690, %s691
      %p700 = scmp.eq.s32.totalorder %s114, 0
      %p701 = por %p699, %p700
      %p702 = scmp.ne.s32.totalorder %s690, %s691
      %p703 = scmp.eq.s32.totalorder %s115, 1
      %p704 = por %p702, %p703
      %p706 = scmp.ne.s32.totalorder %s691, %s705
      %p707 = scmp.eq.s32.totalorder %s115, 0
      %p708 = por %p706, %p707
      %s710 = sadd.s32 %s709, 1
      %p713 = scmp.eq.s32.totalorder %s109, 1
      %p714 = scmp.ne.s32.totalorder %s709, %s711
      %p715 = scmp.eq.s32.totalorder %s109, 0
      %p716 = por %p714, %p715
      %p717 = scmp.ne.s32.totalorder %s709, %s711
      %p718 = scmp.eq.s32.totalorder %s114, 1
      %p719 = por %p717, %p718
      %p720 = scmp.ne.s32.totalorder %s711, %s712
      %p721 = scmp.eq.s32.totalorder %s114, 0
      %p722 = por %p720, %p721
      %p723 = scmp.ne.s32.totalorder %s711, %s712
      %p724 = scmp.eq.s32.totalorder %s115, 1
      %p725 = por %p723, %p724
      %p727 = scmp.ne.s32.totalorder %s712, %s726
      %p728 = scmp.eq.s32.totalorder %s115, 0
      %p729 = por %p727, %p728
      %s731 = sadd.s32 %s730, 1
      %p734 = scmp.eq.s32.totalorder %s109, 1
      %p735 = scmp.ne.s32.totalorder %s730, %s732
      %p736 = scmp.eq.s32.totalorder %s109, 0
      %p737 = por %p735, %p736
      %p738 = scmp.ne.s32.totalorder %s730, %s732
      %p739 = scmp.eq.s32.totalorder %s114, 1
      %p740 = por %p738, %p739
      %p741 = scmp.ne.s32.totalorder %s732, %s733
      %p742 = scmp.eq.s32.totalorder %s114, 0
      %p743 = por %p741, %p742
      %p744 = scmp.ne.s32.totalorder %s732, %s733
      %p745 = scmp.eq.s32.totalorder %s115, 1
      %p746 = por %p744, %p745
      %p748 = scmp.ne.s32.totalorder %s733, %s747
      %p749 = scmp.eq.s32.totalorder %s115, 0
      %p750 = por %p748, %p749
      %s752 = sadd.s32 %s751, 1
      %p755 = scmp.eq.s32.totalorder %s109, 1
      %p756 = scmp.ne.s32.totalorder %s751, %s753
      %p757 = scmp.eq.s32.totalorder %s109, 0
      %p758 = por %p756, %p757
      %p759 = scmp.ne.s32.totalorder %s751, %s753
      %p760 = scmp.eq.s32.totalorder %s114, 1
      %p761 = por %p759, %p760
      %p762 = scmp.ne.s32.totalorder %s753, %s754
      %p763 = scmp.eq.s32.totalorder %s114, 0
      %p764 = por %p762, %p763
      %p765 = scmp.ne.s32.totalorder %s753, %s754
      %p766 = scmp.eq.s32.totalorder %s115, 1
      %p767 = por %p765, %p766
      %p769 = scmp.ne.s32.totalorder %s754, %s768
      %p770 = scmp.eq.s32.totalorder %s115, 0
      %p771 = por %p769, %p770
      %s773 = sadd.s32 %s772, 1
      %p776 = scmp.eq.s32.totalorder %s109, 1
      %p777 = scmp.ne.s32.totalorder %s772, %s774
      %p778 = scmp.eq.s32.totalorder %s109, 0
      %p779 = por %p777, %p778
      %p780 = scmp.ne.s32.totalorder %s772, %s774
      %p781 = scmp.eq.s32.totalorder %s114, 1
      %p782 = por %p780, %p781
      %p783 = scmp.ne.s32.totalorder %s774, %s775
      %p784 = scmp.eq.s32.totalorder %s114, 0
      %p785 = por %p783, %p784
      %p786 = scmp.ne.s32.totalorder %s774, %s775
      %p787 = scmp.eq.s32.totalorder %s115, 1
      %p788 = por %p786, %p787
      %p790 = scmp.ne.s32.totalorder %s775, %s789
      %p791 = scmp.eq.s32.totalorder %s115, 0
      %p792 = por %p790, %p791
      %s794 = sadd.s32 %s793, 1
      %p797 = scmp.eq.s32.totalorder %s109, 1
      %p798 = scmp.ne.s32.totalorder %s793, %s795
      %p799 = scmp.eq.s32.totalorder %s109, 0
      %p800 = por %p798, %p799
      %p801 = scmp.ne.s32.totalorder %s793, %s795
      %p802 = scmp.eq.s32.totalorder %s114, 1
      %p803 = por %p801, %p802
      %p804 = scmp.ne.s32.totalorder %s795, %s796
      %p805 = scmp.eq.s32.totalorder %s114, 0
      %p806 = por %p804, %p805
      %p807 = scmp.ne.s32.totalorder %s795, %s796
      %p808 = scmp.eq.s32.totalorder %s115, 1
      %p809 = por %p807, %p808
      %p811 = scmp.ne.s32.totalorder %s796, %s810
      %p812 = scmp.eq.s32.totalorder %s115, 0
      %p813 = por %p811, %p812
      %s815 = sadd.s32 %s814, 1
      %p818 = scmp.eq.s32.totalorder %s109, 1
      %p819 = scmp.ne.s32.totalorder %s814, %s816
      %p820 = scmp.eq.s32.totalorder %s109, 0
      %p821 = por %p819, %p820
      %p822 = scmp.ne.s32.totalorder %s814, %s816
      %p823 = scmp.eq.s32.totalorder %s114, 1
      %p824 = por %p822, %p823
      %p825 = scmp.ne.s32.totalorder %s816, %s817
      %p826 = scmp.eq.s32.totalorder %s114, 0
      %p827 = por %p825, %p826
      %p828 = scmp.ne.s32.totalorder %s816, %s817
      %p829 = scmp.eq.s32.totalorder %s115, 1
      %p830 = por %p828, %p829
      %p832 = scmp.ne.s32.totalorder %s817, %s831
      %p833 = scmp.eq.s32.totalorder %s115, 0
      %p834 = por %p832, %p833
      %s836 = sadd.s32 %s835, 1
      %p839 = scmp.eq.s32.totalorder %s109, 1
      %p840 = scmp.ne.s32.totalorder %s835, %s837
      %p841 = scmp.eq.s32.totalorder %s109, 0
      %p842 = por %p840, %p841
      %p843 = scmp.ne.s32.totalorder %s835, %s837
      %p844 = scmp.eq.s32.totalorder %s114, 1
      %p845 = por %p843, %p844
      %p846 = scmp.ne.s32.totalorder %s837, %s838
      %p847 = scmp.eq.s32.totalorder %s114, 0
      %p848 = por %p846, %p847
      %p849 = scmp.ne.s32.totalorder %s837, %s838
      %p850 = scmp.eq.s32.totalorder %s115, 1
      %p851 = por %p849, %p850
      %p853 = scmp.ne.s32.totalorder %s838, %s852
      %p854 = scmp.eq.s32.totalorder %s115, 0
      %p855 = por %p853, %p854
      %s857 = sadd.s32 %s856, 1
      %p860 = scmp.eq.s32.totalorder %s109, 1
      %p861 = scmp.ne.s32.totalorder %s856, %s858
      %p862 = scmp.eq.s32.totalorder %s109, 0
      %p863 = por %p861, %p862
      %p864 = scmp.ne.s32.totalorder %s856, %s858
      %p865 = scmp.eq.s32.totalorder %s114, 1
      %p866 = por %p864, %p865
      %p867 = scmp.ne.s32.totalorder %s858, %s859
      %p868 = scmp.eq.s32.totalorder %s114, 0
      %p869 = por %p867, %p868
      %p870 = scmp.ne.s32.totalorder %s858, %s859
      %p871 = scmp.eq.s32.totalorder %s115, 1
      %p872 = por %p870, %p871
      %p874 = scmp.ne.s32.totalorder %s859, %s873
      %p875 = scmp.eq.s32.totalorder %s115, 0
      %p876 = por %p874, %p875
      %s878 = sadd.s32 %s877, 1
      %p881 = scmp.eq.s32.totalorder %s109, 1
      %p882 = scmp.ne.s32.totalorder %s877, %s879
      %p883 = scmp.eq.s32.totalorder %s109, 0
      %p884 = por %p882, %p883
      %p885 = scmp.ne.s32.totalorder %s877, %s879
      %p886 = scmp.eq.s32.totalorder %s114, 1
      %p887 = por %p885, %p886
      %p888 = scmp.ne.s32.totalorder %s879, %s880
      %p889 = scmp.eq.s32.totalorder %s114, 0
      %p890 = por %p888, %p889
      %p891 = scmp.ne.s32.totalorder %s879, %s880
      %p892 = scmp.eq.s32.totalorder %s115, 1
      %p893 = por %p891, %p892
      %p895 = scmp.ne.s32.totalorder %s880, %s894
      %p896 = scmp.eq.s32.totalorder %s115, 0
      %p897 = por %p895, %p896
      %s899 = sadd.s32 %s898, 1
      %p902 = scmp.eq.s32.totalorder %s109, 1
      %p903 = scmp.ne.s32.totalorder %s898, %s900
      %p904 = scmp.eq.s32.totalorder %s109, 0
      %p905 = por %p903, %p904
      %p906 = scmp.ne.s32.totalorder %s898, %s900
      %p907 = scmp.eq.s32.totalorder %s114, 1
      %p908 = por %p906, %p907
      %p909 = scmp.ne.s32.totalorder %s900, %s901
      %p910 = scmp.eq.s32.totalorder %s114, 0
      %p911 = por %p909, %p910
      %p912 = scmp.ne.s32.totalorder %s900, %s901
      %p913 = scmp.eq.s32.totalorder %s115, 1
      %p914 = por %p912, %p913
      %p916 = scmp.ne.s32.totalorder %s901, %s915
      %p917 = scmp.eq.s32.totalorder %s115, 0
      %p918 = por %p916, %p917
      %s920 = sadd.s32 %s919, 1
      %p923 = scmp.eq.s32.totalorder %s109, 1
      %p924 = scmp.ne.s32.totalorder %s919, %s921
      %p925 = scmp.eq.s32.totalorder %s109, 0
      %p926 = por %p924, %p925
      %p927 = scmp.ne.s32.totalorder %s919, %s921
      %p928 = scmp.eq.s32.totalorder %s114, 1
      %p929 = por %p927, %p928
      %p930 = scmp.ne.s32.totalorder %s921, %s922
      %p931 = scmp.eq.s32.totalorder %s114, 0
      %p932 = por %p930, %p931
      %p933 = scmp.ne.s32.totalorder %s921, %s922
      %p934 = scmp.eq.s32.totalorder %s115, 1
      %p935 = por %p933, %p934
      %p937 = scmp.ne.s32.totalorder %s922, %s936
      %p938 = scmp.eq.s32.totalorder %s115, 0
      %p939 = por %p937, %p938
      %s941 = sadd.s32 %s940, 1
      %p944 = scmp.eq.s32.totalorder %s109, 1
      %p945 = scmp.ne.s32.totalorder %s940, %s942
      %p946 = scmp.eq.s32.totalorder %s109, 0
      %p947 = por %p945, %p946
      %p948 = scmp.ne.s32.totalorder %s940, %s942
      %p949 = scmp.eq.s32.totalorder %s114, 1
      %p950 = por %p948, %p949
      %p951 = scmp.ne.s32.totalorder %s942, %s943
      %p952 = scmp.eq.s32.totalorder %s114, 0
      %p953 = por %p951, %p952
      %p954 = scmp.ne.s32.totalorder %s942, %s943
      %p955 = scmp.eq.s32.totalorder %s115, 1
      %p956 = por %p954, %p955
      %p958 = scmp.ne.s32.totalorder %s943, %s957
      %p959 = scmp.eq.s32.totalorder %s115, 0
      %p960 = por %p958, %p959
      %s962 = sadd.s32 %s961, 1
      %p965 = scmp.eq.s32.totalorder %s109, 1
      %p966 = scmp.ne.s32.totalorder %s961, %s963
      %p967 = scmp.eq.s32.totalorder %s109, 0
      %p968 = por %p966, %p967
      %p969 = scmp.ne.s32.totalorder %s961, %s963
      %p970 = scmp.eq.s32.totalorder %s114, 1
      %p971 = por %p969, %p970
      %p972 = scmp.ne.s32.totalorder %s963, %s964
      %p973 = scmp.eq.s32.totalorder %s114, 0
      %p974 = por %p972, %p973
      %p975 = scmp.ne.s32.totalorder %s963, %s964
      %p976 = scmp.eq.s32.totalorder %s115, 1
      %p977 = por %p975, %p976
      %p979 = scmp.ne.s32.totalorder %s964, %s978
      %p980 = scmp.eq.s32.totalorder %s115, 0
      %p981 = por %p979, %p980
      %s983 = sadd.s32 %s982, 1
      %p986 = scmp.eq.s32.totalorder %s109, 1
      %p987 = scmp.ne.s32.totalorder %s982, %s984
      %p988 = scmp.eq.s32.totalorder %s109, 0
      %p989 = por %p987, %p988
      %p990 = scmp.ne.s32.totalorder %s982, %s984
      %p991 = scmp.eq.s32.totalorder %s114, 1
      %p992 = por %p990, %p991
      %p993 = scmp.ne.s32.totalorder %s984, %s985
      %p994 = scmp.eq.s32.totalorder %s114, 0
      %p995 = por %p993, %p994
      %p996 = scmp.ne.s32.totalorder %s984, %s985
      %p997 = scmp.eq.s32.totalorder %s115, 1
      %p998 = por %p996, %p997
      %p1000 = scmp.ne.s32.totalorder %s985, %s999
      %p1001 = scmp.eq.s32.totalorder %s115, 0
      %p1002 = por %p1000, %p1001
      %s1003 = ssub.s32 %s109, %s116
      %p1004 = scmp.eq.s32.totalorder %s1003, 0
      %s1006 = sadd.s32 %s1005, 1
      %s1007 = scalar_select %p1004, %s1005, %s1006
      %p1010 = pneg %p1004
      %p1011 = scmp.eq.s32.totalorder %s109, 1
      %p1012 = por %p1010, %p1011
      %p1013 = scmp.ne.s32.totalorder %s1005, %s1008
      %p1014 = scmp.eq.s32.totalorder %s109, 0
      %p1015 = por %p1013, %p1014
      %p1016 = scmp.ne.s32.totalorder %s1005, %s1008
      %p1017 = scmp.eq.s32.totalorder %s114, 1
      %p1018 = por %p1016, %p1017
      %p1019 = scmp.ne.s32.totalorder %s1008, %s1009
      %p1020 = scmp.eq.s32.totalorder %s114, 0
      %p1021 = por %p1019, %p1020
      %p1022 = scmp.ne.s32.totalorder %s1008, %s1009
      %p1023 = scmp.eq.s32.totalorder %s115, 1
      %p1024 = por %p1022, %p1023
      %p1026 = scmp.ne.s32.totalorder %s1009, %s1025
      %p1027 = scmp.eq.s32.totalorder %s115, 0
      %p1028 = por %p1026, %p1027
      %s1029 = ssub.s32 %s109, %s116
      %p1030 = scmp.eq.s32.totalorder %s1029, 0
      %s1032 = sadd.s32 %s1031, 1
      %s1033 = scalar_select %p1030, %s1031, %s1032
      %p1036 = pneg %p1030
      %p1037 = scmp.eq.s32.totalorder %s109, 1
      %p1038 = por %p1036, %p1037
      %p1039 = scmp.ne.s32.totalorder %s1031, %s1034
      %p1040 = scmp.eq.s32.totalorder %s109, 0
      %p1041 = por %p1039, %p1040
      %p1042 = scmp.ne.s32.totalorder %s1031, %s1034
      %p1043 = scmp.eq.s32.totalorder %s114, 1
      %p1044 = por %p1042, %p1043
      %p1045 = scmp.ne.s32.totalorder %s1034, %s1035
      %p1046 = scmp.eq.s32.totalorder %s114, 0
      %p1047 = por %p1045, %p1046
      %p1048 = scmp.ne.s32.totalorder %s1034, %s1035
      %p1049 = scmp.eq.s32.totalorder %s115, 1
      %p1050 = por %p1048, %p1049
      %p1052 = scmp.ne.s32.totalorder %s1035, %s1051
      %p1053 = scmp.eq.s32.totalorder %s115, 0
      %p1054 = por %p1052, %p1053
      %s1055 = ssub.s32 %s109, %s116
      %p1056 = scmp.eq.s32.totalorder %s1055, 0
      %s1058 = sadd.s32 %s1057, 1
      %s1059 = scalar_select %p1056, %s1057, %s1058
      %p1062 = pneg %p1056
      %p1063 = scmp.eq.s32.totalorder %s109, 1
      %p1064 = por %p1062, %p1063
      %p1065 = scmp.ne.s32.totalorder %s1057, %s1060
      %p1066 = scmp.eq.s32.totalorder %s109, 0
      %p1067 = por %p1065, %p1066
      %p1068 = scmp.ne.s32.totalorder %s1057, %s1060
      %p1069 = scmp.eq.s32.totalorder %s114, 1
      %p1070 = por %p1068, %p1069
      %p1071 = scmp.ne.s32.totalorder %s1060, %s1061
      %p1072 = scmp.eq.s32.totalorder %s114, 0
      %p1073 = por %p1071, %p1072
      %p1074 = scmp.ne.s32.totalorder %s1060, %s1061
      %p1075 = scmp.eq.s32.totalorder %s115, 1
      %p1076 = por %p1074, %p1075
      %p1078 = scmp.ne.s32.totalorder %s1061, %s1077
      %p1079 = scmp.eq.s32.totalorder %s115, 0
      %p1080 = por %p1078, %p1079
      %s1081 = ssub.s32 %s109, %s116
      %p1082 = scmp.eq.s32.totalorder %s1081, 0
      %s1084 = sadd.s32 %s1083, 1
      %s1085 = scalar_select %p1082, %s1083, %s1084
      %p1088 = pneg %p1082
      %p1089 = scmp.eq.s32.totalorder %s109, 1
      %p1090 = por %p1088, %p1089
      %p1091 = scmp.ne.s32.totalorder %s1083, %s1086
      %p1092 = scmp.eq.s32.totalorder %s109, 0
      %p1093 = por %p1091, %p1092
      %p1094 = scmp.ne.s32.totalorder %s1083, %s1086
      %p1095 = scmp.eq.s32.totalorder %s114, 1
      %p1096 = por %p1094, %p1095
      %p1097 = scmp.ne.s32.totalorder %s1086, %s1087
      %p1098 = scmp.eq.s32.totalorder %s114, 0
      %p1099 = por %p1097, %p1098
      %p1100 = scmp.ne.s32.totalorder %s1086, %s1087
      %p1101 = scmp.eq.s32.totalorder %s115, 1
      %p1102 = por %p1100, %p1101
      %p1104 = scmp.ne.s32.totalorder %s1087, %s1103
      %p1105 = scmp.eq.s32.totalorder %s115, 0
      %p1106 = por %p1104, %p1105
      %s1107 = ssub.s32 %s109, %s116
      %p1108 = scmp.eq.s32.totalorder %s1107, 0
      %s1110 = sadd.s32 %s1109, 1
      %s1111 = scalar_select %p1108, %s1109, %s1110
      %p1114 = pneg %p1108
      %p1115 = scmp.eq.s32.totalorder %s109, 1
      %p1116 = por %p1114, %p1115
      %p1117 = scmp.ne.s32.totalorder %s1109, %s1112
      %p1118 = scmp.eq.s32.totalorder %s109, 0
      %p1119 = por %p1117, %p1118
      %p1120 = scmp.ne.s32.totalorder %s1109, %s1112
      %p1121 = scmp.eq.s32.totalorder %s114, 1
      %p1122 = por %p1120, %p1121
      %p1123 = scmp.ne.s32.totalorder %s1112, %s1113
      %p1124 = scmp.eq.s32.totalorder %s114, 0
      %p1125 = por %p1123, %p1124
      %p1126 = scmp.ne.s32.totalorder %s1112, %s1113
      %p1127 = scmp.eq.s32.totalorder %s115, 1
      %p1128 = por %p1126, %p1127
      %p1130 = scmp.ne.s32.totalorder %s1113, %s1129
      %p1131 = scmp.eq.s32.totalorder %s115, 0
      %p1132 = por %p1130, %p1131
      %p1133 = scmp.le.s32.totalorder 1, %s109
      %p1134 = scmp.lt.s32.totalorder %s109, 3
      %p1135 = pnand %p1133, %p1134
      %p1136 = pneg %p1135
      // Predicated region
      $region9: #{forward.1} parent=5 // pred_check
        _
      $region10: #{forward.1} parent=5 // pred_check_branch
        %1138 = sbr.rel (%p1135) target = $region12
      $region11: #{forward.1} parent=5 // pred_region
        %s1139 = ssub.s32 %s109, 1
        // Predicated region
        $region13: #{forward.1} parent=11 // pred_check
          %p1140 = pneg %p260
        $region14: #{forward.1} parent=11 // pred_check_branch
          %1142 = sbr.rel (%p1140) target = $region16
        $region15: #{forward.1} parent=11 // pred_region
          _
        $region16: #{forward.1} parent=11 // pred_fallthru
          _
        // Predicated region
        $region17: #{forward.1} parent=11 // pred_check
          %p1143 = pneg %p281
        $region18: #{forward.1} parent=11 // pred_check_branch
          %1145 = sbr.rel (%p1143) target = $region20
        $region19: #{forward.1} parent=11 // pred_region
          _
        $region20: #{forward.1} parent=11 // pred_fallthru
          _
        // Predicated region
        $region21: #{forward.1} parent=11 // pred_check
          %p1146 = pneg %p302
        $region22: #{forward.1} parent=11 // pred_check_branch
          %1148 = sbr.rel (%p1146) target = $region24
        $region23: #{forward.1} parent=11 // pred_region
          _
        $region24: #{forward.1} parent=11 // pred_fallthru
          _
        // Predicated region
        $region25: #{forward.1} parent=11 // pred_check
          %p1149 = pneg %p323
        $region26: #{forward.1} parent=11 // pred_check_branch
          %1151 = sbr.rel (%p1149) target = $region28
        $region27: #{forward.1} parent=11 // pred_region
          _
        $region28: #{forward.1} parent=11 // pred_fallthru
          _
        // Predicated region
        $region29: #{forward.1} parent=11 // pred_check
          %p1152 = pneg %p344
        $region30: #{forward.1} parent=11 // pred_check_branch
          %1154 = sbr.rel (%p1152) target = $region32
        $region31: #{forward.1} parent=11 // pred_region
          _
        $region32: #{forward.1} parent=11 // pred_fallthru
          _
        // Predicated region
        $region33: #{forward.1} parent=11 // pred_check
          %p1155 = pneg %p365
        $region34: #{forward.1} parent=11 // pred_check_branch
          %1157 = sbr.rel (%p1155) target = $region36
        $region35: #{forward.1} parent=11 // pred_region
          _
        $region36: #{forward.1} parent=11 // pred_fallthru
          _
        // Predicated region
        $region37: #{forward.1} parent=11 // pred_check
          %p1158 = pneg %p386
        $region38: #{forward.1} parent=11 // pred_check_branch
          %1160 = sbr.rel (%p1158) target = $region40
        $region39: #{forward.1} parent=11 // pred_region
          _
        $region40: #{forward.1} parent=11 // pred_fallthru
          _
        // Predicated region
        $region41: #{forward.1} parent=11 // pred_check
          %p1161 = pneg %p407
        $region42: #{forward.1} parent=11 // pred_check_branch
          %1163 = sbr.rel (%p1161) target = $region44
        $region43: #{forward.1} parent=11 // pred_region
          _
        $region44: #{forward.1} parent=11 // pred_fallthru
          _
        // Predicated region
        $region45: #{forward.1} parent=11 // pred_check
          %p1164 = pneg %p428
        $region46: #{forward.1} parent=11 // pred_check_branch
          %1166 = sbr.rel (%p1164) target = $region48
        $region47: #{forward.1} parent=11 // pred_region
          _
        $region48: #{forward.1} parent=11 // pred_fallthru
          _
        // Predicated region
        $region49: #{forward.1} parent=11 // pred_check
          %p1167 = pneg %p449
        $region50: #{forward.1} parent=11 // pred_check_branch
          %1169 = sbr.rel (%p1167) target = $region52
        $region51: #{forward.1} parent=11 // pred_region
          _
        $region52: #{forward.1} parent=11 // pred_fallthru
          _
        // Predicated region
        $region53: #{forward.1} parent=11 // pred_check
          %p1170 = pneg %p470
        $region54: #{forward.1} parent=11 // pred_check_branch
          %1172 = sbr.rel (%p1170) target = $region56
        $region55: #{forward.1} parent=11 // pred_region
          _
        $region56: #{forward.1} parent=11 // pred_fallthru
          _
        // Predicated region
        $region57: #{forward.1} parent=11 // pred_check
          %p1173 = pneg %p491
        $region58: #{forward.1} parent=11 // pred_check_branch
          %1175 = sbr.rel (%p1173) target = $region60
        $region59: #{forward.1} parent=11 // pred_region
          _
        $region60: #{forward.1} parent=11 // pred_fallthru
          _
        // Predicated region
        $region61: #{forward.1} parent=11 // pred_check
          %p1176 = pneg %p512
        $region62: #{forward.1} parent=11 // pred_check_branch
          %1178 = sbr.rel (%p1176) target = $region64
        $region63: #{forward.1} parent=11 // pred_region
          _
        $region64: #{forward.1} parent=11 // pred_fallthru
          _
        // Predicated region
        $region65: #{forward.1} parent=11 // pred_check
          %p1179 = pneg %p533
        $region66: #{forward.1} parent=11 // pred_check_branch
          %1181 = sbr.rel (%p1179) target = $region68
        $region67: #{forward.1} parent=11 // pred_region
          _
        $region68: #{forward.1} parent=11 // pred_fallthru
          _
        // Predicated region
        $region69: #{forward.1} parent=11 // pred_check
          %p1182 = pneg %p554
        $region70: #{forward.1} parent=11 // pred_check_branch
          %1184 = sbr.rel (%p1182) target = $region72
        $region71: #{forward.1} parent=11 // pred_region
          _
        $region72: #{forward.1} parent=11 // pred_fallthru
          _
        // Predicated region
        $region73: #{forward.1} parent=11 // pred_check
          %p1185 = pneg %p575
        $region74: #{forward.1} parent=11 // pred_check_branch
          %1187 = sbr.rel (%p1185) target = $region76
        $region75: #{forward.1} parent=11 // pred_region
          _
        $region76: #{forward.1} parent=11 // pred_fallthru
          _
        // Predicated region
        $region77: #{forward.1} parent=11 // pred_check
          %p1188 = pneg %p596
        $region78: #{forward.1} parent=11 // pred_check_branch
          %1190 = sbr.rel (%p1188) target = $region80
        $region79: #{forward.1} parent=11 // pred_region
          _
        $region80: #{forward.1} parent=11 // pred_fallthru
          _
        // Predicated region
        $region81: #{forward.1} parent=11 // pred_check
          %p1191 = pneg %p617
        $region82: #{forward.1} parent=11 // pred_check_branch
          %1193 = sbr.rel (%p1191) target = $region84
        $region83: #{forward.1} parent=11 // pred_region
          _
        $region84: #{forward.1} parent=11 // pred_fallthru
          _
        // Predicated region
        $region85: #{forward.1} parent=11 // pred_check
          %p1194 = pneg %p638
        $region86: #{forward.1} parent=11 // pred_check_branch
          %1196 = sbr.rel (%p1194) target = $region88
        $region87: #{forward.1} parent=11 // pred_region
          _
        $region88: #{forward.1} parent=11 // pred_fallthru
          _
        // Predicated region
        $region89: #{forward.1} parent=11 // pred_check
          %p1197 = pneg %p659
        $region90: #{forward.1} parent=11 // pred_check_branch
          %1199 = sbr.rel (%p1197) target = $region92
        $region91: #{forward.1} parent=11 // pred_region
          _
        $region92: #{forward.1} parent=11 // pred_fallthru
          _
        // Predicated region
        $region93: #{forward.1} parent=11 // pred_check
          %p1200 = pneg %p680
        $region94: #{forward.1} parent=11 // pred_check_branch
          %1202 = sbr.rel (%p1200) target = $region96
        $region95: #{forward.1} parent=11 // pred_region
          _
        $region96: #{forward.1} parent=11 // pred_fallthru
          _
        // Predicated region
        $region97: #{forward.1} parent=11 // pred_check
          %p1203 = pneg %p701
        $region98: #{forward.1} parent=11 // pred_check_branch
          %1205 = sbr.rel (%p1203) target = $region100
        $region99: #{forward.1} parent=11 // pred_region
          _
        $region100: #{forward.1} parent=11 // pred_fallthru
          _
        // Predicated region
        $region101: #{forward.1} parent=11 // pred_check
          %p1206 = pneg %p722
        $region102: #{forward.1} parent=11 // pred_check_branch
          %1208 = sbr.rel (%p1206) target = $region104
        $region103: #{forward.1} parent=11 // pred_region
          _
        $region104: #{forward.1} parent=11 // pred_fallthru
          _
        // Predicated region
        $region105: #{forward.1} parent=11 // pred_check
          %p1209 = pneg %p743
        $region106: #{forward.1} parent=11 // pred_check_branch
          %1211 = sbr.rel (%p1209) target = $region108
        $region107: #{forward.1} parent=11 // pred_region
          _
        $region108: #{forward.1} parent=11 // pred_fallthru
          _
        // Predicated region
        $region109: #{forward.1} parent=11 // pred_check
          %p1212 = pneg %p764
        $region110: #{forward.1} parent=11 // pred_check_branch
          %1214 = sbr.rel (%p1212) target = $region112
        $region111: #{forward.1} parent=11 // pred_region
          _
        $region112: #{forward.1} parent=11 // pred_fallthru
          _
        // Predicated region
        $region113: #{forward.1} parent=11 // pred_check
          %p1215 = pneg %p785
        $region114: #{forward.1} parent=11 // pred_check_branch
          %1217 = sbr.rel (%p1215) target = $region116
        $region115: #{forward.1} parent=11 // pred_region
          _
        $region116: #{forward.1} parent=11 // pred_fallthru
          _
        // Predicated region
        $region117: #{forward.1} parent=11 // pred_check
          %p1218 = pneg %p806
        $region118: #{forward.1} parent=11 // pred_check_branch
          %1220 = sbr.rel (%p1218) target = $region120
        $region119: #{forward.1} parent=11 // pred_region
          _
        $region120: #{forward.1} parent=11 // pred_fallthru
          _
        // Predicated region
        $region121: #{forward.1} parent=11 // pred_check
          %p1221 = pneg %p827
        $region122: #{forward.1} parent=11 // pred_check_branch
          %1223 = sbr.rel (%p1221) target = $region124
        $region123: #{forward.1} parent=11 // pred_region
          _
        $region124: #{forward.1} parent=11 // pred_fallthru
          _
        // Predicated region
        $region125: #{forward.1} parent=11 // pred_check
          %p1224 = pneg %p848
        $region126: #{forward.1} parent=11 // pred_check_branch
          %1226 = sbr.rel (%p1224) target = $region128
        $region127: #{forward.1} parent=11 // pred_region
          _
        $region128: #{forward.1} parent=11 // pred_fallthru
          _
        // Predicated region
        $region129: #{forward.1} parent=11 // pred_check
          %p1227 = pneg %p869
        $region130: #{forward.1} parent=11 // pred_check_branch
          %1229 = sbr.rel (%p1227) target = $region132
        $region131: #{forward.1} parent=11 // pred_region
          _
        $region132: #{forward.1} parent=11 // pred_fallthru
          _
        // Predicated region
        $region133: #{forward.1} parent=11 // pred_check
          %p1230 = pneg %p890
        $region134: #{forward.1} parent=11 // pred_check_branch
          %1232 = sbr.rel (%p1230) target = $region136
        $region135: #{forward.1} parent=11 // pred_region
          _
        $region136: #{forward.1} parent=11 // pred_fallthru
          _
        // Predicated region
        $region137: #{forward.1} parent=11 // pred_check
          %p1233 = pneg %p911
        $region138: #{forward.1} parent=11 // pred_check_branch
          %1235 = sbr.rel (%p1233) target = $region140
        $region139: #{forward.1} parent=11 // pred_region
          _
        $region140: #{forward.1} parent=11 // pred_fallthru
          _
        // Predicated region
        $region141: #{forward.1} parent=11 // pred_check
          %p1236 = pneg %p932
        $region142: #{forward.1} parent=11 // pred_check_branch
          %1238 = sbr.rel (%p1236) target = $region144
        $region143: #{forward.1} parent=11 // pred_region
          _
        $region144: #{forward.1} parent=11 // pred_fallthru
          _
        // Predicated region
        $region145: #{forward.1} parent=11 // pred_check
          %p1239 = pneg %p953
        $region146: #{forward.1} parent=11 // pred_check_branch
          %1241 = sbr.rel (%p1239) target = $region148
        $region147: #{forward.1} parent=11 // pred_region
          _
        $region148: #{forward.1} parent=11 // pred_fallthru
          _
        // Predicated region
        $region149: #{forward.1} parent=11 // pred_check
          %p1242 = pneg %p974
        $region150: #{forward.1} parent=11 // pred_check_branch
          %1244 = sbr.rel (%p1242) target = $region152
        $region151: #{forward.1} parent=11 // pred_region
          _
        $region152: #{forward.1} parent=11 // pred_fallthru
          _
        // Predicated region
        $region153: #{forward.1} parent=11 // pred_check
          %p1245 = pneg %p995
        $region154: #{forward.1} parent=11 // pred_check_branch
          %1247 = sbr.rel (%p1245) target = $region156
        $region155: #{forward.1} parent=11 // pred_region
          _
        $region156: #{forward.1} parent=11 // pred_fallthru
          _
      $region12: #{forward.1} parent=5 // pred_fallthru
        _
      %p1248 = scmp.lt.s32.totalorder %s109, 2
      // Predicated region
      $region157: #{forward.1} parent=5 // pred_check
        %p1249 = pneg %p1248
      $region158: #{forward.1} parent=5 // pred_check_branch
        %1251 = sbr.rel (%p1249) target = $region160
      $region159: #{forward.1} parent=5 // pred_region
        // Predicated region
        $region161: #{forward.1} parent=159 // pred_check
          %p1252 = pneg %p129
        $region162: #{forward.1} parent=159 // pred_check_branch
          %1254 = sbr.rel (%p1252) target = $region164
        $region163: #{forward.1} parent=159 // pred_region
          %p1255 = scmp.lt.s32.totalorder %s109, 1
          %s1256 = scalar_select %p1255, %s109, 1
          %s1257 = smul.addr %s1256, 8
          %s1258 = scalar_lea.vmem %s1, %s1257
        $region164: #{forward.1} parent=159 // pred_fallthru
          _
        // Predicated region
        $region165: #{forward.1} parent=159 // pred_check
          %p1259 = pneg %p155
        $region166: #{forward.1} parent=159 // pred_check_branch
          %1261 = sbr.rel (%p1259) target = $region168
        $region167: #{forward.1} parent=159 // pred_region
          %p1262 = scmp.lt.s32.totalorder %s109, 1
          %s1263 = scalar_select %p1262, %s109, 1
          %s1264 = smul.addr %s1263, 8
          %s1265 = scalar_lea.vmem %s3, %s1264
        $region168: #{forward.1} parent=159 // pred_fallthru
          _
        // Predicated region
        $region169: #{forward.1} parent=159 // pred_check
          %p1266 = pneg %p181
        $region170: #{forward.1} parent=159 // pred_check_branch
          %1268 = sbr.rel (%p1266) target = $region172
        $region171: #{forward.1} parent=159 // pred_region
          %p1269 = scmp.lt.s32.totalorder %s109, 1
          %s1270 = scalar_select %p1269, %s109, 1
          %s1271 = scalar_lea.vmem %s5, %s1270
        $region172: #{forward.1} parent=159 // pred_fallthru
          _
        // Predicated region
        $region173: #{forward.1} parent=159 // pred_check
          %p1272 = pneg %p207
        $region174: #{forward.1} parent=159 // pred_check_branch
          %1274 = sbr.rel (%p1272) target = $region176
        $region175: #{forward.1} parent=159 // pred_region
          %p1275 = scmp.lt.s32.totalorder %s109, 1
          %s1276 = scalar_select %p1275, %s109, 1
          %s1277 = smul.addr %s1276, 8
          %s1278 = scalar_lea.vmem %s7, %s1277
        $region176: #{forward.1} parent=159 // pred_fallthru
          _
        // Predicated region
        $region177: #{forward.1} parent=159 // pred_check
          %p1279 = pneg %p233
        $region178: #{forward.1} parent=159 // pred_check_branch
          %1281 = sbr.rel (%p1279) target = $region180
        $region179: #{forward.1} parent=159 // pred_region
          %p1282 = scmp.lt.s32.totalorder %s109, 1
          %s1283 = scalar_select %p1282, %s109, 1
          %s1284 = scalar_lea.vmem %s9, %s1283
        $region180: #{forward.1} parent=159 // pred_fallthru
          _
      $region160: #{forward.1} parent=5 // pred_fallthru
        _
      %p1285 = scmp.le.s32.totalorder 1, %s109
      %p1286 = scmp.lt.s32.totalorder %s109, 3
      %p1287 = pnand %p1285, %p1286
      %p1288 = pneg %p1287
      // Predicated region
      $region181: #{forward.1} parent=5 // pred_check
        _
      $region182: #{forward.1} parent=5 // pred_check_branch
        %1290 = sbr.rel (%p1287) target = $region184
      $region183: #{forward.1} parent=5 // pred_region
        %s1291 = ssub.s32 %s109, 1
        %p1292 = scmp.lt.s32.totalorder %s114, 1
        %s1293 = scalar_select %p1292, %s114, 1
        %s1294 = smul.addr %s1293, 8
        %s1295 = scalar_lea.vmem %s1, %s1294
        %p1296 = pneg %p135
        %p1297 = pneg %p132
        %p1298 = scmp.lt.s32.totalorder %s114, 1
        %s1299 = scalar_select %p1298, %s114, 1
        %s1300 = smul.addr %s1299, 8
        %s1301 = scalar_lea.vmem %s3, %s1300
        %p1302 = pneg %p161
        %p1303 = pneg %p158
        %p1304 = scmp.lt.s32.totalorder %s114, 1
        %s1305 = scalar_select %p1304, %s114, 1
        %s1306 = scalar_lea.vmem %s5, %s1305
        %p1307 = pneg %p187
        %p1308 = pneg %p184
        %p1309 = scmp.lt.s32.totalorder %s114, 1
        %s1310 = scalar_select %p1309, %s114, 1
        %s1311 = smul.addr %s1310, 8
        %s1312 = scalar_lea.vmem %s7, %s1311
        %p1313 = pneg %p213
        %p1314 = pneg %p210
        %p1315 = scmp.lt.s32.totalorder %s114, 1
        %s1316 = scalar_select %p1315, %s114, 1
        %s1317 = scalar_lea.vmem %s9, %s1316
        %p1318 = pneg %p239
        %p1319 = pneg %p236
        %p1320 = pneg %p260
        %p1321 = pneg %p257
        %p1322 = pneg %p281
        %p1323 = pneg %p278
        %p1324 = pneg %p302
        %p1325 = pneg %p299
        %p1326 = pneg %p323
        %p1327 = pneg %p320
        %p1328 = pneg %p344
        %p1329 = pneg %p341
        %p1330 = pneg %p365
        %p1331 = pneg %p362
        %p1332 = pneg %p386
        %p1333 = pneg %p383
        %p1334 = pneg %p407
        %p1335 = pneg %p404
        %p1336 = pneg %p428
        %p1337 = pneg %p425
        %p1338 = pneg %p449
        %p1339 = pneg %p446
        %p1340 = pneg %p470
        %p1341 = pneg %p467
        %p1342 = pneg %p491
        %p1343 = pneg %p488
        %p1344 = pneg %p512
        %p1345 = pneg %p509
        %p1346 = pneg %p533
        %p1347 = pneg %p530
        %p1348 = pneg %p554
        %p1349 = pneg %p551
        %p1350 = pneg %p575
        %p1351 = pneg %p572
        %p1352 = pneg %p596
        %p1353 = pneg %p593
        %p1354 = pneg %p617
        %p1355 = pneg %p614
        %p1356 = pneg %p638
        %p1357 = pneg %p635
        %p1358 = pneg %p659
        %p1359 = pneg %p656
        %p1360 = pneg %p680
        %p1361 = pneg %p677
        %p1362 = pneg %p701
        %p1363 = pneg %p698
        %p1364 = pneg %p722
        %p1365 = pneg %p719
        %p1366 = pneg %p743
        %p1367 = pneg %p740
        %p1368 = pneg %p764
        %p1369 = pneg %p761
        %p1370 = pneg %p785
        %p1371 = pneg %p782
        %p1372 = pneg %p806
        %p1373 = pneg %p803
        %p1374 = pneg %p827
        %p1375 = pneg %p824
        %p1376 = pneg %p848
        %p1377 = pneg %p845
        %p1378 = pneg %p869
        %p1379 = pneg %p866
        %p1380 = pneg %p890
        %p1381 = pneg %p887
        %p1382 = pneg %p911
        %p1383 = pneg %p908
        %p1384 = pneg %p932
        %p1385 = pneg %p929
        %p1386 = pneg %p953
        %p1387 = pneg %p950
        %p1388 = pneg %p974
        %p1389 = pneg %p971
        %p1390 = pneg %p995
        %p1391 = pneg %p992
        %p1392 = pneg %p1021
        %p1393 = pneg %p1018
        %s1394 = sand.u32 %s1008, 1
        %s1395 = scalar_lea.sflag [#allocation4], %s1394
        %s1396 = sand.u32 %s1008, 1
        %s1397 = smul.addr %s1396, 8
        %s1398 = scalar_lea.vmem [#allocation3], %s1397
        %p1399 = pneg %p1047
        %p1400 = pneg %p1044
        %s1401 = sand.u32 %s114, 1
        %s1402 = scalar_lea.sflag [#allocation6], %s1401
        %s1403 = sand.u32 %s1034, 1
        %s1404 = scalar_lea.vmem [#allocation5], %s1403
        %p1405 = pneg %p1073
        %p1406 = pneg %p1070
        %s1407 = sand.u32 %s114, 1
        %s1408 = scalar_lea.sflag [#allocation6], %s1407
        %s1409 = sand.u32 %s1060, 1
        %s1410 = scalar_lea.vmem [#allocation7], %s1409
        %p1411 = pneg %p1099
        %p1412 = pneg %p1096
        %s1413 = sand.u32 %s1086, 1
        %s1414 = scalar_lea.sflag [#allocation9], %s1413
        %s1415 = sand.u32 %s1086, 1
        %s1416 = scalar_lea.vmem [#allocation8], %s1415
        %p1417 = pneg %p1125
        %p1418 = pneg %p1122
        %p1419 = scmp.lt.s32.totalorder %s114, 1
        %s1420 = scalar_select %p1419, %s114, 1
        %s1421 = scalar_lea.vmem %s91, %s1420
        %p1422 = scmp.lt.s32.totalorder %s114, 1
        %s1423 = scalar_select %p1422, %s114, 1
        %s1424 = smul.addr %s1423, 8
        %s1425 = scalar_lea.vmem %s1, %s1424
        %p1426 = scmp.lt.s32.totalorder %s114, 1
        %s1427 = scalar_select %p1426, %s114, 1
        %s1428 = smul.addr %s1427, 8
        %s1429 = scalar_lea.vmem %s3, %s1428
        %p1430 = scmp.lt.s32.totalorder %s114, 1
        %s1431 = scalar_select %p1430, %s114, 1
        %s1432 = scalar_lea.vmem %s5, %s1431
        %p1433 = scmp.lt.s32.totalorder %s114, 1
        %s1434 = scalar_select %p1433, %s114, 1
        %s1435 = smul.addr %s1434, 8
        %s1436 = scalar_lea.vmem %s7, %s1435
        %p1437 = scmp.lt.s32.totalorder %s114, 1
        %s1438 = scalar_select %p1437, %s114, 1
        %s1439 = scalar_lea.vmem %s9, %s1438
        %p1440 = scmp.lt.s32.totalorder %s114, 1
        %s1441 = scalar_select %p1440, %s114, 1
        %s1442 = scalar_lea.vmem %s91, %s1441
        %v1444 = vld [vmem:[%s1425] sm:$0xff]
        %v1445 = vld [vmem:[%s1432] sm:$0x1]
        %v1446 = vld [vmem:[%s11] sm:$0x3]
        %vm1447 = vcmask 261120
        %v1448 = vsel %vm1447, %v1444, 0.0
        %1449 = vadd.xlane.f32.xlu0 %v1448
        %v1450 = vpop.xlane.xlu0 %1449
        %v1451 = vrcp.pop 32.0
        %v1452 = vmul.f32 %v1450, %v1451
        %v1453 = vsub.f32 %v1444, %v1452
        %v1454 = vmul.f32 %v1453, %v1453
        %v1455 = vsel %vm1447, %v1454, 0.0
        %1456 = vadd.xlane.f32.xlu0 %v1455
        %v1457 = vpop.xlane.xlu0 %1456
        %v1458 = vmul.f32 %v1457, %v1451
        %v1459 = vadd.f32 %v1458, 1e-05
        %v1460 = vrsqrt.pop %v1459
        %v1461 = vmul.f32 %v1453, %v1460
        %v1462 = vlaneseq
        %v1463 = vshrl.u32 %v1462, 7
        %v1464 = vsub.s32 0, %v1463
        %v1465 = vrot.slane %v1446, %v1464
        %v1466 = vmul.f32 %v1461, %v1465
        %v1467 = vlaneseq
        %v1468 = vshrl.u32 %v1467, 7
        %v1469 = vsub.s32 1, %v1468
        %v1470 = vrot.slane %v1446, %v1469
        %v1471 = vadd.f32 %v1466, %v1470
        %v1472 = vld [vmem:[%s13] sm:$0xf]
        %v1473 = vld [vmem:[%s13 + $0x4] sm:$0xf]
        %v1474 = vld [vmem:[%s13 + $0x8] sm:$0xf]
        %v1475 = vld [vmem:[%s13 + $0xc] sm:$0xf]
        %v1476 = vld [vmem:[%s15] sm:$0x1]
        %v1477 = vld [vmem:[%s17] sm:$0xf]
        %v1478 = vld [vmem:[%s17 + $0x4] sm:$0xf]
        %v1479 = vld [vmem:[%s17 + $0x8] sm:$0xf]
        %v1480 = vld [vmem:[%s17 + $0xc] sm:$0xf]
        %v1481 = vld [vmem:[%s19] sm:$0x1]
        %v1482 = vpack.c.bf16 %v1471, %v1471
        %v1484 = vlaneseq
        %v1485 = vshrl.u32 %v1484, 7
        %v1486 = vsub.s32 0, %v1485
        %v1487 = vrot.slane %v1476, %v1486
        %v1493 = vunpack.c.l.b16 %v1472
        %v1494 = vunpack.c.l.b16 %v1473
        %v1495 = vunpack.c.l.b16 %v1474
        %v1496 = vunpack.c.l.b16 %v1475
        %v1497 = vpack.c.b16 %v1494, %v1493
        %v1498 = vpack.c.b16 %v1496, %v1495
        %v1502 = vsel %vm1447, %v1482, 0
        %1504 = vmatprep.subr.bf16.mxu0 0
        %1505 = vmatpush1.bf16.msra.mxu0 0
        %1506 = vmatprep.subr.bf16.mxu0 0
        %1507 = vmatpush1.bf16.msra.mxu0 0
        %1508 = vmatprep.subr.bf16.mxu0 0
        %1509 = vmatpush1.bf16.msra.mxu0 0
        %1510 = vmatprep.subr.bf16.mxu0 0
        %1511 = vmatpush1.bf16.msra.mxu0 0
        %1512 = vmatprep.subr.bf16.mxu0 0
        %1513 = vmatpush1.bf16.msra.mxu0 0
        %1514 = vmatprep.subr.bf16.mxu0 0
        %1515 = vmatpush1.bf16.msra.mxu0 0
        %1516 = vmatprep.subr.bf16.mxu0 0
        %1517 = vmatpush1.bf16.msra.mxu0 %v1498
        %1518 = vmatprep.subr.bf16.mxu0 0
        %1519 = vmatpush1.bf16.msra.mxu0 %v1497
        %1520 = vmatprep.subr.bf16.mxu0 0
        %1521 = vmatpush2.bf16.msra.mxu0 0
        %1522 = vmatprep.subr.bf16.mxu0 0
        %1523 = vmatpush2.bf16.msra.mxu0 0
        %1524 = vmatprep.subr.bf16.mxu0 0
        %1525 = vmatpush2.bf16.msra.mxu0 0
        %1526 = vmatprep.subr.bf16.mxu0 0
        %1527 = vmatpush2.bf16.msra.mxu0 0
        %1528 = vmatprep.subr.bf16.mxu0 0
        %1529 = vmatpush2.bf16.msra.mxu0 0
        %1530 = vmatprep.subr.bf16.mxu0 0
        %1531 = vmatpush2.bf16.msra.mxu0 0
        %1532 = vmatprep.subr.bf16.mxu0 0
        %1533 = vmatpush2.bf16.msra.mxu0 0
        %1534 = vmatprep.subr.bf16.mxu0 0
        %1535 = vmatpush2.bf16.msra.mxu0 0
        %1536 = vmatprep.mubr.bf16.mxu0 0
        %1537 = vmatmul.mubr.bf16.gmra.mxu0 %v1502
        %v1538 = vpop.f32.mrf.mxu0
        %v1539 = vadd.f32 %v1487, %v1538
        %v1540 = vpop.f32.mrf.mxu0
        %v1541 = vpop.f32.mrf.mxu0
        %v1542 = vpop.f32.mrf.mxu0
        %1543 = vdwg.mxu0
        %v1544 = vpack.c.bf16 %v1539, %v1539
        %1546 = vrot.lane.b32.xlu0 %v1544, 96
        %v1547 = vpop.permute.xlu0 %1546
        %vm1548 = vcmask 64512
        %v1550 = vsel %vm1548, %v1544, 0
        %v1553 = vsel %vm1548, %v1547, 0
        %1555 = vmatprep.subr.bf16.mxu0 0
        %1556 = vmatpush1.bf16.xpose.msra.mxu0 0
        %1557 = vmatprep.subr.bf16.mxu0 0
        %1558 = vmatpush1.bf16.xpose.msra.mxu0 0
        %1559 = vmatprep.subr.bf16.mxu0 0
        %1560 = vmatpush1.bf16.xpose.msra.mxu0 0
        %1561 = vmatprep.subr.bf16.mxu0 0
        %1562 = vmatpush1.bf16.xpose.msra.mxu0 0
        %1563 = vmatprep.subr.bf16.mxu0 0
        %1564 = vmatpush1.bf16.xpose.msra.mxu0 0
        %1565 = vmatprep.subr.bf16.mxu0 0
        %1566 = vmatpush1.bf16.xpose.msra.mxu0 0
        %1567 = vmatprep.subr.bf16.mxu0 0
        %1568 = vmatpush1.bf16.xpose.msra.mxu0 0
        %1569 = vmatprep.subr.bf16.mxu0 0
        %1570 = vmatpush1.bf16.xpose.msra.mxu0 %v1553
        %1571 = vmatprep.subr.bf16.mxu0 0
        %1572 = vmatpush2.bf16.xpose.msra.mxu0 0
        %1573 = vmatprep.subr.bf16.mxu0 0
        %1574 = vmatpush2.bf16.xpose.msra.mxu0 0
        %1575 = vmatprep.subr.bf16.mxu0 0
        %1576 = vmatpush2.bf16.xpose.msra.mxu0 0
        %1577 = vmatprep.subr.bf16.mxu0 0
        %1578 = vmatpush2.bf16.xpose.msra.mxu0 0
        %1579 = vmatprep.subr.bf16.mxu0 0
        %1580 = vmatpush2.bf16.xpose.msra.mxu0 0
        %1581 = vmatprep.subr.bf16.mxu0 0
        %1582 = vmatpush2.bf16.xpose.msra.mxu0 0
        %1583 = vmatprep.subr.bf16.mxu0 0
        %1584 = vmatpush2.bf16.xpose.msra.mxu0 0
        %1585 = vmatprep.subr.bf16.mxu0 0
        %1586 = vmatpush2.bf16.xpose.msra.mxu0 0
        %1587 = vmatprep.mubr.bf16.mxu0 0
        %1588 = vmatmul.mubr.bf16.gmra.mxu0 %v1550
        %v1589 = vpop.f32.mrf.mxu0
        %v1590 = vadd.f32 0.0, %v1589
        %v1591 = vpop.f32.mrf.mxu0
        %v1592 = vpop.f32.mrf.mxu0
        %v1593 = vpop.f32.mrf.mxu0
        %1594 = vdwg.mxu0
        %v1595 = vmul.f32 %v1590, 0.35355338
        %vm1596 = vcmp.gt.f32.partialorder %v1445, 0.0
        %v1597 = vsel %vm1596, 1, 0
        %v1598 = vlaneseq
        %v1599 = vshrl.u32 %v1598, 7
        %v1600 = vsub.s32 0, %v1599
        %v1601 = vrot.slane %v1597, %v1600
        %vm1602 = vcmp.eq.s32.totalorder %v1601, 1
        %v1603 = vsel %vm1602, %v1595, -1e+09
        %v1604 = vsel %vm1548, %v1603, -inf
        %1605 = vmax.xlane.f32.xlu0 %v1604
        %v1606 = vpop.xlane.xlu0 %1605
        %v1607 = vsub.f32 %v1603, %v1606
        %v1608 = vmul.f32 %v1607, 1.442695
        %v1609 = vpow.pop %v1608
        %v1610 = vsel %vm1548, %v1609, 0.0
        %1611 = vadd.xlane.f32.xlu0 %v1610
        %v1612 = vpop.xlane.xlu0 %1611
        %v1613 = vrcp.pop %v1612
        %v1614 = vmul.f32 %v1609, %v1613
        %v1615 = vpack.c.bf16 %v1614, %v1614
        %1616 = vrot.lane.b32.xlu0 %v1544, 64
        %v1617 = vpop.permute.xlu0 %1616
        %v1619 = vsel %vm1548, %v1615, 0
        %vm1621 = vcmask 1043456
        %v1623 = vsel %vm1621, %v1617, 0
        %1625 = vmatprep.subr.bf16.mxu0 0
        %1626 = vmatpush1.bf16.msra.mxu0 0
        %1627 = vmatprep.subr.bf16.mxu0 0
        %1628 = vmatpush1.bf16.msra.mxu0 0
        %1629 = vmatprep.subr.bf16.mxu0 0
        %1630 = vmatpush1.bf16.msra.mxu0 0
        %1631 = vmatprep.subr.bf16.mxu0 0
        %1632 = vmatpush1.bf16.msra.mxu0 0
        %1633 = vmatprep.subr.bf16.mxu0 0
        %1634 = vmatpush1.bf16.msra.mxu0 0
        %1635 = vmatprep.subr.bf16.mxu0 0
        %1636 = vmatpush1.bf16.msra.mxu0 0
        %1637 = vmatprep.subr.bf16.mxu0 0
        %1638 = vmatpush1.bf16.msra.mxu0 0
        %1639 = vmatprep.subr.bf16.mxu0 0
        %1640 = vmatpush1.bf16.msra.mxu0 %v1623
        %1641 = vmatprep.subr.bf16.mxu0 0
        %1642 = vmatpush2.bf16.msra.mxu0 0
        %1643 = vmatprep.subr.bf16.mxu0 0
        %1644 = vmatpush2.bf16.msra.mxu0 0
        %1645 = vmatprep.subr.bf16.mxu0 0
        %1646 = vmatpush2.bf16.msra.mxu0 0
        %1647 = vmatprep.subr.bf16.mxu0 0
        %1648 = vmatpush2.bf16.msra.mxu0 0
        %1649 = vmatprep.subr.bf16.mxu0 0
        %1650 = vmatpush2.bf16.msra.mxu0 0
        %1651 = vmatprep.subr.bf16.mxu0 0
        %1652 = vmatpush2.bf16.msra.mxu0 0
        %1653 = vmatprep.subr.bf16.mxu0 0
        %1654 = vmatpush2.bf16.msra.mxu0 0
        %1655 = vmatprep.subr.bf16.mxu0 0
        %1656 = vmatpush2.bf16.msra.mxu0 0
        %1657 = vmatprep.mubr.bf16.mxu0 0
        %1658 = vmatmul.mubr.bf16.gmra.mxu0 %v1619
        %v1659 = vpop.f32.mrf.mxu0
        %v1660 = vadd.f32 0.0, %v1659
        %v1661 = vpop.f32.mrf.mxu0
        %v1662 = vpop.f32.mrf.mxu0
        %v1663 = vpop.f32.mrf.mxu0
        %1664 = vdwg.mxu0
        %1665 = vrot.lane.b32.xlu0 %v1544, 120
        %v1666 = vpop.permute.xlu0 %1665
        %1667 = vrot.lane.b32.xlu0 %v1544, 88
        %v1668 = vpop.permute.xlu0 %1667
        %v1670 = vsel %vm1548, %v1666, 0
        %v1673 = vsel %vm1548, %v1668, 0
        %1675 = vmatprep.subr.bf16.mxu0 0
        %1676 = vmatpush1.bf16.xpose.msra.mxu0 0
        %1677 = vmatprep.subr.bf16.mxu0 0
        %1678 = vmatpush1.bf16.xpose.msra.mxu0 0
        %1679 = vmatprep.subr.bf16.mxu0 0
        %1680 = vmatpush1.bf16.xpose.msra.mxu0 0
        %1681 = vmatprep.subr.bf16.mxu0 0
        %1682 = vmatpush1.bf16.xpose.msra.mxu0 0
        %1683 = vmatprep.subr.bf16.mxu0 0
        %1684 = vmatpush1.bf16.xpose.msra.mxu0 0
        %1685 = vmatprep.subr.bf16.mxu0 0
        %1686 = vmatpush1.bf16.xpose.msra.mxu0 0
        %1687 = vmatprep.subr.bf16.mxu0 0
        %1688 = vmatpush1.bf16.xpose.msra.mxu0 0
        %1689 = vmatprep.subr.bf16.mxu0 0
        %1690 = vmatpush1.bf16.xpose.msra.mxu0 %v1673
        %1691 = vmatprep.subr.bf16.mxu0 0
        %1692 = vmatpush2.bf16.xpose.msra.mxu0 0
        %1693 = vmatprep.subr.bf16.mxu0 0
        %1694 = vmatpush2.bf16.xpose.msra.mxu0 0
        %1695 = vmatprep.subr.bf16.mxu0 0
        %1696 = vmatpush2.bf16.xpose.msra.mxu0 0
        %1697 = vmatprep.subr.bf16.mxu0 0
        %1698 = vmatpush2.bf16.xpose.msra.mxu0 0
        %1699 = vmatprep.subr.bf16.mxu0 0
        %1700 = vmatpush2.bf16.xpose.msra.mxu0 0
        %1701 = vmatprep.subr.bf16.mxu0 0
        %1702 = vmatpush2.bf16.xpose.msra.mxu0 0
        %1703 = vmatprep.subr.bf16.mxu0 0
        %1704 = vmatpush2.bf16.xpose.msra.mxu0 0
        %1705 = vmatprep.subr.bf16.mxu0 0
        %1706 = vmatpush2.bf16.xpose.msra.mxu0 0
        %1707 = vmatprep.mubr.bf16.mxu0 0
        %1708 = vmatmul.mubr.bf16.gmra.mxu0 %v1670
        %v1709 = vpop.f32.mrf.mxu0
        %v1710 = vadd.f32 0.0, %v1709
        %v1711 = vpop.f32.mrf.mxu0
        %v1712 = vpop.f32.mrf.mxu0
        %v1713 = vpop.f32.mrf.mxu0
        %1714 = vdwg.mxu0
        %v1715 = vmul.f32 %v1710, 0.35355338
        %v1716 = vsel %vm1602, %v1715, -1e+09
        %v1717 = vsel %vm1548, %v1716, -inf
        %1718 = vmax.xlane.f32.xlu0 %v1717
        %v1719 = vpop.xlane.xlu0 %1718
        %v1720 = vsub.f32 %v1716, %v1719
        %v1721 = vmul.f32 %v1720, 1.442695
        %v1722 = vpow.pop %v1721
        %v1723 = vsel %vm1548, %v1722, 0.0
        %1724 = vadd.xlane.f32.xlu0 %v1723
        %v1725 = vpop.xlane.xlu0 %1724
        %v1726 = vrcp.pop %v1725
        %v1727 = vmul.f32 %v1722, %v1726
        %v1728 = vpack.c.bf16 %v1727, %v1727
        %1729 = vrot.lane.b32.xlu0 %v1544, 56
        %v1730 = vpop.permute.xlu0 %1729
        %v1732 = vsel %vm1548, %v1728, 0
        %v1735 = vsel %vm1621, %v1730, 0
        %1737 = vmatprep.subr.bf16.mxu0 0
        %1738 = vmatpush1.bf16.msra.mxu0 0
        %1739 = vmatprep.subr.bf16.mxu0 0
        %1740 = vmatpush1.bf16.msra.mxu0 0
        %1741 = vmatprep.subr.bf16.mxu0 0
        %1742 = vmatpush1.bf16.msra.mxu0 0
        %1743 = vmatprep.subr.bf16.mxu0 0
        %1744 = vmatpush1.bf16.msra.mxu0 0
        %1745 = vmatprep.subr.bf16.mxu0 0
        %1746 = vmatpush1.bf16.msra.mxu0 0
        %1747 = vmatprep.subr.bf16.mxu0 0
        %1748 = vmatpush1.bf16.msra.mxu0 0
        %1749 = vmatprep.subr.bf16.mxu0 0
        %1750 = vmatpush1.bf16.msra.mxu0 0
        %1751 = vmatprep.subr.bf16.mxu0 0
        %1752 = vmatpush1.bf16.msra.mxu0 %v1735
        %1753 = vmatprep.subr.bf16.mxu0 0
        %1754 = vmatpush2.bf16.msra.mxu0 0
        %1755 = vmatprep.subr.bf16.mxu0 0
        %1756 = vmatpush2.bf16.msra.mxu0 0
        %1757 = vmatprep.subr.bf16.mxu0 0
        %1758 = vmatpush2.bf16.msra.mxu0 0
        %1759 = vmatprep.subr.bf16.mxu0 0
        %1760 = vmatpush2.bf16.msra.mxu0 0
        %1761 = vmatprep.subr.bf16.mxu0 0
        %1762 = vmatpush2.bf16.msra.mxu0 0
        %1763 = vmatprep.subr.bf16.mxu0 0
        %1764 = vmatpush2.bf16.msra.mxu0 0
        %1765 = vmatprep.subr.bf16.mxu0 0
        %1766 = vmatpush2.bf16.msra.mxu0 0
        %1767 = vmatprep.subr.bf16.mxu0 0
        %1768 = vmatpush2.bf16.msra.mxu0 0
        %1769 = vmatprep.mubr.bf16.mxu0 0
        %1770 = vmatmul.mubr.bf16.gmra.mxu0 %v1732
        %v1771 = vpop.f32.mrf.mxu0
        %v1772 = vadd.f32 0.0, %v1771
        %v1773 = vpop.f32.mrf.mxu0
        %v1774 = vpop.f32.mrf.mxu0
        %v1775 = vpop.f32.mrf.mxu0
        %1776 = vdwg.mxu0
        %1777 = vrot.lane.b32.xlu0 %v1544, 112
        %v1778 = vpop.permute.xlu0 %1777
        %1779 = vrot.lane.b32.xlu0 %v1544, 80
        %v1780 = vpop.permute.xlu0 %1779
        %v1782 = vsel %vm1548, %v1778, 0
        %v1785 = vsel %vm1548, %v1780, 0
        %1787 = vmatprep.subr.bf16.mxu0 0
        %1788 = vmatpush1.bf16.xpose.msra.mxu0 0
        %1789 = vmatprep.subr.bf16.mxu0 0
        %1790 = vmatpush1.bf16.xpose.msra.mxu0 0
        %1791 = vmatprep.subr.bf16.mxu0 0
        %1792 = vmatpush1.bf16.xpose.msra.mxu0 0
        %1793 = vmatprep.subr.bf16.mxu0 0
        %1794 = vmatpush1.bf16.xpose.msra.mxu0 0
        %1795 = vmatprep.subr.bf16.mxu0 0
        %1796 = vmatpush1.bf16.xpose.msra.mxu0 0
        %1797 = vmatprep.subr.bf16.mxu0 0
        %1798 = vmatpush1.bf16.xpose.msra.mxu0 0
        %1799 = vmatprep.subr.bf16.mxu0 0
        %1800 = vmatpush1.bf16.xpose.msra.mxu0 0
        %1801 = vmatprep.subr.bf16.mxu0 0
        %1802 = vmatpush1.bf16.xpose.msra.mxu0 %v1785
        %1803 = vmatprep.subr.bf16.mxu0 0
        %1804 = vmatpush2.bf16.xpose.msra.mxu0 0
        %1805 = vmatprep.subr.bf16.mxu0 0
        %1806 = vmatpush2.bf16.xpose.msra.mxu0 0
        %1807 = vmatprep.subr.bf16.mxu0 0
        %1808 = vmatpush2.bf16.xpose.msra.mxu0 0
        %1809 = vmatprep.subr.bf16.mxu0 0
        %1810 = vmatpush2.bf16.xpose.msra.mxu0 0
        %1811 = vmatprep.subr.bf16.mxu0 0
        %1812 = vmatpush2.bf16.xpose.msra.mxu0 0
        %1813 = vmatprep.subr.bf16.mxu0 0
        %1814 = vmatpush2.bf16.xpose.msra.mxu0 0
        %1815 = vmatprep.subr.bf16.mxu0 0
        %1816 = vmatpush2.bf16.xpose.msra.mxu0 0
        %1817 = vmatprep.subr.bf16.mxu0 0
        %1818 = vmatpush2.bf16.xpose.msra.mxu0 0
        %1819 = vmatprep.mubr.bf16.mxu0 0
        %1820 = vmatmul.mubr.bf16.gmra.mxu0 %v1782
        %v1821 = vpop.f32.mrf.mxu0
        %v1822 = vadd.f32 0.0, %v1821
        %v1823 = vpop.f32.mrf.mxu0
        %v1824 = vpop.f32.mrf.mxu0
        %v1825 = vpop.f32.mrf.mxu0
        %1826 = vdwg.mxu0
        %v1827 = vmul.f32 %v1822, 0.35355338
        %v1828 = vsel %vm1602, %v1827, -1e+09
        %v1829 = vsel %vm1548, %v1828, -inf
        %1830 = vmax.xlane.f32.xlu0 %v1829
        %v1831 = vpop.xlane.xlu0 %1830
        %v1832 = vsub.f32 %v1828, %v1831
        %v1833 = vmul.f32 %v1832, 1.442695
        %v1834 = vpow.pop %v1833
        %v1835 = vsel %vm1548, %v1834, 0.0
        %1836 = vadd.xlane.f32.xlu0 %v1835
        %v1837 = vpop.xlane.xlu0 %1836
        %v1838 = vrcp.pop %v1837
        %v1839 = vmul.f32 %v1834, %v1838
        %v1840 = vpack.c.bf16 %v1839, %v1839
        %1841 = vrot.lane.b32.xlu0 %v1544, 48
        %v1842 = vpop.permute.xlu0 %1841
        %v1844 = vsel %vm1548, %v1840, 0
        %v1847 = vsel %vm1621, %v1842, 0
        %1849 = vmatprep.subr.bf16.mxu0 0
        %1850 = vmatpush1.bf16.msra.mxu0 0
        %1851 = vmatprep.subr.bf16.mxu0 0
        %1852 = vmatpush1.bf16.msra.mxu0 0
        %1853 = vmatprep.subr.bf16.mxu0 0
        %1854 = vmatpush1.bf16.msra.mxu0 0
        %1855 = vmatprep.subr.bf16.mxu0 0
        %1856 = vmatpush1.bf16.msra.mxu0 0
        %1857 = vmatprep.subr.bf16.mxu0 0
        %1858 = vmatpush1.bf16.msra.mxu0 0
        %1859 = vmatprep.subr.bf16.mxu0 0
        %1860 = vmatpush1.bf16.msra.mxu0 0
        %1861 = vmatprep.subr.bf16.mxu0 0
        %1862 = vmatpush1.bf16.msra.mxu0 0
        %1863 = vmatprep.subr.bf16.mxu0 0
        %1864 = vmatpush1.bf16.msra.mxu0 %v1847
        %1865 = vmatprep.subr.bf16.mxu0 0
        %1866 = vmatpush2.bf16.msra.mxu0 0
        %1867 = vmatprep.subr.bf16.mxu0 0
        %1868 = vmatpush2.bf16.msra.mxu0 0
        %1869 = vmatprep.subr.bf16.mxu0 0
        %1870 = vmatpush2.bf16.msra.mxu0 0
        %1871 = vmatprep.subr.bf16.mxu0 0
        %1872 = vmatpush2.bf16.msra.mxu0 0
        %1873 = vmatprep.subr.bf16.mxu0 0
        %1874 = vmatpush2.bf16.msra.mxu0 0
        %1875 = vmatprep.subr.bf16.mxu0 0
        %1876 = vmatpush2.bf16.msra.mxu0 0
        %1877 = vmatprep.subr.bf16.mxu0 0
        %1878 = vmatpush2.bf16.msra.mxu0 0
        %1879 = vmatprep.subr.bf16.mxu0 0
        %1880 = vmatpush2.bf16.msra.mxu0 0
        %1881 = vmatprep.mubr.bf16.mxu0 0
        %1882 = vmatmul.mubr.bf16.gmra.mxu0 %v1844
        %v1883 = vpop.f32.mrf.mxu0
        %v1884 = vadd.f32 0.0, %v1883
        %v1885 = vpop.f32.mrf.mxu0
        %v1886 = vpop.f32.mrf.mxu0
        %v1887 = vpop.f32.mrf.mxu0
        %1888 = vdwg.mxu0
        %1889 = vrot.lane.b32.xlu0 %v1544, 104
        %v1890 = vpop.permute.xlu0 %1889
        %1891 = vrot.lane.b32.xlu0 %v1544, 72
        %v1892 = vpop.permute.xlu0 %1891
        %v1894 = vsel %vm1548, %v1890, 0
        %v1897 = vsel %vm1548, %v1892, 0
        %1899 = vmatprep.subr.bf16.mxu0 0
        %1900 = vmatpush1.bf16.xpose.msra.mxu0 0
        %1901 = vmatprep.subr.bf16.mxu0 0
        %1902 = vmatpush1.bf16.xpose.msra.mxu0 0
        %1903 = vmatprep.subr.bf16.mxu0 0
        %1904 = vmatpush1.bf16.xpose.msra.mxu0 0
        %1905 = vmatprep.subr.bf16.mxu0 0
        %1906 = vmatpush1.bf16.xpose.msra.mxu0 0
        %1907 = vmatprep.subr.bf16.mxu0 0
        %1908 = vmatpush1.bf16.xpose.msra.mxu0 0
        %1909 = vmatprep.subr.bf16.mxu0 0
        %1910 = vmatpush1.bf16.xpose.msra.mxu0 0
        %1911 = vmatprep.subr.bf16.mxu0 0
        %1912 = vmatpush1.bf16.xpose.msra.mxu0 0
        %1913 = vmatprep.subr.bf16.mxu0 0
        %1914 = vmatpush1.bf16.xpose.msra.mxu0 %v1897
        %1915 = vmatprep.subr.bf16.mxu0 0
        %1916 = vmatpush2.bf16.xpose.msra.mxu0 0
        %1917 = vmatprep.subr.bf16.mxu0 0
        %1918 = vmatpush2.bf16.xpose.msra.mxu0 0
        %1919 = vmatprep.subr.bf16.mxu0 0
        %1920 = vmatpush2.bf16.xpose.msra.mxu0 0
        %1921 = vmatprep.subr.bf16.mxu0 0
        %1922 = vmatpush2.bf16.xpose.msra.mxu0 0
        %1923 = vmatprep.subr.bf16.mxu0 0
        %1924 = vmatpush2.bf16.xpose.msra.mxu0 0
        %1925 = vmatprep.subr.bf16.mxu0 0
        %1926 = vmatpush2.bf16.xpose.msra.mxu0 0
        %1927 = vmatprep.subr.bf16.mxu0 0
        %1928 = vmatpush2.bf16.xpose.msra.mxu0 0
        %1929 = vmatprep.subr.bf16.mxu0 0
        %1930 = vmatpush2.bf16.xpose.msra.mxu0 0
        %1931 = vmatprep.mubr.bf16.mxu0 0
        %1932 = vmatmul.mubr.bf16.gmra.mxu0 %v1894
        %v1933 = vpop.f32.mrf.mxu0
        %v1934 = vadd.f32 0.0, %v1933
        %v1935 = vpop.f32.mrf.mxu0
        %v1936 = vpop.f32.mrf.mxu0
        %v1937 = vpop.f32.mrf.mxu0
        %1938 = vdwg.mxu0
        %v1939 = vmul.f32 %v1934, 0.35355338
        %v1940 = vsel %vm1602, %v1939, -1e+09
        %v1941 = vsel %vm1548, %v1940, -inf
        %1942 = vmax.xlane.f32.xlu0 %v1941
        %v1943 = vpop.xlane.xlu0 %1942
        %v1944 = vsub.f32 %v1940, %v1943
        %v1945 = vmul.f32 %v1944, 1.442695
        %v1946 = vpow.pop %v1945
        %v1947 = vsel %vm1548, %v1946, 0.0
        %1948 = vadd.xlane.f32.xlu0 %v1947
        %v1949 = vpop.xlane.xlu0 %1948
        %v1950 = vrcp.pop %v1949
        %v1951 = vmul.f32 %v1946, %v1950
        %v1952 = vpack.c.bf16 %v1951, %v1951
        %1953 = vrot.lane.b32.xlu0 %v1544, 40
        %v1954 = vpop.permute.xlu0 %1953
        %v1956 = vsel %vm1548, %v1952, 0
        %v1959 = vsel %vm1621, %v1954, 0
        %1961 = vmatprep.subr.bf16.mxu0 0
        %1962 = vmatpush1.bf16.msra.mxu0 0
        %1963 = vmatprep.subr.bf16.mxu0 0
        %1964 = vmatpush1.bf16.msra.mxu0 0
        %1965 = vmatprep.subr.bf16.mxu0 0
        %1966 = vmatpush1.bf16.msra.mxu0 0
        %1967 = vmatprep.subr.bf16.mxu0 0
        %1968 = vmatpush1.bf16.msra.mxu0 0
        %1969 = vmatprep.subr.bf16.mxu0 0
        %1970 = vmatpush1.bf16.msra.mxu0 0
        %1971 = vmatprep.subr.bf16.mxu0 0
        %1972 = vmatpush1.bf16.msra.mxu0 0
        %1973 = vmatprep.subr.bf16.mxu0 0
        %1974 = vmatpush1.bf16.msra.mxu0 0
        %1975 = vmatprep.subr.bf16.mxu0 0
        %1976 = vmatpush1.bf16.msra.mxu0 %v1959
        %1977 = vmatprep.subr.bf16.mxu0 0
        %1978 = vmatpush2.bf16.msra.mxu0 0
        %1979 = vmatprep.subr.bf16.mxu0 0
        %1980 = vmatpush2.bf16.msra.mxu0 0
        %1981 = vmatprep.subr.bf16.mxu0 0
        %1982 = vmatpush2.bf16.msra.mxu0 0
        %1983 = vmatprep.subr.bf16.mxu0 0
        %1984 = vmatpush2.bf16.msra.mxu0 0
        %1985 = vmatprep.subr.bf16.mxu0 0
        %1986 = vmatpush2.bf16.msra.mxu0 0
        %1987 = vmatprep.subr.bf16.mxu0 0
        %1988 = vmatpush2.bf16.msra.mxu0 0
        %1989 = vmatprep.subr.bf16.mxu0 0
        %1990 = vmatpush2.bf16.msra.mxu0 0
        %1991 = vmatprep.subr.bf16.mxu0 0
        %1992 = vmatpush2.bf16.msra.mxu0 0
        %1993 = vmatprep.mubr.bf16.mxu0 0
        %1994 = vmatmul.mubr.bf16.gmra.mxu0 %v1956
        %v1995 = vpop.f32.mrf.mxu0
        %v1996 = vadd.f32 0.0, %v1995
        %v1997 = vpop.f32.mrf.mxu0
        %v1998 = vpop.f32.mrf.mxu0
        %v1999 = vpop.f32.mrf.mxu0
        %2000 = vdwg.mxu0
        %2002 = vrot.lane.b32.xlu0 %v1772, 8
        %v2003 = vpop.permute.xlu0 %2002
        %2006 = vrot.lane.b32.xlu0 %v1884, 16
        %v2007 = vpop.permute.xlu0 %2006
        %2010 = vrot.lane.b32.xlu0 %v1996, 24
        %v2011 = vpop.permute.xlu0 %2010
        %v2013 = vsel %vm1548, %v1660, %v2003
        %vm2014 = vcmask 130048
        %v2015 = vsel %vm2014, %v2013, %v2007
        %vm2016 = vcmask 195584
        %v2017 = vsel %vm2016, %v2015, %v2011
        %v2018 = vpack.c.bf16 %v2017, %v2017
        %v2020 = vlaneseq
        %v2021 = vshrl.u32 %v2020, 7
        %v2022 = vsub.s32 0, %v2021
        %v2023 = vrot.slane %v1481, %v2022
        %v2029 = vunpack.c.l.b16 %v1477
        %v2030 = vunpack.c.l.b16 %v1478
        %v2031 = vunpack.c.l.b16 %v1479
        %v2032 = vunpack.c.l.b16 %v1480
        %v2033 = vpack.c.b16 %v2030, %v2029
        %v2034 = vpack.c.b16 %v2032, %v2031
        %v2038 = vsel %vm1447, %v2018, 0
        %2040 = vmatprep.subr.bf16.mxu0 0
        %2041 = vmatpush1.bf16.msra.mxu0 0
        %2042 = vmatprep.subr.bf16.mxu0 0
        %2043 = vmatpush1.bf16.msra.mxu0 0
        %2044 = vmatprep.subr.bf16.mxu0 0
        %2045 = vmatpush1.bf16.msra.mxu0 0
        %2046 = vmatprep.subr.bf16.mxu0 0
        %2047 = vmatpush1.bf16.msra.mxu0 0
        %2048 = vmatprep.subr.bf16.mxu0 0
        %2049 = vmatpush1.bf16.msra.mxu0 0
        %2050 = vmatprep.subr.bf16.mxu0 0
        %2051 = vmatpush1.bf16.msra.mxu0 0
        %2052 = vmatprep.subr.bf16.mxu0 0
        %2053 = vmatpush1.bf16.msra.mxu0 %v2034
        %2054 = vmatprep.subr.bf16.mxu0 0
        %2055 = vmatpush1.bf16.msra.mxu0 %v2033
        %2056 = vmatprep.subr.bf16.mxu0 0
        %2057 = vmatpush2.bf16.msra.mxu0 0
        %2058 = vmatprep.subr.bf16.mxu0 0
        %2059 = vmatpush2.bf16.msra.mxu0 0
        %2060 = vmatprep.subr.bf16.mxu0 0
        %2061 = vmatpush2.bf16.msra.mxu0 0
        %2062 = vmatprep.subr.bf16.mxu0 0
        %2063 = vmatpush2.bf16.msra.mxu0 0
        %2064 = vmatprep.subr.bf16.mxu0 0
        %2065 = vmatpush2.bf16.msra.mxu0 0
        %2066 = vmatprep.subr.bf16.mxu0 0
        %2067 = vmatpush2.bf16.msra.mxu0 0
        %2068 = vmatprep.subr.bf16.mxu0 0
        %2069 = vmatpush2.bf16.msra.mxu0 0
        %2070 = vmatprep.subr.bf16.mxu0 0
        %2071 = vmatpush2.bf16.msra.mxu0 0
        %2072 = vmatprep.mubr.bf16.mxu0 0
        %2073 = vmatmul.mubr.bf16.gmra.mxu0 %v2038
        %v2074 = vpop.f32.mrf.mxu0
        %v2075 = vadd.f32 %v2023, %v2074
        %v2076 = vpop.f32.mrf.mxu0
        %v2077 = vpop.f32.mrf.mxu0
        %v2078 = vpop.f32.mrf.mxu0
        %2079 = vdwg.mxu0
        %v2080 = vadd.f32 %v1444, %v2075
        %s2081 = scalar_lea.vmem %s11, 2
        %v2082 = vld [vmem:[%s2081] sm:$0x3]
        %v2083 = vsel %vm1447, %v2080, 0.0
        %2084 = vadd.xlane.f32.xlu0 %v2083
        %v2085 = vpop.xlane.xlu0 %2084
        %v2086 = vmul.f32 %v2085, %v1451
        %v2087 = vsub.f32 %v2080, %v2086
        %v2088 = vmul.f32 %v2087, %v2087
        %v2089 = vsel %vm1447, %v2088, 0.0
        %2090 = vadd.xlane.f32.xlu0 %v2089
        %v2091 = vpop.xlane.xlu0 %2090
        %v2092 = vmul.f32 %v2091, %v1451
        %v2093 = vadd.f32 %v2092, 1e-05
        %v2094 = vrsqrt.pop %v2093
        %v2095 = vmul.f32 %v2087, %v2094
        %v2096 = vlaneseq
        %v2097 = vshrl.u32 %v2096, 7
        %v2098 = vsub.s32 0, %v2097
        %v2099 = vrot.slane %v2082, %v2098
        %v2100 = vmul.f32 %v2095, %v2099
        %v2101 = vlaneseq
        %v2102 = vshrl.u32 %v2101, 7
        %v2103 = vsub.s32 1, %v2102
        %v2104 = vrot.slane %v2082, %v2103
        %v2105 = vadd.f32 %v2100, %v2104
        %v2106 = vld [vmem:[%s21] sm:$0xf]
        %v2107 = vld [vmem:[%s21 + $0x4] sm:$0xf]
        %v2108 = vld [vmem:[%s21 + $0x8] sm:$0xf]
        %v2109 = vld [vmem:[%s21 + $0xc] sm:$0xf]
        %v2110 = vld [vmem:[%s23] sm:$0x1]
        %v2111 = vld [vmem:[%s25] sm:$0xf]
        %v2112 = vld [vmem:[%s25 + $0x4] sm:$0xf]
        %v2113 = vld [vmem:[%s25 + $0x8] sm:$0xf]
        %v2114 = vld [vmem:[%s25 + $0xc] sm:$0xf]
        %v2115 = vld [vmem:[%s25 + $0x10] sm:$0xf]
        %v2116 = vld [vmem:[%s25 + $0x14] sm:$0xf]
        %v2117 = vld [vmem:[%s25 + $0x18] sm:$0xf]
        %v2118 = vld [vmem:[%s25 + $0x1c] sm:$0xf]
        %v2119 = vld [vmem:[%s27] sm:$0x1]
        %v2120 = vpack.c.bf16 %v2105, %v2105
        %v2122 = vlaneseq
        %v2123 = vshrl.u32 %v2122, 7
        %v2124 = vsub.s32 0, %v2123
        %v2125 = vrot.slane %v2110, %v2124
        %v2131 = vunpack.c.l.b16 %v2106
        %v2132 = vunpack.c.l.b16 %v2107
        %v2133 = vunpack.c.l.b16 %v2108
        %v2134 = vunpack.c.l.b16 %v2109
        %v2135 = vpack.c.b16 %v2132, %v2131
        %v2136 = vpack.c.b16 %v2134, %v2133
        %v2140 = vsel %vm1447, %v2120, 0
        %2142 = vmatprep.subr.bf16.mxu0 0
        %2143 = vmatpush1.bf16.msra.mxu0 0
        %2144 = vmatprep.subr.bf16.mxu0 0
        %2145 = vmatpush1.bf16.msra.mxu0 0
        %2146 = vmatprep.subr.bf16.mxu0 0
        %2147 = vmatpush1.bf16.msra.mxu0 0
        %2148 = vmatprep.subr.bf16.mxu0 0
        %2149 = vmatpush1.bf16.msra.mxu0 0
        %2150 = vmatprep.subr.bf16.mxu0 0
        %2151 = vmatpush1.bf16.msra.mxu0 0
        %2152 = vmatprep.subr.bf16.mxu0 0
        %2153 = vmatpush1.bf16.msra.mxu0 0
        %2154 = vmatprep.subr.bf16.mxu0 0
        %2155 = vmatpush1.bf16.msra.mxu0 %v2136
        %2156 = vmatprep.subr.bf16.mxu0 0
        %2157 = vmatpush1.bf16.msra.mxu0 %v2135
        %2158 = vmatprep.subr.bf16.mxu0 0
        %2159 = vmatpush2.bf16.msra.mxu0 0
        %2160 = vmatprep.subr.bf16.mxu0 0
        %2161 = vmatpush2.bf16.msra.mxu0 0
        %2162 = vmatprep.subr.bf16.mxu0 0
        %2163 = vmatpush2.bf16.msra.mxu0 0
        %2164 = vmatprep.subr.bf16.mxu0 0
        %2165 = vmatpush2.bf16.msra.mxu0 0
        %2166 = vmatprep.subr.bf16.mxu0 0
        %2167 = vmatpush2.bf16.msra.mxu0 0
        %2168 = vmatprep.subr.bf16.mxu0 0
        %2169 = vmatpush2.bf16.msra.mxu0 0
        %2170 = vmatprep.subr.bf16.mxu0 0
        %2171 = vmatpush2.bf16.msra.mxu0 0
        %2172 = vmatprep.subr.bf16.mxu0 0
        %2173 = vmatpush2.bf16.msra.mxu0 0
        %2174 = vmatprep.mubr.bf16.mxu0 0
        %2175 = vmatmul.mubr.bf16.gmra.mxu0 %v2140
        %v2176 = vpop.f32.mrf.mxu0
        %v2177 = vadd.f32 %v2125, %v2176
        %v2178 = vpop.f32.mrf.mxu0
        %v2179 = vpop.f32.mrf.mxu0
        %v2180 = vpop.f32.mrf.mxu0
        %2181 = vdwg.mxu0
        %v2182 = vmax.f32 %v2177, 0.0
        %v2183 = vpack.c.bf16 %v2182, %v2182
        %v2185 = vlaneseq
        %v2186 = vshrl.u32 %v2185, 7
        %v2187 = vsub.s32 0, %v2186
        %v2188 = vrot.slane %v2119, %v2187
        %v2198 = vunpack.c.l.b16 %v2111
        %v2199 = vunpack.c.l.b16 %v2112
        %v2200 = vunpack.c.l.b16 %v2113
        %v2201 = vunpack.c.l.b16 %v2114
        %v2202 = vunpack.c.l.b16 %v2115
        %v2203 = vunpack.c.l.b16 %v2116
        %v2204 = vunpack.c.l.b16 %v2117
        %v2205 = vunpack.c.l.b16 %v2118
        %v2206 = vpack.c.b16 %v2199, %v2198
        %v2207 = vpack.c.b16 %v2201, %v2200
        %v2208 = vpack.c.b16 %v2203, %v2202
        %v2209 = vpack.c.b16 %v2205, %v2204
        %vm2214 = vcmask 523264
        %v2216 = vsel %vm2214, %v2183, 0
        %2218 = vmatprep.subr.bf16.mxu0 0
        %2219 = vmatpush1.bf16.msra.mxu0 0
        %2220 = vmatprep.subr.bf16.mxu0 0
        %2221 = vmatpush1.bf16.msra.mxu0 0
        %2222 = vmatprep.subr.bf16.mxu0 0
        %2223 = vmatpush1.bf16.msra.mxu0 0
        %2224 = vmatprep.subr.bf16.mxu0 0
        %2225 = vmatpush1.bf16.msra.mxu0 0
        %2226 = vmatprep.subr.bf16.mxu0 0
        %2227 = vmatpush1.bf16.msra.mxu0 %v2209
        %2228 = vmatprep.subr.bf16.mxu0 0
        %2229 = vmatpush1.bf16.msra.mxu0 %v2208
        %2230 = vmatprep.subr.bf16.mxu0 0
        %2231 = vmatpush1.bf16.msra.mxu0 %v2207
        %2232 = vmatprep.subr.bf16.mxu0 0
        %2233 = vmatpush1.bf16.msra.mxu0 %v2206
        %2234 = vmatprep.subr.bf16.mxu0 0
        %2235 = vmatpush2.bf16.msra.mxu0 0
        %2236 = vmatprep.subr.bf16.mxu0 0
        %2237 = vmatpush2.bf16.msra.mxu0 0
        %2238 = vmatprep.subr.bf16.mxu0 0
        %2239 = vmatpush2.bf16.msra.mxu0 0
        %2240 = vmatprep.subr.bf16.mxu0 0
        %2241 = vmatpush2.bf16.msra.mxu0 0
        %2242 = vmatprep.subr.bf16.mxu0 0
        %2243 = vmatpush2.bf16.msra.mxu0 0
        %2244 = vmatprep.subr.bf16.mxu0 0
        %2245 = vmatpush2.bf16.msra.mxu0 0
        %2246 = vmatprep.subr.bf16.mxu0 0
        %2247 = vmatpush2.bf16.msra.mxu0 0
        %2248 = vmatprep.subr.bf16.mxu0 0
        %2249 = vmatpush2.bf16.msra.mxu0 0
        %2250 = vmatprep.mubr.bf16.mxu0 0
        %2251 = vmatmul.mubr.bf16.gmra.mxu0 %v2216
        %v2252 = vpop.f32.mrf.mxu0
        %v2253 = vadd.f32 %v2188, %v2252
        %v2254 = vpop.f32.mrf.mxu0
        %v2255 = vpop.f32.mrf.mxu0
        %v2256 = vpop.f32.mrf.mxu0
        %2257 = vdwg.mxu0
        %v2258 = vadd.f32 %v2080, %v2253
        %s2259 = scalar_lea.vmem %s11, 4
        %v2260 = vld [vmem:[%s2259] sm:$0x3]
        %v2261 = vsel %vm1447, %v2258, 0.0
        %2262 = vadd.xlane.f32.xlu0 %v2261
        %v2263 = vpop.xlane.xlu0 %2262
        %v2264 = vmul.f32 %v2263, %v1451
        %v2265 = vsub.f32 %v2258, %v2264
        %v2266 = vmul.f32 %v2265, %v2265
        %v2267 = vsel %vm1447, %v2266, 0.0
        %2268 = vadd.xlane.f32.xlu0 %v2267
        %v2269 = vpop.xlane.xlu0 %2268
        %v2270 = vmul.f32 %v2269, %v1451
        %v2271 = vadd.f32 %v2270, 1e-05
        %v2272 = vrsqrt.pop %v2271
        %v2273 = vmul.f32 %v2265, %v2272
        %v2274 = vlaneseq
        %v2275 = vshrl.u32 %v2274, 7
        %v2276 = vsub.s32 0, %v2275
        %v2277 = vrot.slane %v2260, %v2276
        %v2278 = vmul.f32 %v2273, %v2277
        %v2279 = vlaneseq
        %v2280 = vshrl.u32 %v2279, 7
        %v2281 = vsub.s32 1, %v2280
        %v2282 = vrot.slane %v2260, %v2281
        %v2283 = vadd.f32 %v2278, %v2282
        %vm2284 = vcmask 57344
        %v2285 = vsel %vm2284, %v1445, 0.0
        %2286 = vadd.xlane.f32.xlu0 %v2285
        %v2287 = vpop.xlane.xlu0 %2286
        %v2288 = vmax.f32 %v2287, 1.0
        %v2290 = vsel %vm1548, %v1445, 0
        %2292 = vmatprep.subr.mxu0 0.0
        %2293 = vmatpush1.msra.mxu0 0.0
        %2294 = vmatprep.subr.mxu0 0.0
        %2295 = vmatpush1.msra.mxu0 0.0
        %2296 = vmatprep.subr.mxu0 0.0
        %2297 = vmatpush1.msra.mxu0 0.0
        %2298 = vmatprep.subr.mxu0 0.0
        %2299 = vmatpush1.msra.mxu0 0.0
        %2300 = vmatprep.subr.mxu0 0.0
        %2301 = vmatpush1.msra.mxu0 0.0
        %2302 = vmatprep.subr.mxu0 0.0
        %2303 = vmatpush1.msra.mxu0 0.0
        %2304 = vmatprep.subr.mxu0 0.0
        %2305 = vmatpush1.msra.mxu0 0.0
        %2306 = vmatprep.subr.mxu0 0.0
        %2307 = vmatpush1.msra.mxu0 0.0
        %2308 = vmatprep.subr.mxu0 0.0
        %2309 = vmatpush1.msra.mxu0 0.0
        %2310 = vmatprep.subr.mxu0 0.0
        %2311 = vmatpush1.msra.mxu0 0.0
        %2312 = vmatprep.subr.mxu0 0.0
        %2313 = vmatpush1.msra.mxu0 0.0
        %2314 = vmatprep.subr.mxu0 0.0
        %2315 = vmatpush1.msra.mxu0 0.0
        %2316 = vmatprep.subr.mxu0 0.0
        %2317 = vmatpush1.msra.mxu0 0.0
        %2318 = vmatprep.subr.mxu0 0.0
        %2319 = vmatpush1.msra.mxu0 0.0
        %2320 = vmatprep.subr.mxu0 0.0
        %2321 = vmatpush1.msra.mxu0 0.0
        %2322 = vmatprep.subr.mxu0 0.0
        %2323 = vmatpush1.msra.mxu0 %v2283
        %2324 = vmatprep.subr.mxu0 0.0
        %2325 = vmatpush2.msra.mxu0 0.0
        %2326 = vmatprep.subr.mxu0 0.0
        %2327 = vmatpush2.msra.mxu0 0.0
        %2328 = vmatprep.subr.mxu0 0.0
        %2329 = vmatpush2.msra.mxu0 0.0
        %2330 = vmatprep.subr.mxu0 0.0
        %2331 = vmatpush2.msra.mxu0 0.0
        %2332 = vmatprep.subr.mxu0 0.0
        %2333 = vmatpush2.msra.mxu0 0.0
        %2334 = vmatprep.subr.mxu0 0.0
        %2335 = vmatpush2.msra.mxu0 0.0
        %2336 = vmatprep.subr.mxu0 0.0
        %2337 = vmatpush2.msra.mxu0 0.0
        %2338 = vmatprep.subr.mxu0 0.0
        %2339 = vmatpush2.msra.mxu0 0.0
        %2340 = vmatprep.subr.mxu0 0.0
        %2341 = vmatpush2.msra.mxu0 0.0
        %2342 = vmatprep.subr.mxu0 0.0
        %2343 = vmatpush2.msra.mxu0 0.0
        %2344 = vmatprep.subr.mxu0 0.0
        %2345 = vmatpush2.msra.mxu0 0.0
        %2346 = vmatprep.subr.mxu0 0.0
        %2347 = vmatpush2.msra.mxu0 0.0
        %2348 = vmatprep.subr.mxu0 0.0
        %2349 = vmatpush2.msra.mxu0 0.0
        %2350 = vmatprep.subr.mxu0 0.0
        %2351 = vmatpush2.msra.mxu0 0.0
        %2352 = vmatprep.subr.mxu0 0.0
        %2353 = vmatpush2.msra.mxu0 0.0
        %2354 = vmatprep.subr.mxu0 0.0
        %2355 = vmatpush2.msra.mxu0 0.0
        %2356 = vmatprep.mubr.f32.mxu0 0.0
        %2357 = vmatmul.mubr.f32.gmra.mxu0 %v2290
        %v2358 = vpop.f32.mrf.mxu0
        %v2359 = vadd.f32 0.0, %v2358
        %v2360 = vpop.f32.mrf.mxu0
        %2361 = vdwg.mxu0
        %v2362 = vrcp.pop %v2288
        %v2363 = vmul.f32 %v2359, %v2362
        %v2364 = vld [vmem:[%s29] sm:$0xf]
        %v2365 = vld [vmem:[%s29 + $0x4] sm:$0xf]
        %v2366 = vld [vmem:[%s29 + $0x8] sm:$0xf]
        %v2367 = vld [vmem:[%s29 + $0xc] sm:$0xf]
        %v2368 = vpack.c.bf16 %v2363, %v2363
        %v2369 = vld [vmem:[%s31] sm:$0x1]
        %v2374 = vunpack.c.l.b16 %v2364
        %v2375 = vunpack.c.l.b16 %v2365
        %v2376 = vunpack.c.l.b16 %v2366
        %v2377 = vunpack.c.l.b16 %v2367
        %v2378 = vpack.c.b16 %v2375, %v2374
        %v2379 = vpack.c.b16 %v2377, %v2376
        %v2383 = vsel %vm1447, %v2368, 0
        %2385 = vmatprep.subr.bf16.mxu0 0
        %2386 = vmatpush1.bf16.msra.mxu0 0
        %2387 = vmatprep.subr.bf16.mxu0 0
        %2388 = vmatpush1.bf16.msra.mxu0 0
        %2389 = vmatprep.subr.bf16.mxu0 0
        %2390 = vmatpush1.bf16.msra.mxu0 0
        %2391 = vmatprep.subr.bf16.mxu0 0
        %2392 = vmatpush1.bf16.msra.mxu0 0
        %2393 = vmatprep.subr.bf16.mxu0 0
        %2394 = vmatpush1.bf16.msra.mxu0 0
        %2395 = vmatprep.subr.bf16.mxu0 0
        %2396 = vmatpush1.bf16.msra.mxu0 0
        %2397 = vmatprep.subr.bf16.mxu0 0
        %2398 = vmatpush1.bf16.msra.mxu0 %v2379
        %2399 = vmatprep.subr.bf16.mxu0 0
        %2400 = vmatpush1.bf16.msra.mxu0 %v2378
        %2401 = vmatprep.subr.bf16.mxu0 0
        %2402 = vmatpush2.bf16.msra.mxu0 0
        %2403 = vmatprep.subr.bf16.mxu0 0
        %2404 = vmatpush2.bf16.msra.mxu0 0
        %2405 = vmatprep.subr.bf16.mxu0 0
        %2406 = vmatpush2.bf16.msra.mxu0 0
        %2407 = vmatprep.subr.bf16.mxu0 0
        %2408 = vmatpush2.bf16.msra.mxu0 0
        %2409 = vmatprep.subr.bf16.mxu0 0
        %2410 = vmatpush2.bf16.msra.mxu0 0
        %2411 = vmatprep.subr.bf16.mxu0 0
        %2412 = vmatpush2.bf16.msra.mxu0 0
        %2413 = vmatprep.subr.bf16.mxu0 0
        %2414 = vmatpush2.bf16.msra.mxu0 0
        %2415 = vmatprep.subr.bf16.mxu0 0
        %2416 = vmatpush2.bf16.msra.mxu0 0
        %2417 = vmatprep.mubr.bf16.mxu0 0
        %2418 = vmatmul.mubr.bf16.gmra.mxu0 %v2383
        %v2419 = vpop.f32.mrf.mxu0
        %v2420 = vadd.f32 %v2369, %v2419
        %v2421 = vpop.f32.mrf.mxu0
        %v2422 = vpop.f32.mrf.mxu0
        %v2423 = vpop.f32.mrf.mxu0
        %2424 = vdwg.mxu0
        %v2425 = vmul.f32 %v2420, 0.5
        %v2426 = vmul.f32 %v2425, 1.442695
        %v2427 = vpow.pop %v2426
        %v2428 = vld [vmem:[%s1439] sm:$0x1]
        %v2430 = vlaneseq
        %v2431 = vshrl.u32 %v2430, 7
        %v2432 = vsub.s32 0, %v2431
        %v2433 = vrot.slane %v2428, %v2432
        %2434 = vrot.lane.b32.xlu0 %v2433, 16
        %v2435 = vpop.permute.xlu0 %2434
        %v2437 = vmul.f32 %v2427, %v2435
        %2439 = vrot.lane.b32.xlu0 %v2437, 112
        %v2440 = vpop.permute.xlu0 %2439
        %v2442 = vadd.f32 %v2420, %v2440
        %v2443 = vld [vmem:[%s33] sm:$0xf]
        %v2444 = vld [vmem:[%s33 + $0x4] sm:$0xf]
        %v2445 = vpack.c.bf16 %v2442, %v2442
        %v2446 = vld [vmem:[%s35] sm:$0x1]
        %v2449 = vunpack.c.l.b16 %v2443
        %v2450 = vunpack.c.l.b16 %v2444
        %v2451 = vpack.c.b16 %v2450, %v2449
        %v2454 = vsel %vm2014, %v2445, 0
        %2456 = vmatprep.subr.bf16.mxu0 0
        %2457 = vmatpush1.bf16.msra.mxu0 0
        %2458 = vmatprep.subr.bf16.mxu0 0
        %2459 = vmatpush1.bf16.msra.mxu0 0
        %2460 = vmatprep.subr.bf16.mxu0 0
        %2461 = vmatpush1.bf16.msra.mxu0 0
        %2462 = vmatprep.subr.bf16.mxu0 0
        %2463 = vmatpush1.bf16.msra.mxu0 0
        %2464 = vmatprep.subr.bf16.mxu0 0
        %2465 = vmatpush1.bf16.msra.mxu0 0
        %2466 = vmatprep.subr.bf16.mxu0 0
        %2467 = vmatpush1.bf16.msra.mxu0 0
        %2468 = vmatprep.subr.bf16.mxu0 0
        %2469 = vmatpush1.bf16.msra.mxu0 0
        %2470 = vmatprep.subr.bf16.mxu0 0
        %2471 = vmatpush1.bf16.msra.mxu0 %v2451
        %2472 = vmatprep.subr.bf16.mxu0 0
        %2473 = vmatpush2.bf16.msra.mxu0 0
        %2474 = vmatprep.subr.bf16.mxu0 0
        %2475 = vmatpush2.bf16.msra.mxu0 0
        %2476 = vmatprep.subr.bf16.mxu0 0
        %2477 = vmatpush2.bf16.msra.mxu0 0
        %2478 = vmatprep.subr.bf16.mxu0 0
        %2479 = vmatpush2.bf16.msra.mxu0 0
        %2480 = vmatprep.subr.bf16.mxu0 0
        %2481 = vmatpush2.bf16.msra.mxu0 0
        %2482 = vmatprep.subr.bf16.mxu0 0
        %2483 = vmatpush2.bf16.msra.mxu0 0
        %2484 = vmatprep.subr.bf16.mxu0 0
        %2485 = vmatpush2.bf16.msra.mxu0 0
        %2486 = vmatprep.subr.bf16.mxu0 0
        %2487 = vmatpush2.bf16.msra.mxu0 0
        %2488 = vmatprep.mubr.bf16.mxu0 0
        %2489 = vmatmul.mubr.bf16.gmra.mxu0 %v2454
        %v2490 = vpop.f32.mrf.mxu0
        %v2491 = vadd.f32 %v2446, %v2490
        %v2492 = vpop.f32.mrf.mxu0
        %v2493 = vpop.f32.mrf.mxu0
        %v2494 = vpop.f32.mrf.mxu0
        %2495 = vdwg.mxu0
        %v2496 = vlaneseq
        %v2497 = vshrl.u32 %v2496, 7
        %v2498 = vsub.s32 0, %v2497
        %v2499 = vrot.slane %v2491, %v2498
        %v2500 = vld [vmem:[%s37] sm:$0xf]
        %v2501 = vld [vmem:[%s37 + $0x4] sm:$0xf]
        %v2502 = vpack.c.bf16 %v2420, %v2420
        %v2503 = vld [vmem:[%s39] sm:$0x1]
        %v2506 = vunpack.c.l.b16 %v2500
        %v2507 = vunpack.c.l.b16 %v2501
        %v2508 = vpack.c.b16 %v2507, %v2506
        %v2511 = vsel %vm2014, %v2502, 0
        %2513 = vmatprep.subr.bf16.mxu0 0
        %2514 = vmatpush1.bf16.msra.mxu0 0
        %2515 = vmatprep.subr.bf16.mxu0 0
        %2516 = vmatpush1.bf16.msra.mxu0 0
        %2517 = vmatprep.subr.bf16.mxu0 0
        %2518 = vmatpush1.bf16.msra.mxu0 0
        %2519 = vmatprep.subr.bf16.mxu0 0
        %2520 = vmatpush1.bf16.msra.mxu0 0
        %2521 = vmatprep.subr.bf16.mxu0 0
        %2522 = vmatpush1.bf16.msra.mxu0 0
        %2523 = vmatprep.subr.bf16.mxu0 0
        %2524 = vmatpush1.bf16.msra.mxu0 0
        %2525 = vmatprep.subr.bf16.mxu0 0
        %2526 = vmatpush1.bf16.msra.mxu0 0
        %2527 = vmatprep.subr.bf16.mxu0 0
        %2528 = vmatpush1.bf16.msra.mxu0 %v2508
        %2529 = vmatprep.subr.bf16.mxu0 0
        %2530 = vmatpush2.bf16.msra.mxu0 0
        %2531 = vmatprep.subr.bf16.mxu0 0
        %2532 = vmatpush2.bf16.msra.mxu0 0
        %2533 = vmatprep.subr.bf16.mxu0 0
        %2534 = vmatpush2.bf16.msra.mxu0 0
        %2535 = vmatprep.subr.bf16.mxu0 0
        %2536 = vmatpush2.bf16.msra.mxu0 0
        %2537 = vmatprep.subr.bf16.mxu0 0
        %2538 = vmatpush2.bf16.msra.mxu0 0
        %2539 = vmatprep.subr.bf16.mxu0 0
        %2540 = vmatpush2.bf16.msra.mxu0 0
        %2541 = vmatprep.subr.bf16.mxu0 0
        %2542 = vmatpush2.bf16.msra.mxu0 0
        %2543 = vmatprep.subr.bf16.mxu0 0
        %2544 = vmatpush2.bf16.msra.mxu0 0
        %2545 = vmatprep.mubr.bf16.mxu0 0
        %2546 = vmatmul.mubr.bf16.gmra.mxu0 %v2511
        %v2547 = vpop.f32.mrf.mxu0
        %v2548 = vadd.f32 %v2503, %v2547
        %v2549 = vpop.f32.mrf.mxu0
        %v2550 = vpop.f32.mrf.mxu0
        %v2551 = vpop.f32.mrf.mxu0
        %2552 = vdwg.mxu0
        %v2553 = vld [vmem:[%s1429] sm:$0xff]
        %v2554 = vld [vmem:[%s1436] sm:$0xff]
        %v2555 = vld [vmem:[%s41] sm:$0x3]
        %v2556 = vsel %vm1447, %v2553, 0.0
        %2557 = vadd.xlane.f32.xlu0 %v2556
        %v2558 = vpop.xlane.xlu0 %2557
        %v2559 = vmul.f32 %v2558, %v1451
        %v2560 = vsub.f32 %v2553, %v2559
        %v2561 = vmul.f32 %v2560, %v2560
        %v2562 = vsel %vm1447, %v2561, 0.0
        %2563 = vadd.xlane.f32.xlu0 %v2562
        %v2564 = vpop.xlane.xlu0 %2563
        %v2565 = vmul.f32 %v2564, %v1451
        %v2566 = vadd.f32 %v2565, 1e-05
        %v2567 = vrsqrt.pop %v2566
        %v2568 = vmul.f32 %v2560, %v2567
        %v2569 = vlaneseq
        %v2570 = vshrl.u32 %v2569, 7
        %v2571 = vsub.s32 0, %v2570
        %v2572 = vrot.slane %v2555, %v2571
        %v2573 = vmul.f32 %v2568, %v2572
        %v2574 = vlaneseq
        %v2575 = vshrl.u32 %v2574, 7
        %v2576 = vsub.s32 1, %v2575
        %v2577 = vrot.slane %v2555, %v2576
        %v2578 = vadd.f32 %v2573, %v2577
        %v2579 = vld [vmem:[%s43] sm:$0xf]
        %v2580 = vld [vmem:[%s43 + $0x4] sm:$0xf]
        %v2581 = vld [vmem:[%s43 + $0x8] sm:$0xf]
        %v2582 = vld [vmem:[%s43 + $0xc] sm:$0xf]
        %v2583 = vld [vmem:[%s45] sm:$0x1]
        %v2584 = vld [vmem:[%s47] sm:$0xf]
        %v2585 = vld [vmem:[%s47 + $0x4] sm:$0xf]
        %v2586 = vld [vmem:[%s47 + $0x8] sm:$0xf]
        %v2587 = vld [vmem:[%s47 + $0xc] sm:$0xf]
        %v2588 = vld [vmem:[%s49] sm:$0x1]
        %v2589 = vpack.c.bf16 %v2578, %v2578
        %v2591 = vlaneseq
        %v2592 = vshrl.u32 %v2591, 7
        %v2593 = vsub.s32 0, %v2592
        %v2594 = vrot.slane %v2583, %v2593
        %v2600 = vunpack.c.l.b16 %v2579
        %v2601 = vunpack.c.l.b16 %v2580
        %v2602 = vunpack.c.l.b16 %v2581
        %v2603 = vunpack.c.l.b16 %v2582
        %v2604 = vpack.c.b16 %v2601, %v2600
        %v2605 = vpack.c.b16 %v2603, %v2602
        %v2609 = vsel %vm1447, %v2589, 0
        %2611 = vmatprep.subr.bf16.mxu0 0
        %2612 = vmatpush1.bf16.msra.mxu0 0
        %2613 = vmatprep.subr.bf16.mxu0 0
        %2614 = vmatpush1.bf16.msra.mxu0 0
        %2615 = vmatprep.subr.bf16.mxu0 0
        %2616 = vmatpush1.bf16.msra.mxu0 0
        %2617 = vmatprep.subr.bf16.mxu0 0
        %2618 = vmatpush1.bf16.msra.mxu0 0
        %2619 = vmatprep.subr.bf16.mxu0 0
        %2620 = vmatpush1.bf16.msra.mxu0 0
        %2621 = vmatprep.subr.bf16.mxu0 0
        %2622 = vmatpush1.bf16.msra.mxu0 0
        %2623 = vmatprep.subr.bf16.mxu0 0
        %2624 = vmatpush1.bf16.msra.mxu0 %v2605
        %2625 = vmatprep.subr.bf16.mxu0 0
        %2626 = vmatpush1.bf16.msra.mxu0 %v2604
        %2627 = vmatprep.subr.bf16.mxu0 0
        %2628 = vmatpush2.bf16.msra.mxu0 0
        %2629 = vmatprep.subr.bf16.mxu0 0
        %2630 = vmatpush2.bf16.msra.mxu0 0
        %2631 = vmatprep.subr.bf16.mxu0 0
        %2632 = vmatpush2.bf16.msra.mxu0 0
        %2633 = vmatprep.subr.bf16.mxu0 0
        %2634 = vmatpush2.bf16.msra.mxu0 0
        %2635 = vmatprep.subr.bf16.mxu0 0
        %2636 = vmatpush2.bf16.msra.mxu0 0
        %2637 = vmatprep.subr.bf16.mxu0 0
        %2638 = vmatpush2.bf16.msra.mxu0 0
        %2639 = vmatprep.subr.bf16.mxu0 0
        %2640 = vmatpush2.bf16.msra.mxu0 0
        %2641 = vmatprep.subr.bf16.mxu0 0
        %2642 = vmatpush2.bf16.msra.mxu0 0
        %2643 = vmatprep.mubr.bf16.mxu0 0
        %2644 = vmatmul.mubr.bf16.gmra.mxu0 %v2609
        %v2645 = vpop.f32.mrf.mxu0
        %v2646 = vadd.f32 %v2594, %v2645
        %v2647 = vpop.f32.mrf.mxu0
        %v2648 = vpop.f32.mrf.mxu0
        %v2649 = vpop.f32.mrf.mxu0
        %2650 = vdwg.mxu0
        %v2651 = vpack.c.bf16 %v2646, %v2646
        %2653 = vrot.lane.b32.xlu0 %v2651, 96
        %v2654 = vpop.permute.xlu0 %2653
        %v2656 = vsel %vm1548, %v2651, 0
        %v2659 = vsel %vm1548, %v2654, 0
        %2661 = vmatprep.subr.bf16.mxu0 0
        %2662 = vmatpush1.bf16.xpose.msra.mxu0 0
        %2663 = vmatprep.subr.bf16.mxu0 0
        %2664 = vmatpush1.bf16.xpose.msra.mxu0 0
        %2665 = vmatprep.subr.bf16.mxu0 0
        %2666 = vmatpush1.bf16.xpose.msra.mxu0 0
        %2667 = vmatprep.subr.bf16.mxu0 0
        %2668 = vmatpush1.bf16.xpose.msra.mxu0 0
        %2669 = vmatprep.subr.bf16.mxu0 0
        %2670 = vmatpush1.bf16.xpose.msra.mxu0 0
        %2671 = vmatprep.subr.bf16.mxu0 0
        %2672 = vmatpush1.bf16.xpose.msra.mxu0 0
        %2673 = vmatprep.subr.bf16.mxu0 0
        %2674 = vmatpush1.bf16.xpose.msra.mxu0 0
        %2675 = vmatprep.subr.bf16.mxu0 0
        %2676 = vmatpush1.bf16.xpose.msra.mxu0 %v2659
        %2677 = vmatprep.subr.bf16.mxu0 0
        %2678 = vmatpush2.bf16.xpose.msra.mxu0 0
        %2679 = vmatprep.subr.bf16.mxu0 0
        %2680 = vmatpush2.bf16.xpose.msra.mxu0 0
        %2681 = vmatprep.subr.bf16.mxu0 0
        %2682 = vmatpush2.bf16.xpose.msra.mxu0 0
        %2683 = vmatprep.subr.bf16.mxu0 0
        %2684 = vmatpush2.bf16.xpose.msra.mxu0 0
        %2685 = vmatprep.subr.bf16.mxu0 0
        %2686 = vmatpush2.bf16.xpose.msra.mxu0 0
        %2687 = vmatprep.subr.bf16.mxu0 0
        %2688 = vmatpush2.bf16.xpose.msra.mxu0 0
        %2689 = vmatprep.subr.bf16.mxu0 0
        %2690 = vmatpush2.bf16.xpose.msra.mxu0 0
        %2691 = vmatprep.subr.bf16.mxu0 0
        %2692 = vmatpush2.bf16.xpose.msra.mxu0 0
        %2693 = vmatprep.mubr.bf16.mxu0 0
        %2694 = vmatmul.mubr.bf16.gmra.mxu0 %v2656
        %v2695 = vpop.f32.mrf.mxu0
        %v2696 = vadd.f32 0.0, %v2695
        %v2697 = vpop.f32.mrf.mxu0
        %v2698 = vpop.f32.mrf.mxu0
        %v2699 = vpop.f32.mrf.mxu0
        %2700 = vdwg.mxu0
        %v2701 = vmul.f32 %v2696, 0.35355338
        %vm2702 = vcmp.gt.f32.partialorder %v2554, 0.0
        %v2703 = vsel %vm2702, %v2701, -1e+09
        %v2704 = vsel %vm1548, %v2703, -inf
        %2705 = vmax.xlane.f32.xlu0 %v2704
        %v2706 = vpop.xlane.xlu0 %2705
        %v2707 = vsub.f32 %v2703, %v2706
        %v2708 = vmul.f32 %v2707, 1.442695
        %v2709 = vpow.pop %v2708
        %v2710 = vsel %vm1548, %v2709, 0.0
        %2711 = vadd.xlane.f32.xlu0 %v2710
        %v2712 = vpop.xlane.xlu0 %2711
        %v2713 = vrcp.pop %v2712
        %v2714 = vmul.f32 %v2709, %v2713
        %v2715 = vpack.c.bf16 %v2714, %v2714
        %2716 = vrot.lane.b32.xlu0 %v2651, 64
        %v2717 = vpop.permute.xlu0 %2716
        %v2719 = vsel %vm1548, %v2715, 0
        %v2722 = vsel %vm1621, %v2717, 0
        %2724 = vmatprep.subr.bf16.mxu0 0
        %2725 = vmatpush1.bf16.msra.mxu0 0
        %2726 = vmatprep.subr.bf16.mxu0 0
        %2727 = vmatpush1.bf16.msra.mxu0 0
        %2728 = vmatprep.subr.bf16.mxu0 0
        %2729 = vmatpush1.bf16.msra.mxu0 0
        %2730 = vmatprep.subr.bf16.mxu0 0
        %2731 = vmatpush1.bf16.msra.mxu0 0
        %2732 = vmatprep.subr.bf16.mxu0 0
        %2733 = vmatpush1.bf16.msra.mxu0 0
        %2734 = vmatprep.subr.bf16.mxu0 0
        %2735 = vmatpush1.bf16.msra.mxu0 0
        %2736 = vmatprep.subr.bf16.mxu0 0
        %2737 = vmatpush1.bf16.msra.mxu0 0
        %2738 = vmatprep.subr.bf16.mxu0 0
        %2739 = vmatpush1.bf16.msra.mxu0 %v2722
        %2740 = vmatprep.subr.bf16.mxu0 0
        %2741 = vmatpush2.bf16.msra.mxu0 0
        %2742 = vmatprep.subr.bf16.mxu0 0
        %2743 = vmatpush2.bf16.msra.mxu0 0
        %2744 = vmatprep.subr.bf16.mxu0 0
        %2745 = vmatpush2.bf16.msra.mxu0 0
        %2746 = vmatprep.subr.bf16.mxu0 0
        %2747 = vmatpush2.bf16.msra.mxu0 0
        %2748 = vmatprep.subr.bf16.mxu0 0
        %2749 = vmatpush2.bf16.msra.mxu0 0
        %2750 = vmatprep.subr.bf16.mxu0 0
        %2751 = vmatpush2.bf16.msra.mxu0 0
        %2752 = vmatprep.subr.bf16.mxu0 0
        %2753 = vmatpush2.bf16.msra.mxu0 0
        %2754 = vmatprep.subr.bf16.mxu0 0
        %2755 = vmatpush2.bf16.msra.mxu0 0
        %2756 = vmatprep.mubr.bf16.mxu0 0
        %2757 = vmatmul.mubr.bf16.gmra.mxu0 %v2719
        %v2758 = vpop.f32.mrf.mxu0
        %v2759 = vadd.f32 0.0, %v2758
        %v2760 = vpop.f32.mrf.mxu0
        %v2761 = vpop.f32.mrf.mxu0
        %v2762 = vpop.f32.mrf.mxu0
        %2763 = vdwg.mxu0
        %2764 = vrot.lane.b32.xlu0 %v2651, 120
        %v2765 = vpop.permute.xlu0 %2764
        %2766 = vrot.lane.b32.xlu0 %v2651, 88
        %v2767 = vpop.permute.xlu0 %2766
        %v2769 = vsel %vm1548, %v2765, 0
        %v2772 = vsel %vm1548, %v2767, 0
        %2774 = vmatprep.subr.bf16.mxu0 0
        %2775 = vmatpush1.bf16.xpose.msra.mxu0 0
        %2776 = vmatprep.subr.bf16.mxu0 0
        %2777 = vmatpush1.bf16.xpose.msra.mxu0 0
        %2778 = vmatprep.subr.bf16.mxu0 0
        %2779 = vmatpush1.bf16.xpose.msra.mxu0 0
        %2780 = vmatprep.subr.bf16.mxu0 0
        %2781 = vmatpush1.bf16.xpose.msra.mxu0 0
        %2782 = vmatprep.subr.bf16.mxu0 0
        %2783 = vmatpush1.bf16.xpose.msra.mxu0 0
        %2784 = vmatprep.subr.bf16.mxu0 0
        %2785 = vmatpush1.bf16.xpose.msra.mxu0 0
        %2786 = vmatprep.subr.bf16.mxu0 0
        %2787 = vmatpush1.bf16.xpose.msra.mxu0 0
        %2788 = vmatprep.subr.bf16.mxu0 0
        %2789 = vmatpush1.bf16.xpose.msra.mxu0 %v2772
        %2790 = vmatprep.subr.bf16.mxu0 0
        %2791 = vmatpush2.bf16.xpose.msra.mxu0 0
        %2792 = vmatprep.subr.bf16.mxu0 0
        %2793 = vmatpush2.bf16.xpose.msra.mxu0 0
        %2794 = vmatprep.subr.bf16.mxu0 0
        %2795 = vmatpush2.bf16.xpose.msra.mxu0 0
        %2796 = vmatprep.subr.bf16.mxu0 0
        %2797 = vmatpush2.bf16.xpose.msra.mxu0 0
        %2798 = vmatprep.subr.bf16.mxu0 0
        %2799 = vmatpush2.bf16.xpose.msra.mxu0 0
        %2800 = vmatprep.subr.bf16.mxu0 0
        %2801 = vmatpush2.bf16.xpose.msra.mxu0 0
        %2802 = vmatprep.subr.bf16.mxu0 0
        %2803 = vmatpush2.bf16.xpose.msra.mxu0 0
        %2804 = vmatprep.subr.bf16.mxu0 0
        %2805 = vmatpush2.bf16.xpose.msra.mxu0 0
        %2806 = vmatprep.mubr.bf16.mxu0 0
        %2807 = vmatmul.mubr.bf16.gmra.mxu0 %v2769
        %v2808 = vpop.f32.mrf.mxu0
        %v2809 = vadd.f32 0.0, %v2808
        %v2810 = vpop.f32.mrf.mxu0
        %v2811 = vpop.f32.mrf.mxu0
        %v2812 = vpop.f32.mrf.mxu0
        %2813 = vdwg.mxu0
        %v2814 = vmul.f32 %v2809, 0.35355338
        %v2815 = vsel %vm2702, %v2814, -1e+09
        %v2816 = vsel %vm1548, %v2815, -inf
        %2817 = vmax.xlane.f32.xlu0 %v2816
        %v2818 = vpop.xlane.xlu0 %2817
        %v2819 = vsub.f32 %v2815, %v2818
        %v2820 = vmul.f32 %v2819, 1.442695
        %v2821 = vpow.pop %v2820
        %v2822 = vsel %vm1548, %v2821, 0.0
        %2823 = vadd.xlane.f32.xlu0 %v2822
        %v2824 = vpop.xlane.xlu0 %2823
        %v2825 = vrcp.pop %v2824
        %v2826 = vmul.f32 %v2821, %v2825
        %v2827 = vpack.c.bf16 %v2826, %v2826
        %2828 = vrot.lane.b32.xlu0 %v2651, 56
        %v2829 = vpop.permute.xlu0 %2828
        %v2831 = vsel %vm1548, %v2827, 0
        %v2834 = vsel %vm1621, %v2829, 0
        %2836 = vmatprep.subr.bf16.mxu0 0
        %2837 = vmatpush1.bf16.msra.mxu0 0
        %2838 = vmatprep.subr.bf16.mxu0 0
        %2839 = vmatpush1.bf16.msra.mxu0 0
        %2840 = vmatprep.subr.bf16.mxu0 0
        %2841 = vmatpush1.bf16.msra.mxu0 0
        %2842 = vmatprep.subr.bf16.mxu0 0
        %2843 = vmatpush1.bf16.msra.mxu0 0
        %2844 = vmatprep.subr.bf16.mxu0 0
        %2845 = vmatpush1.bf16.msra.mxu0 0
        %2846 = vmatprep.subr.bf16.mxu0 0
        %2847 = vmatpush1.bf16.msra.mxu0 0
        %2848 = vmatprep.subr.bf16.mxu0 0
        %2849 = vmatpush1.bf16.msra.mxu0 0
        %2850 = vmatprep.subr.bf16.mxu0 0
        %2851 = vmatpush1.bf16.msra.mxu0 %v2834
        %2852 = vmatprep.subr.bf16.mxu0 0
        %2853 = vmatpush2.bf16.msra.mxu0 0
        %2854 = vmatprep.subr.bf16.mxu0 0
        %2855 = vmatpush2.bf16.msra.mxu0 0
        %2856 = vmatprep.subr.bf16.mxu0 0
        %2857 = vmatpush2.bf16.msra.mxu0 0
        %2858 = vmatprep.subr.bf16.mxu0 0
        %2859 = vmatpush2.bf16.msra.mxu0 0
        %2860 = vmatprep.subr.bf16.mxu0 0
        %2861 = vmatpush2.bf16.msra.mxu0 0
        %2862 = vmatprep.subr.bf16.mxu0 0
        %2863 = vmatpush2.bf16.msra.mxu0 0
        %2864 = vmatprep.subr.bf16.mxu0 0
        %2865 = vmatpush2.bf16.msra.mxu0 0
        %2866 = vmatprep.subr.bf16.mxu0 0
        %2867 = vmatpush2.bf16.msra.mxu0 0
        %2868 = vmatprep.mubr.bf16.mxu0 0
        %2869 = vmatmul.mubr.bf16.gmra.mxu0 %v2831
        %v2870 = vpop.f32.mrf.mxu0
        %v2871 = vadd.f32 0.0, %v2870
        %v2872 = vpop.f32.mrf.mxu0
        %v2873 = vpop.f32.mrf.mxu0
        %v2874 = vpop.f32.mrf.mxu0
        %2875 = vdwg.mxu0
        %2876 = vrot.lane.b32.xlu0 %v2651, 112
        %v2877 = vpop.permute.xlu0 %2876
        %2878 = vrot.lane.b32.xlu0 %v2651, 80
        %v2879 = vpop.permute.xlu0 %2878
        %v2881 = vsel %vm1548, %v2877, 0
        %v2884 = vsel %vm1548, %v2879, 0
        %2886 = vmatprep.subr.bf16.mxu0 0
        %2887 = vmatpush1.bf16.xpose.msra.mxu0 0
        %2888 = vmatprep.subr.bf16.mxu0 0
        %2889 = vmatpush1.bf16.xpose.msra.mxu0 0
        %2890 = vmatprep.subr.bf16.mxu0 0
        %2891 = vmatpush1.bf16.xpose.msra.mxu0 0
        %2892 = vmatprep.subr.bf16.mxu0 0
        %2893 = vmatpush1.bf16.xpose.msra.mxu0 0
        %2894 = vmatprep.subr.bf16.mxu0 0
        %2895 = vmatpush1.bf16.xpose.msra.mxu0 0
        %2896 = vmatprep.subr.bf16.mxu0 0
        %2897 = vmatpush1.bf16.xpose.msra.mxu0 0
        %2898 = vmatprep.subr.bf16.mxu0 0
        %2899 = vmatpush1.bf16.xpose.msra.mxu0 0
        %2900 = vmatprep.subr.bf16.mxu0 0
        %2901 = vmatpush1.bf16.xpose.msra.mxu0 %v2884
        %2902 = vmatprep.subr.bf16.mxu0 0
        %2903 = vmatpush2.bf16.xpose.msra.mxu0 0
        %2904 = vmatprep.subr.bf16.mxu0 0
        %2905 = vmatpush2.bf16.xpose.msra.mxu0 0
        %2906 = vmatprep.subr.bf16.mxu0 0
        %2907 = vmatpush2.bf16.xpose.msra.mxu0 0
        %2908 = vmatprep.subr.bf16.mxu0 0
        %2909 = vmatpush2.bf16.xpose.msra.mxu0 0
        %2910 = vmatprep.subr.bf16.mxu0 0
        %2911 = vmatpush2.bf16.xpose.msra.mxu0 0
        %2912 = vmatprep.subr.bf16.mxu0 0
        %2913 = vmatpush2.bf16.xpose.msra.mxu0 0
        %2914 = vmatprep.subr.bf16.mxu0 0
        %2915 = vmatpush2.bf16.xpose.msra.mxu0 0
        %2916 = vmatprep.subr.bf16.mxu0 0
        %2917 = vmatpush2.bf16.xpose.msra.mxu0 0
        %2918 = vmatprep.mubr.bf16.mxu0 0
        %2919 = vmatmul.mubr.bf16.gmra.mxu0 %v2881
        %v2920 = vpop.f32.mrf.mxu0
        %v2921 = vadd.f32 0.0, %v2920
        %v2922 = vpop.f32.mrf.mxu0
        %v2923 = vpop.f32.mrf.mxu0
        %v2924 = vpop.f32.mrf.mxu0
        %2925 = vdwg.mxu0
        %v2926 = vmul.f32 %v2921, 0.35355338
        %v2927 = vsel %vm2702, %v2926, -1e+09
        %v2928 = vsel %vm1548, %v2927, -inf
        %2929 = vmax.xlane.f32.xlu0 %v2928
        %v2930 = vpop.xlane.xlu0 %2929
        %v2931 = vsub.f32 %v2927, %v2930
        %v2932 = vmul.f32 %v2931, 1.442695
        %v2933 = vpow.pop %v2932
        %v2934 = vsel %vm1548, %v2933, 0.0
        %2935 = vadd.xlane.f32.xlu0 %v2934
        %v2936 = vpop.xlane.xlu0 %2935
        %v2937 = vrcp.pop %v2936
        %v2938 = vmul.f32 %v2933, %v2937
        %v2939 = vpack.c.bf16 %v2938, %v2938
        %2940 = vrot.lane.b32.xlu0 %v2651, 48
        %v2941 = vpop.permute.xlu0 %2940
        %v2943 = vsel %vm1548, %v2939, 0
        %v2946 = vsel %vm1621, %v2941, 0
        %2948 = vmatprep.subr.bf16.mxu0 0
        %2949 = vmatpush1.bf16.msra.mxu0 0
        %2950 = vmatprep.subr.bf16.mxu0 0
        %2951 = vmatpush1.bf16.msra.mxu0 0
        %2952 = vmatprep.subr.bf16.mxu0 0
        %2953 = vmatpush1.bf16.msra.mxu0 0
        %2954 = vmatprep.subr.bf16.mxu0 0
        %2955 = vmatpush1.bf16.msra.mxu0 0
        %2956 = vmatprep.subr.bf16.mxu0 0
        %2957 = vmatpush1.bf16.msra.mxu0 0
        %2958 = vmatprep.subr.bf16.mxu0 0
        %2959 = vmatpush1.bf16.msra.mxu0 0
        %2960 = vmatprep.subr.bf16.mxu0 0
        %2961 = vmatpush1.bf16.msra.mxu0 0
        %2962 = vmatprep.subr.bf16.mxu0 0
        %2963 = vmatpush1.bf16.msra.mxu0 %v2946
        %2964 = vmatprep.subr.bf16.mxu0 0
        %2965 = vmatpush2.bf16.msra.mxu0 0
        %2966 = vmatprep.subr.bf16.mxu0 0
        %2967 = vmatpush2.bf16.msra.mxu0 0
        %2968 = vmatprep.subr.bf16.mxu0 0
        %2969 = vmatpush2.bf16.msra.mxu0 0
        %2970 = vmatprep.subr.bf16.mxu0 0
        %2971 = vmatpush2.bf16.msra.mxu0 0
        %2972 = vmatprep.subr.bf16.mxu0 0
        %2973 = vmatpush2.bf16.msra.mxu0 0
        %2974 = vmatprep.subr.bf16.mxu0 0
        %2975 = vmatpush2.bf16.msra.mxu0 0
        %2976 = vmatprep.subr.bf16.mxu0 0
        %2977 = vmatpush2.bf16.msra.mxu0 0
        %2978 = vmatprep.subr.bf16.mxu0 0
        %2979 = vmatpush2.bf16.msra.mxu0 0
        %2980 = vmatprep.mubr.bf16.mxu0 0
        %2981 = vmatmul.mubr.bf16.gmra.mxu0 %v2943
        %v2982 = vpop.f32.mrf.mxu0
        %v2983 = vadd.f32 0.0, %v2982
        %v2984 = vpop.f32.mrf.mxu0
        %v2985 = vpop.f32.mrf.mxu0
        %v2986 = vpop.f32.mrf.mxu0
        %2987 = vdwg.mxu0
        %2988 = vrot.lane.b32.xlu0 %v2651, 104
        %v2989 = vpop.permute.xlu0 %2988
        %2990 = vrot.lane.b32.xlu0 %v2651, 72
        %v2991 = vpop.permute.xlu0 %2990
        %v2993 = vsel %vm1548, %v2989, 0
        %v2996 = vsel %vm1548, %v2991, 0
        %2998 = vmatprep.subr.bf16.mxu0 0
        %2999 = vmatpush1.bf16.xpose.msra.mxu0 0
        %3000 = vmatprep.subr.bf16.mxu0 0
        %3001 = vmatpush1.bf16.xpose.msra.mxu0 0
        %3002 = vmatprep.subr.bf16.mxu0 0
        %3003 = vmatpush1.bf16.xpose.msra.mxu0 0
        %3004 = vmatprep.subr.bf16.mxu0 0
        %3005 = vmatpush1.bf16.xpose.msra.mxu0 0
        %3006 = vmatprep.subr.bf16.mxu0 0
        %3007 = vmatpush1.bf16.xpose.msra.mxu0 0
        %3008 = vmatprep.subr.bf16.mxu0 0
        %3009 = vmatpush1.bf16.xpose.msra.mxu0 0
        %3010 = vmatprep.subr.bf16.mxu0 0
        %3011 = vmatpush1.bf16.xpose.msra.mxu0 0
        %3012 = vmatprep.subr.bf16.mxu0 0
        %3013 = vmatpush1.bf16.xpose.msra.mxu0 %v2996
        %3014 = vmatprep.subr.bf16.mxu0 0
        %3015 = vmatpush2.bf16.xpose.msra.mxu0 0
        %3016 = vmatprep.subr.bf16.mxu0 0
        %3017 = vmatpush2.bf16.xpose.msra.mxu0 0
        %3018 = vmatprep.subr.bf16.mxu0 0
        %3019 = vmatpush2.bf16.xpose.msra.mxu0 0
        %3020 = vmatprep.subr.bf16.mxu0 0
        %3021 = vmatpush2.bf16.xpose.msra.mxu0 0
        %3022 = vmatprep.subr.bf16.mxu0 0
        %3023 = vmatpush2.bf16.xpose.msra.mxu0 0
        %3024 = vmatprep.subr.bf16.mxu0 0
        %3025 = vmatpush2.bf16.xpose.msra.mxu0 0
        %3026 = vmatprep.subr.bf16.mxu0 0
        %3027 = vmatpush2.bf16.xpose.msra.mxu0 0
        %3028 = vmatprep.subr.bf16.mxu0 0
        %3029 = vmatpush2.bf16.xpose.msra.mxu0 0
        %3030 = vmatprep.mubr.bf16.mxu0 0
        %3031 = vmatmul.mubr.bf16.gmra.mxu0 %v2993
        %v3032 = vpop.f32.mrf.mxu0
        %v3033 = vadd.f32 0.0, %v3032
        %v3034 = vpop.f32.mrf.mxu0
        %v3035 = vpop.f32.mrf.mxu0
        %v3036 = vpop.f32.mrf.mxu0
        %3037 = vdwg.mxu0
        %v3038 = vmul.f32 %v3033, 0.35355338
        %v3039 = vsel %vm2702, %v3038, -1e+09
        %v3040 = vsel %vm1548, %v3039, -inf
        %3041 = vmax.xlane.f32.xlu0 %v3040
        %v3042 = vpop.xlane.xlu0 %3041
        %v3043 = vsub.f32 %v3039, %v3042
        %v3044 = vmul.f32 %v3043, 1.442695
        %v3045 = vpow.pop %v3044
        %v3046 = vsel %vm1548, %v3045, 0.0
        %3047 = vadd.xlane.f32.xlu0 %v3046
        %v3048 = vpop.xlane.xlu0 %3047
        %v3049 = vrcp.pop %v3048
        %v3050 = vmul.f32 %v3045, %v3049
        %v3051 = vpack.c.bf16 %v3050, %v3050
        %3052 = vrot.lane.b32.xlu0 %v2651, 40
        %v3053 = vpop.permute.xlu0 %3052
        %v3055 = vsel %vm1548, %v3051, 0
        %v3058 = vsel %vm1621, %v3053, 0
        %3060 = vmatprep.subr.bf16.mxu0 0
        %3061 = vmatpush1.bf16.msra.mxu0 0
        %3062 = vmatprep.subr.bf16.mxu0 0
        %3063 = vmatpush1.bf16.msra.mxu0 0
        %3064 = vmatprep.subr.bf16.mxu0 0
        %3065 = vmatpush1.bf16.msra.mxu0 0
        %3066 = vmatprep.subr.bf16.mxu0 0
        %3067 = vmatpush1.bf16.msra.mxu0 0
        %3068 = vmatprep.subr.bf16.mxu0 0
        %3069 = vmatpush1.bf16.msra.mxu0 0
        %3070 = vmatprep.subr.bf16.mxu0 0
        %3071 = vmatpush1.bf16.msra.mxu0 0
        %3072 = vmatprep.subr.bf16.mxu0 0
        %3073 = vmatpush1.bf16.msra.mxu0 0
        %3074 = vmatprep.subr.bf16.mxu0 0
        %3075 = vmatpush1.bf16.msra.mxu0 %v3058
        %3076 = vmatprep.subr.bf16.mxu0 0
        %3077 = vmatpush2.bf16.msra.mxu0 0
        %3078 = vmatprep.subr.bf16.mxu0 0
        %3079 = vmatpush2.bf16.msra.mxu0 0
        %3080 = vmatprep.subr.bf16.mxu0 0
        %3081 = vmatpush2.bf16.msra.mxu0 0
        %3082 = vmatprep.subr.bf16.mxu0 0
        %3083 = vmatpush2.bf16.msra.mxu0 0
        %3084 = vmatprep.subr.bf16.mxu0 0
        %3085 = vmatpush2.bf16.msra.mxu0 0
        %3086 = vmatprep.subr.bf16.mxu0 0
        %3087 = vmatpush2.bf16.msra.mxu0 0
        %3088 = vmatprep.subr.bf16.mxu0 0
        %3089 = vmatpush2.bf16.msra.mxu0 0
        %3090 = vmatprep.subr.bf16.mxu0 0
        %3091 = vmatpush2.bf16.msra.mxu0 0
        %3092 = vmatprep.mubr.bf16.mxu0 0
        %3093 = vmatmul.mubr.bf16.gmra.mxu0 %v3055
        %v3094 = vpop.f32.mrf.mxu0
        %v3095 = vadd.f32 0.0, %v3094
        %v3096 = vpop.f32.mrf.mxu0
        %v3097 = vpop.f32.mrf.mxu0
        %v3098 = vpop.f32.mrf.mxu0
        %3099 = vdwg.mxu0
        %3101 = vrot.lane.b32.xlu0 %v2871, 8
        %v3102 = vpop.permute.xlu0 %3101
        %3105 = vrot.lane.b32.xlu0 %v2983, 16
        %v3106 = vpop.permute.xlu0 %3105
        %3109 = vrot.lane.b32.xlu0 %v3095, 24
        %v3110 = vpop.permute.xlu0 %3109
        %v3112 = vsel %vm1548, %v2759, %v3102
        %v3113 = vsel %vm2014, %v3112, %v3106
        %v3114 = vsel %vm2016, %v3113, %v3110
        %v3115 = vpack.c.bf16 %v3114, %v3114
        %v3117 = vlaneseq
        %v3118 = vshrl.u32 %v3117, 7
        %v3119 = vsub.s32 0, %v3118
        %v3120 = vrot.slane %v2588, %v3119
        %v3126 = vunpack.c.l.b16 %v2584
        %v3127 = vunpack.c.l.b16 %v2585
        %v3128 = vunpack.c.l.b16 %v2586
        %v3129 = vunpack.c.l.b16 %v2587
        %v3130 = vpack.c.b16 %v3127, %v3126
        %v3131 = vpack.c.b16 %v3129, %v3128
        %v3135 = vsel %vm1447, %v3115, 0
        %3137 = vmatprep.subr.bf16.mxu0 0
        %3138 = vmatpush1.bf16.msra.mxu0 0
        %3139 = vmatprep.subr.bf16.mxu0 0
        %3140 = vmatpush1.bf16.msra.mxu0 0
        %3141 = vmatprep.subr.bf16.mxu0 0
        %3142 = vmatpush1.bf16.msra.mxu0 0
        %3143 = vmatprep.subr.bf16.mxu0 0
        %3144 = vmatpush1.bf16.msra.mxu0 0
        %3145 = vmatprep.subr.bf16.mxu0 0
        %3146 = vmatpush1.bf16.msra.mxu0 0
        %3147 = vmatprep.subr.bf16.mxu0 0
        %3148 = vmatpush1.bf16.msra.mxu0 0
        %3149 = vmatprep.subr.bf16.mxu0 0
        %3150 = vmatpush1.bf16.msra.mxu0 %v3131
        %3151 = vmatprep.subr.bf16.mxu0 0
        %3152 = vmatpush1.bf16.msra.mxu0 %v3130
        %3153 = vmatprep.subr.bf16.mxu0 0
        %3154 = vmatpush2.bf16.msra.mxu0 0
        %3155 = vmatprep.subr.bf16.mxu0 0
        %3156 = vmatpush2.bf16.msra.mxu0 0
        %3157 = vmatprep.subr.bf16.mxu0 0
        %3158 = vmatpush2.bf16.msra.mxu0 0
        %3159 = vmatprep.subr.bf16.mxu0 0
        %3160 = vmatpush2.bf16.msra.mxu0 0
        %3161 = vmatprep.subr.bf16.mxu0 0
        %3162 = vmatpush2.bf16.msra.mxu0 0
        %3163 = vmatprep.subr.bf16.mxu0 0
        %3164 = vmatpush2.bf16.msra.mxu0 0
        %3165 = vmatprep.subr.bf16.mxu0 0
        %3166 = vmatpush2.bf16.msra.mxu0 0
        %3167 = vmatprep.subr.bf16.mxu0 0
        %3168 = vmatpush2.bf16.msra.mxu0 0
        %3169 = vmatprep.mubr.bf16.mxu0 0
        %3170 = vmatmul.mubr.bf16.gmra.mxu0 %v3135
        %v3171 = vpop.f32.mrf.mxu0
        %v3172 = vadd.f32 %v3120, %v3171
        %v3173 = vpop.f32.mrf.mxu0
        %v3174 = vpop.f32.mrf.mxu0
        %v3175 = vpop.f32.mrf.mxu0
        %3176 = vdwg.mxu0
        %v3177 = vadd.f32 %v2553, %v3172
        %s3178 = scalar_lea.vmem %s41, 2
        %v3179 = vld [vmem:[%s3178] sm:$0x3]
        %v3180 = vsel %vm1447, %v3177, 0.0
        %3181 = vadd.xlane.f32.xlu0 %v3180
        %v3182 = vpop.xlane.xlu0 %3181
        %v3183 = vmul.f32 %v3182, %v1451
        %v3184 = vsub.f32 %v3177, %v3183
        %v3185 = vmul.f32 %v3184, %v3184
        %v3186 = vsel %vm1447, %v3185, 0.0
        %3187 = vadd.xlane.f32.xlu0 %v3186
        %v3188 = vpop.xlane.xlu0 %3187
        %v3189 = vmul.f32 %v3188, %v1451
        %v3190 = vadd.f32 %v3189, 1e-05
        %v3191 = vrsqrt.pop %v3190
        %v3192 = vmul.f32 %v3184, %v3191
        %v3193 = vlaneseq
        %v3194 = vshrl.u32 %v3193, 7
        %v3195 = vsub.s32 0, %v3194
        %v3196 = vrot.slane %v3179, %v3195
        %v3197 = vmul.f32 %v3192, %v3196
        %v3198 = vlaneseq
        %v3199 = vshrl.u32 %v3198, 7
        %v3200 = vsub.s32 1, %v3199
        %v3201 = vrot.slane %v3179, %v3200
        %v3202 = vadd.f32 %v3197, %v3201
        %v3203 = vld [vmem:[%s51] sm:$0xf]
        %v3204 = vld [vmem:[%s51 + $0x4] sm:$0xf]
        %v3205 = vld [vmem:[%s51 + $0x8] sm:$0xf]
        %v3206 = vld [vmem:[%s51 + $0xc] sm:$0xf]
        %v3207 = vld [vmem:[%s53] sm:$0x1]
        %v3208 = vld [vmem:[%s55] sm:$0xf]
        %v3209 = vld [vmem:[%s55 + $0x4] sm:$0xf]
        %v3210 = vld [vmem:[%s55 + $0x8] sm:$0xf]
        %v3211 = vld [vmem:[%s55 + $0xc] sm:$0xf]
        %v3212 = vld [vmem:[%s57] sm:$0x1]
        %v3213 = vld [vmem:[%s59] sm:$0xf]
        %v3214 = vld [vmem:[%s59 + $0x4] sm:$0xf]
        %v3215 = vld [vmem:[%s59 + $0x8] sm:$0xf]
        %v3216 = vld [vmem:[%s59 + $0xc] sm:$0xf]
        %v3217 = vld [vmem:[%s61] sm:$0x1]
        %v3218 = vpack.c.bf16 %v3202, %v3202
        %v3220 = vlaneseq
        %v3221 = vshrl.u32 %v3220, 7
        %v3222 = vsub.s32 0, %v3221
        %v3223 = vrot.slane %v3207, %v3222
        %v3229 = vunpack.c.l.b16 %v3203
        %v3230 = vunpack.c.l.b16 %v3204
        %v3231 = vunpack.c.l.b16 %v3205
        %v3232 = vunpack.c.l.b16 %v3206
        %v3233 = vpack.c.b16 %v3230, %v3229
        %v3234 = vpack.c.b16 %v3232, %v3231
        %v3238 = vsel %vm1447, %v3218, 0
        %3240 = vmatprep.subr.bf16.mxu0 0
        %3241 = vmatpush1.bf16.msra.mxu0 0
        %3242 = vmatprep.subr.bf16.mxu0 0
        %3243 = vmatpush1.bf16.msra.mxu0 0
        %3244 = vmatprep.subr.bf16.mxu0 0
        %3245 = vmatpush1.bf16.msra.mxu0 0
        %3246 = vmatprep.subr.bf16.mxu0 0
        %3247 = vmatpush1.bf16.msra.mxu0 0
        %3248 = vmatprep.subr.bf16.mxu0 0
        %3249 = vmatpush1.bf16.msra.mxu0 0
        %3250 = vmatprep.subr.bf16.mxu0 0
        %3251 = vmatpush1.bf16.msra.mxu0 0
        %3252 = vmatprep.subr.bf16.mxu0 0
        %3253 = vmatpush1.bf16.msra.mxu0 %v3234
        %3254 = vmatprep.subr.bf16.mxu0 0
        %3255 = vmatpush1.bf16.msra.mxu0 %v3233
        %3256 = vmatprep.subr.bf16.mxu0 0
        %3257 = vmatpush2.bf16.msra.mxu0 0
        %3258 = vmatprep.subr.bf16.mxu0 0
        %3259 = vmatpush2.bf16.msra.mxu0 0
        %3260 = vmatprep.subr.bf16.mxu0 0
        %3261 = vmatpush2.bf16.msra.mxu0 0
        %3262 = vmatprep.subr.bf16.mxu0 0
        %3263 = vmatpush2.bf16.msra.mxu0 0
        %3264 = vmatprep.subr.bf16.mxu0 0
        %3265 = vmatpush2.bf16.msra.mxu0 0
        %3266 = vmatprep.subr.bf16.mxu0 0
        %3267 = vmatpush2.bf16.msra.mxu0 0
        %3268 = vmatprep.subr.bf16.mxu0 0
        %3269 = vmatpush2.bf16.msra.mxu0 0
        %3270 = vmatprep.subr.bf16.mxu0 0
        %3271 = vmatpush2.bf16.msra.mxu0 0
        %3272 = vmatprep.mubr.bf16.mxu0 0
        %3273 = vmatmul.mubr.bf16.gmra.mxu0 %v3238
        %v3274 = vpop.f32.mrf.mxu0
        %v3275 = vadd.f32 %v3223, %v3274
        %v3276 = vpop.f32.mrf.mxu0
        %v3277 = vpop.f32.mrf.mxu0
        %v3278 = vpop.f32.mrf.mxu0
        %3279 = vdwg.mxu0
        %v3280 = vpack.c.bf16 %v2499, %v2499
        %v3282 = vlaneseq
        %v3283 = vshrl.u32 %v3282, 7
        %v3284 = vsub.s32 0, %v3283
        %v3285 = vrot.slane %v3212, %v3284
        %v3291 = vunpack.c.l.b16 %v3208
        %v3292 = vunpack.c.l.b16 %v3209
        %v3293 = vunpack.c.l.b16 %v3210
        %v3294 = vunpack.c.l.b16 %v3211
        %v3295 = vpack.c.b16 %v3292, %v3291
        %v3296 = vpack.c.b16 %v3294, %v3293
        %v3300 = vsel %vm1447, %v3280, 0
        %3302 = vmatprep.subr.bf16.mxu0 0
        %3303 = vmatpush1.bf16.msra.mxu0 0
        %3304 = vmatprep.subr.bf16.mxu0 0
        %3305 = vmatpush1.bf16.msra.mxu0 0
        %3306 = vmatprep.subr.bf16.mxu0 0
        %3307 = vmatpush1.bf16.msra.mxu0 0
        %3308 = vmatprep.subr.bf16.mxu0 0
        %3309 = vmatpush1.bf16.msra.mxu0 0
        %3310 = vmatprep.subr.bf16.mxu0 0
        %3311 = vmatpush1.bf16.msra.mxu0 0
        %3312 = vmatprep.subr.bf16.mxu0 0
        %3313 = vmatpush1.bf16.msra.mxu0 0
        %3314 = vmatprep.subr.bf16.mxu0 0
        %3315 = vmatpush1.bf16.msra.mxu0 %v3296
        %3316 = vmatprep.subr.bf16.mxu0 0
        %3317 = vmatpush1.bf16.msra.mxu0 %v3295
        %3318 = vmatprep.subr.bf16.mxu0 0
        %3319 = vmatpush2.bf16.msra.mxu0 0
        %3320 = vmatprep.subr.bf16.mxu0 0
        %3321 = vmatpush2.bf16.msra.mxu0 0
        %3322 = vmatprep.subr.bf16.mxu0 0
        %3323 = vmatpush2.bf16.msra.mxu0 0
        %3324 = vmatprep.subr.bf16.mxu0 0
        %3325 = vmatpush2.bf16.msra.mxu0 0
        %3326 = vmatprep.subr.bf16.mxu0 0
        %3327 = vmatpush2.bf16.msra.mxu0 0
        %3328 = vmatprep.subr.bf16.mxu0 0
        %3329 = vmatpush2.bf16.msra.mxu0 0
        %3330 = vmatprep.subr.bf16.mxu0 0
        %3331 = vmatpush2.bf16.msra.mxu0 0
        %3332 = vmatprep.subr.bf16.mxu0 0
        %3333 = vmatpush2.bf16.msra.mxu0 0
        %3334 = vmatprep.mubr.bf16.mxu0 0
        %3335 = vmatmul.mubr.bf16.gmra.mxu0 %v3300
        %v3336 = vpop.f32.mrf.mxu0
        %v3337 = vadd.f32 %v3285, %v3336
        %v3338 = vpop.f32.mrf.mxu0
        %v3339 = vpop.f32.mrf.mxu0
        %v3340 = vpop.f32.mrf.mxu0
        %3341 = vdwg.mxu0
        %v3342 = vpack.c.bf16 %v3275, %v3275
        %v3343 = vpack.c.bf16 %v3337, %v3337
        %v3345 = vsel %vm1548, %v3342, 0
        %v3348 = vsel %vm1548, %v3343, 0
        %3350 = vmatprep.subr.bf16.mxu0 0
        %3351 = vmatpush1.bf16.xpose.msra.mxu0 0
        %3352 = vmatprep.subr.bf16.mxu0 0
        %3353 = vmatpush1.bf16.xpose.msra.mxu0 0
        %3354 = vmatprep.subr.bf16.mxu0 0
        %3355 = vmatpush1.bf16.xpose.msra.mxu0 0
        %3356 = vmatprep.subr.bf16.mxu0 0
        %3357 = vmatpush1.bf16.xpose.msra.mxu0 0
        %3358 = vmatprep.subr.bf16.mxu0 0
        %3359 = vmatpush1.bf16.xpose.msra.mxu0 0
        %3360 = vmatprep.subr.bf16.mxu0 0
        %3361 = vmatpush1.bf16.xpose.msra.mxu0 0
        %3362 = vmatprep.subr.bf16.mxu0 0
        %3363 = vmatpush1.bf16.xpose.msra.mxu0 0
        %3364 = vmatprep.subr.bf16.mxu0 0
        %3365 = vmatpush1.bf16.xpose.msra.mxu0 %v3348
        %3366 = vmatprep.subr.bf16.mxu0 0
        %3367 = vmatpush2.bf16.xpose.msra.mxu0 0
        %3368 = vmatprep.subr.bf16.mxu0 0
        %3369 = vmatpush2.bf16.xpose.msra.mxu0 0
        %3370 = vmatprep.subr.bf16.mxu0 0
        %3371 = vmatpush2.bf16.xpose.msra.mxu0 0
        %3372 = vmatprep.subr.bf16.mxu0 0
        %3373 = vmatpush2.bf16.xpose.msra.mxu0 0
        %3374 = vmatprep.subr.bf16.mxu0 0
        %3375 = vmatpush2.bf16.xpose.msra.mxu0 0
        %3376 = vmatprep.subr.bf16.mxu0 0
        %3377 = vmatpush2.bf16.xpose.msra.mxu0 0
        %3378 = vmatprep.subr.bf16.mxu0 0
        %3379 = vmatpush2.bf16.xpose.msra.mxu0 0
        %3380 = vmatprep.subr.bf16.mxu0 0
        %3381 = vmatpush2.bf16.xpose.msra.mxu0 0
        %3382 = vmatprep.mubr.bf16.mxu0 0
        %3383 = vmatmul.mubr.bf16.gmra.mxu0 %v3345
        %v3384 = vpop.f32.mrf.mxu0
        %v3385 = vadd.f32 0.0, %v3384
        %v3386 = vpop.f32.mrf.mxu0
        %v3387 = vpop.f32.mrf.mxu0
        %v3388 = vpop.f32.mrf.mxu0
        %3389 = vdwg.mxu0
        %v3390 = vmul.f32 %v3385, 0.35355338
        %v3391 = vsel %vm1602, %v3390, -1e+09
        %v3392 = vsel %vm1548, %v3391, -inf
        %3393 = vmax.xlane.f32.xlu0 %v3392
        %v3394 = vpop.xlane.xlu0 %3393
        %v3395 = vsub.f32 %v3391, %v3394
        %v3396 = vmul.f32 %v3395, 1.442695
        %v3397 = vpow.pop %v3396
        %v3398 = vsel %vm1548, %v3397, 0.0
        %3399 = vadd.xlane.f32.xlu0 %v3398
        %v3400 = vpop.xlane.xlu0 %3399
        %v3401 = vrcp.pop %v3400
        %v3402 = vmul.f32 %v3397, %v3401
        %v3403 = vpack.c.bf16 %v3402, %v3402
        %3405 = vrot.lane.b32.xlu0 %v3343, 96
        %v3406 = vpop.permute.xlu0 %3405
        %v3408 = vsel %vm1548, %v3403, 0
        %v3411 = vsel %vm1621, %v3406, 0
        %3413 = vmatprep.subr.bf16.mxu0 0
        %3414 = vmatpush1.bf16.msra.mxu0 0
        %3415 = vmatprep.subr.bf16.mxu0 0
        %3416 = vmatpush1.bf16.msra.mxu0 0
        %3417 = vmatprep.subr.bf16.mxu0 0
        %3418 = vmatpush1.bf16.msra.mxu0 0
        %3419 = vmatprep.subr.bf16.mxu0 0
        %3420 = vmatpush1.bf16.msra.mxu0 0
        %3421 = vmatprep.subr.bf16.mxu0 0
        %3422 = vmatpush1.bf16.msra.mxu0 0
        %3423 = vmatprep.subr.bf16.mxu0 0
        %3424 = vmatpush1.bf16.msra.mxu0 0
        %3425 = vmatprep.subr.bf16.mxu0 0
        %3426 = vmatpush1.bf16.msra.mxu0 0
        %3427 = vmatprep.subr.bf16.mxu0 0
        %3428 = vmatpush1.bf16.msra.mxu0 %v3411
        %3429 = vmatprep.subr.bf16.mxu0 0
        %3430 = vmatpush2.bf16.msra.mxu0 0
        %3431 = vmatprep.subr.bf16.mxu0 0
        %3432 = vmatpush2.bf16.msra.mxu0 0
        %3433 = vmatprep.subr.bf16.mxu0 0
        %3434 = vmatpush2.bf16.msra.mxu0 0
        %3435 = vmatprep.subr.bf16.mxu0 0
        %3436 = vmatpush2.bf16.msra.mxu0 0
        %3437 = vmatprep.subr.bf16.mxu0 0
        %3438 = vmatpush2.bf16.msra.mxu0 0
        %3439 = vmatprep.subr.bf16.mxu0 0
        %3440 = vmatpush2.bf16.msra.mxu0 0
        %3441 = vmatprep.subr.bf16.mxu0 0
        %3442 = vmatpush2.bf16.msra.mxu0 0
        %3443 = vmatprep.subr.bf16.mxu0 0
        %3444 = vmatpush2.bf16.msra.mxu0 0
        %3445 = vmatprep.mubr.bf16.mxu0 0
        %3446 = vmatmul.mubr.bf16.gmra.mxu0 %v3408
        %v3447 = vpop.f32.mrf.mxu0
        %v3448 = vadd.f32 0.0, %v3447
        %v3449 = vpop.f32.mrf.mxu0
        %v3450 = vpop.f32.mrf.mxu0
        %v3451 = vpop.f32.mrf.mxu0
        %3452 = vdwg.mxu0
        %3454 = vrot.lane.b32.xlu0 %v3342, 120
        %v3455 = vpop.permute.xlu0 %3454
        %3456 = vrot.lane.b32.xlu0 %v3343, 120
        %v3457 = vpop.permute.xlu0 %3456
        %v3459 = vsel %vm1548, %v3455, 0
        %v3462 = vsel %vm1548, %v3457, 0
        %3464 = vmatprep.subr.bf16.mxu0 0
        %3465 = vmatpush1.bf16.xpose.msra.mxu0 0
        %3466 = vmatprep.subr.bf16.mxu0 0
        %3467 = vmatpush1.bf16.xpose.msra.mxu0 0
        %3468 = vmatprep.subr.bf16.mxu0 0
        %3469 = vmatpush1.bf16.xpose.msra.mxu0 0
        %3470 = vmatprep.subr.bf16.mxu0 0
        %3471 = vmatpush1.bf16.xpose.msra.mxu0 0
        %3472 = vmatprep.subr.bf16.mxu0 0
        %3473 = vmatpush1.bf16.xpose.msra.mxu0 0
        %3474 = vmatprep.subr.bf16.mxu0 0
        %3475 = vmatpush1.bf16.xpose.msra.mxu0 0
        %3476 = vmatprep.subr.bf16.mxu0 0
        %3477 = vmatpush1.bf16.xpose.msra.mxu0 0
        %3478 = vmatprep.subr.bf16.mxu0 0
        %3479 = vmatpush1.bf16.xpose.msra.mxu0 %v3462
        %3480 = vmatprep.subr.bf16.mxu0 0
        %3481 = vmatpush2.bf16.xpose.msra.mxu0 0
        %3482 = vmatprep.subr.bf16.mxu0 0
        %3483 = vmatpush2.bf16.xpose.msra.mxu0 0
        %3484 = vmatprep.subr.bf16.mxu0 0
        %3485 = vmatpush2.bf16.xpose.msra.mxu0 0
        %3486 = vmatprep.subr.bf16.mxu0 0
        %3487 = vmatpush2.bf16.xpose.msra.mxu0 0
        %3488 = vmatprep.subr.bf16.mxu0 0
        %3489 = vmatpush2.bf16.xpose.msra.mxu0 0
        %3490 = vmatprep.subr.bf16.mxu0 0
        %3491 = vmatpush2.bf16.xpose.msra.mxu0 0
        %3492 = vmatprep.subr.bf16.mxu0 0
        %3493 = vmatpush2.bf16.xpose.msra.mxu0 0
        %3494 = vmatprep.subr.bf16.mxu0 0
        %3495 = vmatpush2.bf16.xpose.msra.mxu0 0
        %3496 = vmatprep.mubr.bf16.mxu0 0
        %3497 = vmatmul.mubr.bf16.gmra.mxu0 %v3459
        %v3498 = vpop.f32.mrf.mxu0
        %v3499 = vadd.f32 0.0, %v3498
        %v3500 = vpop.f32.mrf.mxu0
        %v3501 = vpop.f32.mrf.mxu0
        %v3502 = vpop.f32.mrf.mxu0
        %3503 = vdwg.mxu0
        %v3504 = vmul.f32 %v3499, 0.35355338
        %v3505 = vsel %vm1602, %v3504, -1e+09
        %v3506 = vsel %vm1548, %v3505, -inf
        %3507 = vmax.xlane.f32.xlu0 %v3506
        %v3508 = vpop.xlane.xlu0 %3507
        %v3509 = vsub.f32 %v3505, %v3508
        %v3510 = vmul.f32 %v3509, 1.442695
        %v3511 = vpow.pop %v3510
        %v3512 = vsel %vm1548, %v3511, 0.0
        %3513 = vadd.xlane.f32.xlu0 %v3512
        %v3514 = vpop.xlane.xlu0 %3513
        %v3515 = vrcp.pop %v3514
        %v3516 = vmul.f32 %v3511, %v3515
        %v3517 = vpack.c.bf16 %v3516, %v3516
        %3518 = vrot.lane.b32.xlu0 %v3343, 88
        %v3519 = vpop.permute.xlu0 %3518
        %v3521 = vsel %vm1548, %v3517, 0
        %v3524 = vsel %vm1621, %v3519, 0
        %3526 = vmatprep.subr.bf16.mxu0 0
        %3527 = vmatpush1.bf16.msra.mxu0 0
        %3528 = vmatprep.subr.bf16.mxu0 0
        %3529 = vmatpush1.bf16.msra.mxu0 0
        %3530 = vmatprep.subr.bf16.mxu0 0
        %3531 = vmatpush1.bf16.msra.mxu0 0
        %3532 = vmatprep.subr.bf16.mxu0 0
        %3533 = vmatpush1.bf16.msra.mxu0 0
        %3534 = vmatprep.subr.bf16.mxu0 0
        %3535 = vmatpush1.bf16.msra.mxu0 0
        %3536 = vmatprep.subr.bf16.mxu0 0
        %3537 = vmatpush1.bf16.msra.mxu0 0
        %3538 = vmatprep.subr.bf16.mxu0 0
        %3539 = vmatpush1.bf16.msra.mxu0 0
        %3540 = vmatprep.subr.bf16.mxu0 0
        %3541 = vmatpush1.bf16.msra.mxu0 %v3524
        %3542 = vmatprep.subr.bf16.mxu0 0
        %3543 = vmatpush2.bf16.msra.mxu0 0
        %3544 = vmatprep.subr.bf16.mxu0 0
        %3545 = vmatpush2.bf16.msra.mxu0 0
        %3546 = vmatprep.subr.bf16.mxu0 0
        %3547 = vmatpush2.bf16.msra.mxu0 0
        %3548 = vmatprep.subr.bf16.mxu0 0
        %3549 = vmatpush2.bf16.msra.mxu0 0
        %3550 = vmatprep.subr.bf16.mxu0 0
        %3551 = vmatpush2.bf16.msra.mxu0 0
        %3552 = vmatprep.subr.bf16.mxu0 0
        %3553 = vmatpush2.bf16.msra.mxu0 0
        %3554 = vmatprep.subr.bf16.mxu0 0
        %3555 = vmatpush2.bf16.msra.mxu0 0
        %3556 = vmatprep.subr.bf16.mxu0 0
        %3557 = vmatpush2.bf16.msra.mxu0 0
        %3558 = vmatprep.mubr.bf16.mxu0 0
        %3559 = vmatmul.mubr.bf16.gmra.mxu0 %v3521
        %v3560 = vpop.f32.mrf.mxu0
        %v3561 = vadd.f32 0.0, %v3560
        %v3562 = vpop.f32.mrf.mxu0
        %v3563 = vpop.f32.mrf.mxu0
        %v3564 = vpop.f32.mrf.mxu0
        %3565 = vdwg.mxu0
        %3566 = vrot.lane.b32.xlu0 %v3342, 112
        %v3567 = vpop.permute.xlu0 %3566
        %3568 = vrot.lane.b32.xlu0 %v3343, 112
        %v3569 = vpop.permute.xlu0 %3568
        %v3571 = vsel %vm1548, %v3567, 0
        %v3574 = vsel %vm1548, %v3569, 0
        %3576 = vmatprep.subr.bf16.mxu0 0
        %3577 = vmatpush1.bf16.xpose.msra.mxu0 0
        %3578 = vmatprep.subr.bf16.mxu0 0
        %3579 = vmatpush1.bf16.xpose.msra.mxu0 0
        %3580 = vmatprep.subr.bf16.mxu0 0
        %3581 = vmatpush1.bf16.xpose.msra.mxu0 0
        %3582 = vmatprep.subr.bf16.mxu0 0
        %3583 = vmatpush1.bf16.xpose.msra.mxu0 0
        %3584 = vmatprep.subr.bf16.mxu0 0
        %3585 = vmatpush1.bf16.xpose.msra.mxu0 0
        %3586 = vmatprep.subr.bf16.mxu0 0
        %3587 = vmatpush1.bf16.xpose.msra.mxu0 0
        %3588 = vmatprep.subr.bf16.mxu0 0
        %3589 = vmatpush1.bf16.xpose.msra.mxu0 0
        %3590 = vmatprep.subr.bf16.mxu0 0
        %3591 = vmatpush1.bf16.xpose.msra.mxu0 %v3574
        %3592 = vmatprep.subr.bf16.mxu0 0
        %3593 = vmatpush2.bf16.xpose.msra.mxu0 0
        %3594 = vmatprep.subr.bf16.mxu0 0
        %3595 = vmatpush2.bf16.xpose.msra.mxu0 0
        %3596 = vmatprep.subr.bf16.mxu0 0
        %3597 = vmatpush2.bf16.xpose.msra.mxu0 0
        %3598 = vmatprep.subr.bf16.mxu0 0
        %3599 = vmatpush2.bf16.xpose.msra.mxu0 0
        %3600 = vmatprep.subr.bf16.mxu0 0
        %3601 = vmatpush2.bf16.xpose.msra.mxu0 0
        %3602 = vmatprep.subr.bf16.mxu0 0
        %3603 = vmatpush2.bf16.xpose.msra.mxu0 0
        %3604 = vmatprep.subr.bf16.mxu0 0
        %3605 = vmatpush2.bf16.xpose.msra.mxu0 0
        %3606 = vmatprep.subr.bf16.mxu0 0
        %3607 = vmatpush2.bf16.xpose.msra.mxu0 0
        %3608 = vmatprep.mubr.bf16.mxu0 0
        %3609 = vmatmul.mubr.bf16.gmra.mxu0 %v3571
        %v3610 = vpop.f32.mrf.mxu0
        %v3611 = vadd.f32 0.0, %v3610
        %v3612 = vpop.f32.mrf.mxu0
        %v3613 = vpop.f32.mrf.mxu0
        %v3614 = vpop.f32.mrf.mxu0
        %3615 = vdwg.mxu0
        %v3616 = vmul.f32 %v3611, 0.35355338
        %v3617 = vsel %vm1602, %v3616, -1e+09
        %v3618 = vsel %vm1548, %v3617, -inf
        %3619 = vmax.xlane.f32.xlu0 %v3618
        %v3620 = vpop.xlane.xlu0 %3619
        %v3621 = vsub.f32 %v3617, %v3620
        %v3622 = vmul.f32 %v3621, 1.442695
        %v3623 = vpow.pop %v3622
        %v3624 = vsel %vm1548, %v3623, 0.0
        %3625 = vadd.xlane.f32.xlu0 %v3624
        %v3626 = vpop.xlane.xlu0 %3625
        %v3627 = vrcp.pop %v3626
        %v3628 = vmul.f32 %v3623, %v3627
        %v3629 = vpack.c.bf16 %v3628, %v3628
        %3630 = vrot.lane.b32.xlu0 %v3343, 80
        %v3631 = vpop.permute.xlu0 %3630
        %v3633 = vsel %vm1548, %v3629, 0
        %v3636 = vsel %vm1621, %v3631, 0
        %3638 = vmatprep.subr.bf16.mxu0 0
        %3639 = vmatpush1.bf16.msra.mxu0 0
        %3640 = vmatprep.subr.bf16.mxu0 0
        %3641 = vmatpush1.bf16.msra.mxu0 0
        %3642 = vmatprep.subr.bf16.mxu0 0
        %3643 = vmatpush1.bf16.msra.mxu0 0
        %3644 = vmatprep.subr.bf16.mxu0 0
        %3645 = vmatpush1.bf16.msra.mxu0 0
        %3646 = vmatprep.subr.bf16.mxu0 0
        %3647 = vmatpush1.bf16.msra.mxu0 0
        %3648 = vmatprep.subr.bf16.mxu0 0
        %3649 = vmatpush1.bf16.msra.mxu0 0
        %3650 = vmatprep.subr.bf16.mxu0 0
        %3651 = vmatpush1.bf16.msra.mxu0 0
        %3652 = vmatprep.subr.bf16.mxu0 0
        %3653 = vmatpush1.bf16.msra.mxu0 %v3636
        %3654 = vmatprep.subr.bf16.mxu0 0
        %3655 = vmatpush2.bf16.msra.mxu0 0
        %3656 = vmatprep.subr.bf16.mxu0 0
        %3657 = vmatpush2.bf16.msra.mxu0 0
        %3658 = vmatprep.subr.bf16.mxu0 0
        %3659 = vmatpush2.bf16.msra.mxu0 0
        %3660 = vmatprep.subr.bf16.mxu0 0
        %3661 = vmatpush2.bf16.msra.mxu0 0
        %3662 = vmatprep.subr.bf16.mxu0 0
        %3663 = vmatpush2.bf16.msra.mxu0 0
        %3664 = vmatprep.subr.bf16.mxu0 0
        %3665 = vmatpush2.bf16.msra.mxu0 0
        %3666 = vmatprep.subr.bf16.mxu0 0
        %3667 = vmatpush2.bf16.msra.mxu0 0
        %3668 = vmatprep.subr.bf16.mxu0 0
        %3669 = vmatpush2.bf16.msra.mxu0 0
        %3670 = vmatprep.mubr.bf16.mxu0 0
        %3671 = vmatmul.mubr.bf16.gmra.mxu0 %v3633
        %v3672 = vpop.f32.mrf.mxu0
        %v3673 = vadd.f32 0.0, %v3672
        %v3674 = vpop.f32.mrf.mxu0
        %v3675 = vpop.f32.mrf.mxu0
        %v3676 = vpop.f32.mrf.mxu0
        %3677 = vdwg.mxu0
        %3678 = vrot.lane.b32.xlu0 %v3342, 104
        %v3679 = vpop.permute.xlu0 %3678
        %3680 = vrot.lane.b32.xlu0 %v3343, 104
        %v3681 = vpop.permute.xlu0 %3680
        %v3683 = vsel %vm1548, %v3679, 0
        %v3686 = vsel %vm1548, %v3681, 0
        %3688 = vmatprep.subr.bf16.mxu0 0
        %3689 = vmatpush1.bf16.xpose.msra.mxu0 0
        %3690 = vmatprep.subr.bf16.mxu0 0
        %3691 = vmatpush1.bf16.xpose.msra.mxu0 0
        %3692 = vmatprep.subr.bf16.mxu0 0
        %3693 = vmatpush1.bf16.xpose.msra.mxu0 0
        %3694 = vmatprep.subr.bf16.mxu0 0
        %3695 = vmatpush1.bf16.xpose.msra.mxu0 0
        %3696 = vmatprep.subr.bf16.mxu0 0
        %3697 = vmatpush1.bf16.xpose.msra.mxu0 0
        %3698 = vmatprep.subr.bf16.mxu0 0
        %3699 = vmatpush1.bf16.xpose.msra.mxu0 0
        %3700 = vmatprep.subr.bf16.mxu0 0
        %3701 = vmatpush1.bf16.xpose.msra.mxu0 0
        %3702 = vmatprep.subr.bf16.mxu0 0
        %3703 = vmatpush1.bf16.xpose.msra.mxu0 %v3686
        %3704 = vmatprep.subr.bf16.mxu0 0
        %3705 = vmatpush2.bf16.xpose.msra.mxu0 0
        %3706 = vmatprep.subr.bf16.mxu0 0
        %3707 = vmatpush2.bf16.xpose.msra.mxu0 0
        %3708 = vmatprep.subr.bf16.mxu0 0
        %3709 = vmatpush2.bf16.xpose.msra.mxu0 0
        %3710 = vmatprep.subr.bf16.mxu0 0
        %3711 = vmatpush2.bf16.xpose.msra.mxu0 0
        %3712 = vmatprep.subr.bf16.mxu0 0
        %3713 = vmatpush2.bf16.xpose.msra.mxu0 0
        %3714 = vmatprep.subr.bf16.mxu0 0
        %3715 = vmatpush2.bf16.xpose.msra.mxu0 0
        %3716 = vmatprep.subr.bf16.mxu0 0
        %3717 = vmatpush2.bf16.xpose.msra.mxu0 0
        %3718 = vmatprep.subr.bf16.mxu0 0
        %3719 = vmatpush2.bf16.xpose.msra.mxu0 0
        %3720 = vmatprep.mubr.bf16.mxu0 0
        %3721 = vmatmul.mubr.bf16.gmra.mxu0 %v3683
        %v3722 = vpop.f32.mrf.mxu0
        %v3723 = vadd.f32 0.0, %v3722
        %v3724 = vpop.f32.mrf.mxu0
        %v3725 = vpop.f32.mrf.mxu0
        %v3726 = vpop.f32.mrf.mxu0
        %3727 = vdwg.mxu0
        %v3728 = vmul.f32 %v3723, 0.35355338
        %v3729 = vsel %vm1602, %v3728, -1e+09
        %v3730 = vsel %vm1548, %v3729, -inf
        %3731 = vmax.xlane.f32.xlu0 %v3730
        %v3732 = vpop.xlane.xlu0 %3731
        %v3733 = vsub.f32 %v3729, %v3732
        %v3734 = vmul.f32 %v3733, 1.442695
        %v3735 = vpow.pop %v3734
        %v3736 = vsel %vm1548, %v3735, 0.0
        %3737 = vadd.xlane.f32.xlu0 %v3736
        %v3738 = vpop.xlane.xlu0 %3737
        %v3739 = vrcp.pop %v3738
        %v3740 = vmul.f32 %v3735, %v3739
        %v3741 = vpack.c.bf16 %v3740, %v3740
        %3742 = vrot.lane.b32.xlu0 %v3343, 72
        %v3743 = vpop.permute.xlu0 %3742
        %v3745 = vsel %vm1548, %v3741, 0
        %v3748 = vsel %vm1621, %v3743, 0
        %3750 = vmatprep.subr.bf16.mxu0 0
        %3751 = vmatpush1.bf16.msra.mxu0 0
        %3752 = vmatprep.subr.bf16.mxu0 0
        %3753 = vmatpush1.bf16.msra.mxu0 0
        %3754 = vmatprep.subr.bf16.mxu0 0
        %3755 = vmatpush1.bf16.msra.mxu0 0
        %3756 = vmatprep.subr.bf16.mxu0 0
        %3757 = vmatpush1.bf16.msra.mxu0 0
        %3758 = vmatprep.subr.bf16.mxu0 0
        %3759 = vmatpush1.bf16.msra.mxu0 0
        %3760 = vmatprep.subr.bf16.mxu0 0
        %3761 = vmatpush1.bf16.msra.mxu0 0
        %3762 = vmatprep.subr.bf16.mxu0 0
        %3763 = vmatpush1.bf16.msra.mxu0 0
        %3764 = vmatprep.subr.bf16.mxu0 0
        %3765 = vmatpush1.bf16.msra.mxu0 %v3748
        %3766 = vmatprep.subr.bf16.mxu0 0
        %3767 = vmatpush2.bf16.msra.mxu0 0
        %3768 = vmatprep.subr.bf16.mxu0 0
        %3769 = vmatpush2.bf16.msra.mxu0 0
        %3770 = vmatprep.subr.bf16.mxu0 0
        %3771 = vmatpush2.bf16.msra.mxu0 0
        %3772 = vmatprep.subr.bf16.mxu0 0
        %3773 = vmatpush2.bf16.msra.mxu0 0
        %3774 = vmatprep.subr.bf16.mxu0 0
        %3775 = vmatpush2.bf16.msra.mxu0 0
        %3776 = vmatprep.subr.bf16.mxu0 0
        %3777 = vmatpush2.bf16.msra.mxu0 0
        %3778 = vmatprep.subr.bf16.mxu0 0
        %3779 = vmatpush2.bf16.msra.mxu0 0
        %3780 = vmatprep.subr.bf16.mxu0 0
        %3781 = vmatpush2.bf16.msra.mxu0 0
        %3782 = vmatprep.mubr.bf16.mxu0 0
        %3783 = vmatmul.mubr.bf16.gmra.mxu0 %v3745
        %v3784 = vpop.f32.mrf.mxu0
        %v3785 = vadd.f32 0.0, %v3784
        %v3786 = vpop.f32.mrf.mxu0
        %v3787 = vpop.f32.mrf.mxu0
        %v3788 = vpop.f32.mrf.mxu0
        %3789 = vdwg.mxu0
        %3791 = vrot.lane.b32.xlu0 %v3561, 8
        %v3792 = vpop.permute.xlu0 %3791
        %3795 = vrot.lane.b32.xlu0 %v3673, 16
        %v3796 = vpop.permute.xlu0 %3795
        %3799 = vrot.lane.b32.xlu0 %v3785, 24
        %v3800 = vpop.permute.xlu0 %3799
        %v3802 = vsel %vm1548, %v3448, %v3792
        %v3803 = vsel %vm2014, %v3802, %v3796
        %v3804 = vsel %vm2016, %v3803, %v3800
        %v3805 = vpack.c.bf16 %v3804, %v3804
        %v3807 = vlaneseq
        %v3808 = vshrl.u32 %v3807, 7
        %v3809 = vsub.s32 0, %v3808
        %v3810 = vrot.slane %v3217, %v3809
        %v3816 = vunpack.c.l.b16 %v3213
        %v3817 = vunpack.c.l.b16 %v3214
        %v3818 = vunpack.c.l.b16 %v3215
        %v3819 = vunpack.c.l.b16 %v3216
        %v3820 = vpack.c.b16 %v3817, %v3816
        %v3821 = vpack.c.b16 %v3819, %v3818
        %v3825 = vsel %vm1447, %v3805, 0
        %3827 = vmatprep.subr.bf16.mxu0 0
        %3828 = vmatpush1.bf16.msra.mxu0 0
        %3829 = vmatprep.subr.bf16.mxu0 0
        %3830 = vmatpush1.bf16.msra.mxu0 0
        %3831 = vmatprep.subr.bf16.mxu0 0
        %3832 = vmatpush1.bf16.msra.mxu0 0
        %3833 = vmatprep.subr.bf16.mxu0 0
        %3834 = vmatpush1.bf16.msra.mxu0 0
        %3835 = vmatprep.subr.bf16.mxu0 0
        %3836 = vmatpush1.bf16.msra.mxu0 0
        %3837 = vmatprep.subr.bf16.mxu0 0
        %3838 = vmatpush1.bf16.msra.mxu0 0
        %3839 = vmatprep.subr.bf16.mxu0 0
        %3840 = vmatpush1.bf16.msra.mxu0 %v3821
        %3841 = vmatprep.subr.bf16.mxu0 0
        %3842 = vmatpush1.bf16.msra.mxu0 %v3820
        %3843 = vmatprep.subr.bf16.mxu0 0
        %3844 = vmatpush2.bf16.msra.mxu0 0
        %3845 = vmatprep.subr.bf16.mxu0 0
        %3846 = vmatpush2.bf16.msra.mxu0 0
        %3847 = vmatprep.subr.bf16.mxu0 0
        %3848 = vmatpush2.bf16.msra.mxu0 0
        %3849 = vmatprep.subr.bf16.mxu0 0
        %3850 = vmatpush2.bf16.msra.mxu0 0
        %3851 = vmatprep.subr.bf16.mxu0 0
        %3852 = vmatpush2.bf16.msra.mxu0 0
        %3853 = vmatprep.subr.bf16.mxu0 0
        %3854 = vmatpush2.bf16.msra.mxu0 0
        %3855 = vmatprep.subr.bf16.mxu0 0
        %3856 = vmatpush2.bf16.msra.mxu0 0
        %3857 = vmatprep.subr.bf16.mxu0 0
        %3858 = vmatpush2.bf16.msra.mxu0 0
        %3859 = vmatprep.mubr.bf16.mxu0 0
        %3860 = vmatmul.mubr.bf16.gmra.mxu0 %v3825
        %v3861 = vpop.f32.mrf.mxu0
        %v3862 = vadd.f32 %v3810, %v3861
        %v3863 = vpop.f32.mrf.mxu0
        %v3864 = vpop.f32.mrf.mxu0
        %v3865 = vpop.f32.mrf.mxu0
        %3866 = vdwg.mxu0
        %v3867 = vadd.f32 %v3177, %v3862
        %s3868 = scalar_lea.vmem %s41, 4
        %v3869 = vld [vmem:[%s3868] sm:$0x3]
        %v3870 = vsel %vm1447, %v3867, 0.0
        %3871 = vadd.xlane.f32.xlu0 %v3870
        %v3872 = vpop.xlane.xlu0 %3871
        %v3873 = vmul.f32 %v3872, %v1451
        %v3874 = vsub.f32 %v3867, %v3873
        %v3875 = vmul.f32 %v3874, %v3874
        %v3876 = vsel %vm1447, %v3875, 0.0
        %3877 = vadd.xlane.f32.xlu0 %v3876
        %v3878 = vpop.xlane.xlu0 %3877
        %v3879 = vmul.f32 %v3878, %v1451
        %v3880 = vadd.f32 %v3879, 1e-05
        %v3881 = vrsqrt.pop %v3880
        %v3882 = vmul.f32 %v3874, %v3881
        %v3883 = vlaneseq
        %v3884 = vshrl.u32 %v3883, 7
        %v3885 = vsub.s32 0, %v3884
        %v3886 = vrot.slane %v3869, %v3885
        %v3887 = vmul.f32 %v3882, %v3886
        %v3888 = vlaneseq
        %v3889 = vshrl.u32 %v3888, 7
        %v3890 = vsub.s32 1, %v3889
        %v3891 = vrot.slane %v3869, %v3890
        %v3892 = vadd.f32 %v3887, %v3891
        %v3893 = vld [vmem:[%s63] sm:$0xf]
        %v3894 = vld [vmem:[%s63 + $0x4] sm:$0xf]
        %v3895 = vld [vmem:[%s63 + $0x8] sm:$0xf]
        %v3896 = vld [vmem:[%s63 + $0xc] sm:$0xf]
        %v3897 = vld [vmem:[%s65] sm:$0x1]
        %v3898 = vld [vmem:[%s67] sm:$0xf]
        %v3899 = vld [vmem:[%s67 + $0x4] sm:$0xf]
        %v3900 = vld [vmem:[%s67 + $0x8] sm:$0xf]
        %v3901 = vld [vmem:[%s67 + $0xc] sm:$0xf]
        %v3902 = vld [vmem:[%s67 + $0x10] sm:$0xf]
        %v3903 = vld [vmem:[%s67 + $0x14] sm:$0xf]
        %v3904 = vld [vmem:[%s67 + $0x18] sm:$0xf]
        %v3905 = vld [vmem:[%s67 + $0x1c] sm:$0xf]
        %v3906 = vld [vmem:[%s69] sm:$0x1]
        %v3907 = vpack.c.bf16 %v3892, %v3892
        %v3909 = vlaneseq
        %v3910 = vshrl.u32 %v3909, 7
        %v3911 = vsub.s32 0, %v3910
        %v3912 = vrot.slane %v3897, %v3911
        %v3918 = vunpack.c.l.b16 %v3893
        %v3919 = vunpack.c.l.b16 %v3894
        %v3920 = vunpack.c.l.b16 %v3895
        %v3921 = vunpack.c.l.b16 %v3896
        %v3922 = vpack.c.b16 %v3919, %v3918
        %v3923 = vpack.c.b16 %v3921, %v3920
        %v3927 = vsel %vm1447, %v3907, 0
        %3929 = vmatprep.subr.bf16.mxu0 0
        %3930 = vmatpush1.bf16.msra.mxu0 0
        %3931 = vmatprep.subr.bf16.mxu0 0
        %3932 = vmatpush1.bf16.msra.mxu0 0
        %3933 = vmatprep.subr.bf16.mxu0 0
        %3934 = vmatpush1.bf16.msra.mxu0 0
        %3935 = vmatprep.subr.bf16.mxu0 0
        %3936 = vmatpush1.bf16.msra.mxu0 0
        %3937 = vmatprep.subr.bf16.mxu0 0
        %3938 = vmatpush1.bf16.msra.mxu0 0
        %3939 = vmatprep.subr.bf16.mxu0 0
        %3940 = vmatpush1.bf16.msra.mxu0 0
        %3941 = vmatprep.subr.bf16.mxu0 0
        %3942 = vmatpush1.bf16.msra.mxu0 %v3923
        %3943 = vmatprep.subr.bf16.mxu0 0
        %3944 = vmatpush1.bf16.msra.mxu0 %v3922
        %3945 = vmatprep.subr.bf16.mxu0 0
        %3946 = vmatpush2.bf16.msra.mxu0 0
        %3947 = vmatprep.subr.bf16.mxu0 0
        %3948 = vmatpush2.bf16.msra.mxu0 0
        %3949 = vmatprep.subr.bf16.mxu0 0
        %3950 = vmatpush2.bf16.msra.mxu0 0
        %3951 = vmatprep.subr.bf16.mxu0 0
        %3952 = vmatpush2.bf16.msra.mxu0 0
        %3953 = vmatprep.subr.bf16.mxu0 0
        %3954 = vmatpush2.bf16.msra.mxu0 0
        %3955 = vmatprep.subr.bf16.mxu0 0
        %3956 = vmatpush2.bf16.msra.mxu0 0
        %3957 = vmatprep.subr.bf16.mxu0 0
        %3958 = vmatpush2.bf16.msra.mxu0 0
        %3959 = vmatprep.subr.bf16.mxu0 0
        %3960 = vmatpush2.bf16.msra.mxu0 0
        %3961 = vmatprep.mubr.bf16.mxu0 0
        %3962 = vmatmul.mubr.bf16.gmra.mxu0 %v3927
        %v3963 = vpop.f32.mrf.mxu0
        %v3964 = vadd.f32 %v3912, %v3963
        %v3965 = vpop.f32.mrf.mxu0
        %v3966 = vpop.f32.mrf.mxu0
        %v3967 = vpop.f32.mrf.mxu0
        %3968 = vdwg.mxu0
        %v3969 = vmax.f32 %v3964, 0.0
        %v3970 = vpack.c.bf16 %v3969, %v3969
        %v3972 = vlaneseq
        %v3973 = vshrl.u32 %v3972, 7
        %v3974 = vsub.s32 0, %v3973
        %v3975 = vrot.slane %v3906, %v3974
        %v3985 = vunpack.c.l.b16 %v3898
        %v3986 = vunpack.c.l.b16 %v3899
        %v3987 = vunpack.c.l.b16 %v3900
        %v3988 = vunpack.c.l.b16 %v3901
        %v3989 = vunpack.c.l.b16 %v3902
        %v3990 = vunpack.c.l.b16 %v3903
        %v3991 = vunpack.c.l.b16 %v3904
        %v3992 = vunpack.c.l.b16 %v3905
        %v3993 = vpack.c.b16 %v3986, %v3985
        %v3994 = vpack.c.b16 %v3988, %v3987
        %v3995 = vpack.c.b16 %v3990, %v3989
        %v3996 = vpack.c.b16 %v3992, %v3991
        %v4002 = vsel %vm2214, %v3970, 0
        %4004 = vmatprep.subr.bf16.mxu0 0
        %4005 = vmatpush1.bf16.msra.mxu0 0
        %4006 = vmatprep.subr.bf16.mxu0 0
        %4007 = vmatpush1.bf16.msra.mxu0 0
        %4008 = vmatprep.subr.bf16.mxu0 0
        %4009 = vmatpush1.bf16.msra.mxu0 0
        %4010 = vmatprep.subr.bf16.mxu0 0
        %4011 = vmatpush1.bf16.msra.mxu0 0
        %4012 = vmatprep.subr.bf16.mxu0 0
        %4013 = vmatpush1.bf16.msra.mxu0 %v3996
        %4014 = vmatprep.subr.bf16.mxu0 0
        %4015 = vmatpush1.bf16.msra.mxu0 %v3995
        %4016 = vmatprep.subr.bf16.mxu0 0
        %4017 = vmatpush1.bf16.msra.mxu0 %v3994
        %4018 = vmatprep.subr.bf16.mxu0 0
        %4019 = vmatpush1.bf16.msra.mxu0 %v3993
        %4020 = vmatprep.subr.bf16.mxu0 0
        %4021 = vmatpush2.bf16.msra.mxu0 0
        %4022 = vmatprep.subr.bf16.mxu0 0
        %4023 = vmatpush2.bf16.msra.mxu0 0
        %4024 = vmatprep.subr.bf16.mxu0 0
        %4025 = vmatpush2.bf16.msra.mxu0 0
        %4026 = vmatprep.subr.bf16.mxu0 0
        %4027 = vmatpush2.bf16.msra.mxu0 0
        %4028 = vmatprep.subr.bf16.mxu0 0
        %4029 = vmatpush2.bf16.msra.mxu0 0
        %4030 = vmatprep.subr.bf16.mxu0 0
        %4031 = vmatpush2.bf16.msra.mxu0 0
        %4032 = vmatprep.subr.bf16.mxu0 0
        %4033 = vmatpush2.bf16.msra.mxu0 0
        %4034 = vmatprep.subr.bf16.mxu0 0
        %4035 = vmatpush2.bf16.msra.mxu0 0
        %4036 = vmatprep.mubr.bf16.mxu0 0
        %4037 = vmatmul.mubr.bf16.gmra.mxu0 %v4002
        %v4038 = vpop.f32.mrf.mxu0
        %v4039 = vadd.f32 %v3975, %v4038
        %v4040 = vpop.f32.mrf.mxu0
        %v4041 = vpop.f32.mrf.mxu0
        %v4042 = vpop.f32.mrf.mxu0
        %4043 = vdwg.mxu0
        %v4044 = vadd.f32 %v3867, %v4039
        %s4045 = scalar_lea.vmem %s41, 6
        %v4046 = vld [vmem:[%s4045] sm:$0x3]
        %v4047 = vsel %vm1447, %v4044, 0.0
        %4048 = vadd.xlane.f32.xlu0 %v4047
        %v4049 = vpop.xlane.xlu0 %4048
        %v4050 = vmul.f32 %v4049, %v1451
        %v4051 = vsub.f32 %v4044, %v4050
        %v4052 = vmul.f32 %v4051, %v4051
        %v4053 = vsel %vm1447, %v4052, 0.0
        %4054 = vadd.xlane.f32.xlu0 %v4053
        %v4055 = vpop.xlane.xlu0 %4054
        %v4056 = vmul.f32 %v4055, %v1451
        %v4057 = vadd.f32 %v4056, 1e-05
        %v4058 = vrsqrt.pop %v4057
        %v4059 = vmul.f32 %v4051, %v4058
        %v4060 = vlaneseq
        %v4061 = vshrl.u32 %v4060, 7
        %v4062 = vsub.s32 0, %v4061
        %v4063 = vrot.slane %v4046, %v4062
        %v4064 = vmul.f32 %v4059, %v4063
        %v4065 = vlaneseq
        %v4066 = vshrl.u32 %v4065, 7
        %v4067 = vsub.s32 1, %v4066
        %v4068 = vrot.slane %v4046, %v4067
        %v4069 = vadd.f32 %v4064, %v4068
        %v4070 = vld [vmem:[%s71] sm:$0xf]
        %v4071 = vld [vmem:[%s71 + $0x4] sm:$0xf]
        %v4072 = vld [vmem:[%s71 + $0x8] sm:$0xf]
        %v4073 = vld [vmem:[%s71 + $0xc] sm:$0xf]
        %v4074 = vpack.c.bf16 %v4069, %v4069
        %v4075 = vld [vmem:[%s73] sm:$0x1]
        %v4077 = vlaneseq
        %v4078 = vshrl.u32 %v4077, 7
        %v4079 = vsub.s32 0, %v4078
        %v4080 = vrot.slane %v4075, %v4079
        %v4086 = vunpack.c.l.b16 %v4070
        %v4087 = vunpack.c.l.b16 %v4071
        %v4088 = vunpack.c.l.b16 %v4072
        %v4089 = vunpack.c.l.b16 %v4073
        %v4090 = vpack.c.b16 %v4087, %v4086
        %v4091 = vpack.c.b16 %v4089, %v4088
        %v4095 = vsel %vm1447, %v4074, 0
        %4097 = vmatprep.subr.bf16.mxu0 0
        %4098 = vmatpush1.bf16.msra.mxu0 0
        %4099 = vmatprep.subr.bf16.mxu0 0
        %4100 = vmatpush1.bf16.msra.mxu0 0
        %4101 = vmatprep.subr.bf16.mxu0 0
        %4102 = vmatpush1.bf16.msra.mxu0 0
        %4103 = vmatprep.subr.bf16.mxu0 0
        %4104 = vmatpush1.bf16.msra.mxu0 0
        %4105 = vmatprep.subr.bf16.mxu0 0
        %4106 = vmatpush1.bf16.msra.mxu0 0
        %4107 = vmatprep.subr.bf16.mxu0 0
        %4108 = vmatpush1.bf16.msra.mxu0 0
        %4109 = vmatprep.subr.bf16.mxu0 0
        %4110 = vmatpush1.bf16.msra.mxu0 %v4091
        %4111 = vmatprep.subr.bf16.mxu0 0
        %4112 = vmatpush1.bf16.msra.mxu0 %v4090
        %4113 = vmatprep.subr.bf16.mxu0 0
        %4114 = vmatpush2.bf16.msra.mxu0 0
        %4115 = vmatprep.subr.bf16.mxu0 0
        %4116 = vmatpush2.bf16.msra.mxu0 0
        %4117 = vmatprep.subr.bf16.mxu0 0
        %4118 = vmatpush2.bf16.msra.mxu0 0
        %4119 = vmatprep.subr.bf16.mxu0 0
        %4120 = vmatpush2.bf16.msra.mxu0 0
        %4121 = vmatprep.subr.bf16.mxu0 0
        %4122 = vmatpush2.bf16.msra.mxu0 0
        %4123 = vmatprep.subr.bf16.mxu0 0
        %4124 = vmatpush2.bf16.msra.mxu0 0
        %4125 = vmatprep.subr.bf16.mxu0 0
        %4126 = vmatpush2.bf16.msra.mxu0 0
        %4127 = vmatprep.subr.bf16.mxu0 0
        %4128 = vmatpush2.bf16.msra.mxu0 0
        %4129 = vmatprep.mubr.bf16.mxu0 0
        %4130 = vmatmul.mubr.bf16.gmra.mxu0 %v4095
        %v4131 = vpop.f32.mrf.mxu0
        %v4132 = vadd.f32 %v4080, %v4131
        %v4133 = vpop.f32.mrf.mxu0
        %v4134 = vpop.f32.mrf.mxu0
        %v4135 = vpop.f32.mrf.mxu0
        %4136 = vdwg.mxu0
        %vm4137 = vcmask 203776
        %v4138 = vsel %vm4137, %v4132, -inf
        %4139 = vmax.xlane.f32.xlu0 %v4138
        %v4140 = vpop.xlane.xlu0 %4139
        %v4141 = vsub.f32 %v4132, %v4140
        %v4142 = vmul.f32 %v4141, 1.442695
        %v4143 = vpow.pop %v4142
        %v4144 = vsel %vm4137, %v4143, 0.0
        %4145 = vadd.xlane.f32.xlu0 %v4144
        %v4146 = vpop.xlane.xlu0 %4145
        %v4147 = vlog2.pop %v4146
        %v4148 = vmul.f32 %v4147, 0.6931472
        %v4149 = vadd.f32 %v4148, %v4140
        %v4150 = vsub.f32 %v4132, %v4149
        %4151 = vst.msk [vmem:[%s1398] sm:$0xff] %vm4137, %v4150
        %v4152 = vld [vmem:[%s75] sm:$0xf]
        %v4153 = vld [vmem:[%s75 + $0x4] sm:$0xf]
        %v4154 = vld [vmem:[%s77] sm:$0x1]
        %v4157 = vunpack.c.l.b16 %v4152
        %v4158 = vunpack.c.l.b16 %v4153
        %v4159 = vpack.c.b16 %v4158, %v4157
        %4161 = vmatprep.subr.bf16.mxu0 0
        %4162 = vmatpush1.bf16.msra.mxu0 0
        %4163 = vmatprep.subr.bf16.mxu0 0
        %4164 = vmatpush1.bf16.msra.mxu0 0
        %4165 = vmatprep.subr.bf16.mxu0 0
        %4166 = vmatpush1.bf16.msra.mxu0 0
        %4167 = vmatprep.subr.bf16.mxu0 0
        %4168 = vmatpush1.bf16.msra.mxu0 0
        %4169 = vmatprep.subr.bf16.mxu0 0
        %4170 = vmatpush1.bf16.msra.mxu0 0
        %4171 = vmatprep.subr.bf16.mxu0 0
        %4172 = vmatpush1.bf16.msra.mxu0 0
        %4173 = vmatprep.subr.bf16.mxu0 0
        %4174 = vmatpush1.bf16.msra.mxu0 0
        %4175 = vmatprep.subr.bf16.mxu0 0
        %4176 = vmatpush1.bf16.msra.mxu0 %v4159
        %4177 = vmatprep.subr.bf16.mxu0 0
        %4178 = vmatpush2.bf16.msra.mxu0 0
        %4179 = vmatprep.subr.bf16.mxu0 0
        %4180 = vmatpush2.bf16.msra.mxu0 0
        %4181 = vmatprep.subr.bf16.mxu0 0
        %4182 = vmatpush2.bf16.msra.mxu0 0
        %4183 = vmatprep.subr.bf16.mxu0 0
        %4184 = vmatpush2.bf16.msra.mxu0 0
        %4185 = vmatprep.subr.bf16.mxu0 0
        %4186 = vmatpush2.bf16.msra.mxu0 0
        %4187 = vmatprep.subr.bf16.mxu0 0
        %4188 = vmatpush2.bf16.msra.mxu0 0
        %4189 = vmatprep.subr.bf16.mxu0 0
        %4190 = vmatpush2.bf16.msra.mxu0 0
        %4191 = vmatprep.subr.bf16.mxu0 0
        %4192 = vmatpush2.bf16.msra.mxu0 0
        %4193 = vmatprep.mubr.bf16.mxu0 0
        %4194 = vmatmul.mubr.bf16.gmra.mxu0 %v2511
        %v4195 = vpop.f32.mrf.mxu0
        %v4196 = vadd.f32 %v4154, %v4195
        %v4197 = vpop.f32.mrf.mxu0
        %v4198 = vpop.f32.mrf.mxu0
        %v4199 = vpop.f32.mrf.mxu0
        %4200 = vdwg.mxu0
        %v4201 = vmax.f32 %v4196, 0.0
        %v4202 = vld [vmem:[%s79] sm:$0xf]
        %v4203 = vld [vmem:[%s79 + $0x4] sm:$0xf]
        %v4204 = vpack.c.bf16 %v4201, %v4201
        %v4205 = vld [vmem:[#allocation2] sm:$0x1]
        %v4208 = vunpack.c.l.b16 %v4202
        %v4209 = vunpack.c.l.b16 %v4203
        %v4210 = vpack.c.b16 %v4209, %v4208
        %v4213 = vsel %vm2014, %v4204, 0
        %4215 = vmatprep.subr.bf16.mxu0 0
        %4216 = vmatpush1.bf16.msra.mxu0 0
        %4217 = vmatprep.subr.bf16.mxu0 0
        %4218 = vmatpush1.bf16.msra.mxu0 0
        %4219 = vmatprep.subr.bf16.mxu0 0
        %4220 = vmatpush1.bf16.msra.mxu0 0
        %4221 = vmatprep.subr.bf16.mxu0 0
        %4222 = vmatpush1.bf16.msra.mxu0 0
        %4223 = vmatprep.subr.bf16.mxu0 0
        %4224 = vmatpush1.bf16.msra.mxu0 0
        %4225 = vmatprep.subr.bf16.mxu0 0
        %4226 = vmatpush1.bf16.msra.mxu0 0
        %4227 = vmatprep.subr.bf16.mxu0 0
        %4228 = vmatpush1.bf16.msra.mxu0 0
        %4229 = vmatprep.subr.bf16.mxu0 0
        %4230 = vmatpush1.bf16.msra.mxu0 %v4210
        %4231 = vmatprep.subr.bf16.mxu0 0
        %4232 = vmatpush2.bf16.msra.mxu0 0
        %4233 = vmatprep.subr.bf16.mxu0 0
        %4234 = vmatpush2.bf16.msra.mxu0 0
        %4235 = vmatprep.subr.bf16.mxu0 0
        %4236 = vmatpush2.bf16.msra.mxu0 0
        %4237 = vmatprep.subr.bf16.mxu0 0
        %4238 = vmatpush2.bf16.msra.mxu0 0
        %4239 = vmatprep.subr.bf16.mxu0 0
        %4240 = vmatpush2.bf16.msra.mxu0 0
        %4241 = vmatprep.subr.bf16.mxu0 0
        %4242 = vmatpush2.bf16.msra.mxu0 0
        %4243 = vmatprep.subr.bf16.mxu0 0
        %4244 = vmatpush2.bf16.msra.mxu0 0
        %4245 = vmatprep.subr.bf16.mxu0 0
        %4246 = vmatpush2.bf16.msra.mxu0 0
        %4247 = vmatprep.mubr.bf16.mxu0 0
        %4248 = vmatmul.mubr.bf16.gmra.mxu0 %v4213
        %v4249 = vpop.f32.mrf.mxu0
        %v4250 = vadd.f32 %v4205, %v4249
        %v4251 = vpop.f32.mrf.mxu0
        %v4252 = vpop.f32.mrf.mxu0
        %v4253 = vpop.f32.mrf.mxu0
        %4254 = vdwg.mxu0
        %vm4255 = vcmask 122880
        %4256 = vst.msk [vmem:[%s1404] sm:$0x1] %vm4255, %v2420
        %4258 = vrot.lane.b32.xlu0 %v2420, 112
        %v4259 = vpop.permute.xlu0 %4258
        %4261 = vst.msk [vmem:[%s1410] sm:$0x1] %vm4255, %v4259
        %4262 = vst.msk [vmem:[%s1416] sm:$0x1] %vm2284, %v2548
        %vm4263 = vcmask 0
        %4264 = vst.msk [vmem:[%s1442] sm:$0x1] %vm4263, %v4250
        %s4265 = sand.u32 %s1008, 1
        %s4266 = scalar_lea.sflag [#allocation4], %s4265
        %s4267 = sand.u32 %s1008, 1
        %s4268 = smul.addr %s4267, 8
        %s4269 = scalar_lea.vmem [#allocation3], %s4268
        %s4270 = sand.u32 %s114, 1
        %s4271 = scalar_lea.sflag [#allocation6], %s4270
        %s4272 = sand.u32 %s1034, 1
        %s4273 = scalar_lea.vmem [#allocation5], %s4272
        %s4274 = sand.u32 %s114, 1
        %s4275 = scalar_lea.sflag [#allocation6], %s4274
        %s4276 = sand.u32 %s1060, 1
        %s4277 = scalar_lea.vmem [#allocation7], %s4276
        %s4278 = sand.u32 %s1086, 1
        %s4279 = scalar_lea.sflag [#allocation9], %s4278
        %s4280 = sand.u32 %s1086, 1
        %s4281 = scalar_lea.vmem [#allocation8], %s4280
        %p4282 = scmp.lt.s32.totalorder %s114, 1
        %s4283 = scalar_select %p4282, %s114, 1
        %s4284 = scalar_lea.vmem %s91, %s4283
        // Predicated region
        $region185: #{forward.1} parent=183 // pred_check
          %p4285 = pneg %p1018
        $region186: #{forward.1} parent=183 // pred_check_branch
          %4287 = sbr.rel (%p4285) target = $region188
        $region187: #{forward.1} parent=183 // pred_region
          %s4289 = ssub.s32 128, 128
          %4290 = vsyncadd %s4266, %s4289
          %s4291 = smul.addr %s114, 128
          %s4292 = scalar_lea.hbm %s83, %s4291
          %s4294 = sshll.u32 %s4269, 4
          %s4295 = int_to_ptr.vmem [resolvable:$true] %s4294
          %4297 = dma.vmem_to_hbm [thread:$0]  %s4295, 128, %s4292, %s4266
        $region188: #{forward.1} parent=183 // pred_fallthru
          _
        // Predicated region
        $region189: #{forward.1} parent=183 // pred_check
          %p4298 = pneg %p1044
        $region190: #{forward.1} parent=183 // pred_check_branch
          %4300 = sbr.rel (%p4298) target = $region192
        $region191: #{forward.1} parent=183 // pred_region
          %s4302 = ssub.s32 16, 16
          %4303 = vsyncadd %s4271, %s4302
          %s4304 = smul.addr %s114, 16
          %s4305 = scalar_lea.hbm %s85, %s4304
          %s4307 = sshll.u32 %s4273, 4
          %s4308 = int_to_ptr.vmem [resolvable:$true] %s4307
          %4310 = dma.vmem_to_hbm [thread:$0]  %s4308, 16, %s4305, %s4271
        $region192: #{forward.1} parent=183 // pred_fallthru
          _
        // Predicated region
        $region193: #{forward.1} parent=183 // pred_check
          %p4311 = pneg %p1070
        $region194: #{forward.1} parent=183 // pred_check_branch
          %4313 = sbr.rel (%p4311) target = $region196
        $region195: #{forward.1} parent=183 // pred_region
          %s4315 = ssub.s32 16, 16
          %4316 = vsyncadd %s4275, %s4315
          %s4317 = smul.addr %s114, 16
          %s4318 = scalar_lea.hbm %s87, %s4317
          %s4320 = sshll.u32 %s4277, 4
          %s4321 = int_to_ptr.vmem [resolvable:$true] %s4320
          %4323 = dma.vmem_to_hbm [thread:$0]  %s4321, 16, %s4318, %s4275
        $region196: #{forward.1} parent=183 // pred_fallthru
          _
        // Predicated region
        $region197: #{forward.1} parent=183 // pred_check
          %p4324 = pneg %p1096
        $region198: #{forward.1} parent=183 // pred_check_branch
          %4326 = sbr.rel (%p4324) target = $region200
        $region199: #{forward.1} parent=183 // pred_region
          %s4328 = ssub.s32 16, 16
          %4329 = vsyncadd %s4279, %s4328
          %s4330 = smul.addr %s114, 16
          %s4331 = scalar_lea.hbm %s89, %s4330
          %s4333 = sshll.u32 %s4281, 4
          %s4334 = int_to_ptr.vmem [resolvable:$true] %s4333
          %4336 = dma.vmem_to_hbm [thread:$0]  %s4334, 16, %s4331, %s4279
        $region200: #{forward.1} parent=183 // pred_fallthru
          _
        // Predicated region
        $region201: #{forward.1} parent=183 // pred_check
          %p4337 = pneg %p1122
        $region202: #{forward.1} parent=183 // pred_check_branch
          %4339 = sbr.rel (%p4337) target = $region204
        $region203: #{forward.1} parent=183 // pred_region
          _
        $region204: #{forward.1} parent=183 // pred_fallthru
          _
      $region184: #{forward.1} parent=5 // pred_fallthru
        _
      %p4340 = scmp.le.s32.totalorder 2, %s109
      // Predicated region
      $region205: #{forward.1} parent=5 // pred_check
        %p4341 = pneg %p4340
      $region206: #{forward.1} parent=5 // pred_check_branch
        %4343 = sbr.rel (%p4341) target = $region208
      $region207: #{forward.1} parent=5 // pred_region
        %s4344 = ssub.s32 %s109, 2
        // Predicated region
        $region209: #{forward.1} parent=207 // pred_check
          %p4345 = pneg %p1024
        $region210: #{forward.1} parent=207 // pred_check_branch
          %4347 = sbr.rel (%p4345) target = $region212
        $region211: #{forward.1} parent=207 // pred_region
          %s4348 = sand.u32 %s1009, 1
          %s4349 = scalar_lea.sflag [#allocation4], %s4348
          %s4350 = sand.u32 %s1009, 1
          %s4351 = smul.addr %s4350, 8
          %s4352 = scalar_lea.vmem [#allocation3], %s4351
          %4353 = dma.done %s4349, 128
        $region212: #{forward.1} parent=207 // pred_fallthru
          _
        // Predicated region
        $region213: #{forward.1} parent=207 // pred_check
          %p4354 = pneg %p1050
        $region214: #{forward.1} parent=207 // pred_check_branch
          %4356 = sbr.rel (%p4354) target = $region216
        $region215: #{forward.1} parent=207 // pred_region
          %s4357 = sand.u32 %s115, 1
          %s4358 = scalar_lea.sflag [#allocation6], %s4357
          %s4359 = sand.u32 %s1035, 1
          %s4360 = scalar_lea.vmem [#allocation5], %s4359
          %4361 = dma.done %s4358, 16
        $region216: #{forward.1} parent=207 // pred_fallthru
          _
        // Predicated region
        $region217: #{forward.1} parent=207 // pred_check
          %p4362 = pneg %p1076
        $region218: #{forward.1} parent=207 // pred_check_branch
          %4364 = sbr.rel (%p4362) target = $region220
        $region219: #{forward.1} parent=207 // pred_region
          %s4365 = sand.u32 %s115, 1
          %s4366 = scalar_lea.sflag [#allocation6], %s4365
          %s4367 = sand.u32 %s1061, 1
          %s4368 = scalar_lea.vmem [#allocation7], %s4367
          %4369 = dma.done %s4366, 16
        $region220: #{forward.1} parent=207 // pred_fallthru
          _
        // Predicated region
        $region221: #{forward.1} parent=207 // pred_check
          %p4370 = pneg %p1102
        $region222: #{forward.1} parent=207 // pred_check_branch
          %4372 = sbr.rel (%p4370) target = $region224
        $region223: #{forward.1} parent=207 // pred_region
          %s4373 = sand.u32 %s1087, 1
          %s4374 = scalar_lea.sflag [#allocation9], %s4373
          %s4375 = sand.u32 %s1087, 1
          %s4376 = scalar_lea.vmem [#allocation8], %s4375
          %4377 = dma.done %s4374, 16
        $region224: #{forward.1} parent=207 // pred_fallthru
          _
        // Predicated region
        $region225: #{forward.1} parent=207 // pred_check
          %p4378 = pneg %p1128
        $region226: #{forward.1} parent=207 // pred_check_branch
          %4380 = sbr.rel (%p4378) target = $region228
        $region227: #{forward.1} parent=207 // pred_region
          %p4381 = scmp.lt.s32.totalorder %s115, 1
          %s4382 = scalar_select %p4381, %s115, 1
          %s4383 = scalar_lea.vmem %s91, %s4382
        $region228: #{forward.1} parent=207 // pred_fallthru
          _
      $region208: #{forward.1} parent=5 // pred_fallthru
        _
    $region6: #{forward.1} parent=1 // loop_footer
      %s113 = sadd.s32 1, %s109
    $region7: #{forward.1} parent=1 // loop_footer_branch
      %108 = sbr.rel target = $region3
    $region8: #{forward.1} parent=1 // loop_exit
      _
    %4384 = vsyncpa [#allocation4], 1
    %s4385 = scalar_lea.sflag [#allocation4], 1
    %4386 = vsyncpa %s4385, 1
    %4387 = vsyncpa [#allocation6], 1
    %s4388 = scalar_lea.sflag [#allocation6], 1
    %4389 = vsyncpa %s4388, 1
    %4390 = vsyncpa [#allocation9], 1
    %s4391 = scalar_lea.sflag [#allocation9], 1
    %4392 = vsyncpa %s4391, 1

</llo_original>
